<compile_context>
chip_gen: v7x
topology: tpu7x:2x2x1
jax: 0.10.0
libtpu: 0.0.40
codegen_flags: <defaults>
</compile_context>

<pallas_src>
import functools

import jax
import jax.numpy as jnp
from jax.experimental import pallas as pl
from jax.experimental.pallas import tpu as pltpu


LN_EPS = 1e-5                      # PyTorch nn.LayerNorm default
COMPUTE_DTYPE = jnp.float32        # set to jnp.bfloat16 for production perf


def _layernorm(x, g, b):
    """PyTorch nn.LayerNorm semantics: biased variance, eps=1e-5, f32 stats."""
    mean = jnp.mean(x, axis=-1, keepdims=True)
    xc = x - mean
    var = jnp.mean(xc * xc, axis=-1, keepdims=True)
    return xc * jax.lax.rsqrt(var + LN_EPS) * g + b


# ---------------------------------------------------------------------------
# Patch embedding: (B, n, patch_dim) @ (patch_dim, D) + b, gridded over batch.
# ---------------------------------------------------------------------------

def _patch_embed_kernel(x_ref, w_ref, b_ref, o_ref):
    o_ref[0] = (
        jnp.dot(x_ref[0], w_ref[...], preferred_element_type=jnp.float32)
        + b_ref[...]
    )


def patch_embed(x, w, b):
    B, n, pd = x.shape
    D = w.shape[1]
    return pl.pallas_call(
        _patch_embed_kernel,
        out_shape=jax.ShapeDtypeStruct((B, n, D), jnp.float32),
        grid=(B,),
        in_specs=[
            pl.BlockSpec((1, n, pd), lambda bi: (bi, 0, 0)),
            pl.BlockSpec((pd, D), lambda bi: (0, 0)),
            pl.BlockSpec((1, D), lambda bi: (0, 0)),
        ],
        out_specs=pl.BlockSpec((1, n, D), lambda bi: (bi, 0, 0)),
        compiler_params=pltpu.CompilerParams(
            dimension_semantics=("parallel",)),
    )(x, w, b[None, :])


# ---------------------------------------------------------------------------
# Fused Residual(PreNorm(Attention)) block, one invocation per batch element.
# ---------------------------------------------------------------------------

def _attn_block_kernel(scale, heads, dim_head,
                       x_ref, g_ref, b_ref, wqkv_ref, wo_ref, bo_ref, o_ref):
    x = x_ref[0]                                                     # (N, D)

    # fused PreNorm LayerNorm on the already-loaded block
    xn = _layernorm(x, g_ref[...], b_ref[...])

    # fused QKV: one lane-dense (N, D) @ (D, 3*inner) matmul.
    # Column layout matches torch's to_qkv(x).chunk(3, -1) + '(h d)' split:
    # [ q(h0..hH-1) | k(h0..hH-1) | v(h0..hH-1) ], each head slice dh wide.
    qkv = jnp.dot(xn, wqkv_ref[...], preferred_element_type=jnp.float32)

    wo = wo_ref[...]                                                 # (inner, D)
    inner = heads * dim_head
    acc = None
    for h in range(heads):                     # static unroll over heads
        lo = h * dim_head
        q = qkv[:, lo:lo + dim_head]                                 # (N, dh)
        k = qkv[:, inner + lo:inner + lo + dim_head]                 # (N, dh)
        v = qkv[:, 2 * inner + lo:2 * inner + lo + dim_head]         # (N, dh)

        # dots = q @ k^T * scale   (scale = dim**-0.5, as in the reference)
        dots = jax.lax.dot_general(
            q, k, (((1,), (1,)), ((), ())),
            preferred_element_type=jnp.float32) * scale              # (N, N)

        # numerically stable softmax; divide moved to the EUP reciprocal slot
        dots = dots - jnp.max(dots, axis=-1, keepdims=True)
        p = jnp.exp(dots)
        attn = p * pl.reciprocal(jnp.sum(p, axis=-1, keepdims=True),
                                 approx=True)

        out_h = jnp.dot(attn, v, preferred_element_type=jnp.float32)  # (N, dh)

        # Summed per-head projection == concat(heads) @ W_o (single logical
        # output projection), accumulated in registers within one invocation.
        contrib = jnp.dot(out_h, wo[lo:lo + dim_head, :],
                          preferred_element_type=jnp.float32)         # (N, D)
        acc = contrib if acc is None else acc + contrib

    # to_out bias + fused residual add (Residual(PreNorm(Attention)))
    o_ref[0] = acc + bo_ref[...] + x


def attention_block(x, g, b, w_qkv, wo, bo, *, heads, dim_head, scale):
    B, N, D = x.shape
    inner = heads * dim_head
    kernel = functools.partial(_attn_block_kernel, scale, heads, dim_head)
    return pl.pallas_call(
        kernel,
        out_shape=jax.ShapeDtypeStruct((B, N, D), jnp.float32),
        grid=(B,),
        in_specs=[
            pl.BlockSpec((1, N, D), lambda bi: (bi, 0, 0)),
            pl.BlockSpec((1, D), lambda bi: (0, 0)),
            pl.BlockSpec((1, D), lambda bi: (0, 0)),
            pl.BlockSpec((D, 3 * inner), lambda bi: (0, 0)),
            pl.BlockSpec((inner, D), lambda bi: (0, 0)),
            pl.BlockSpec((1, D), lambda bi: (0, 0)),
        ],
        out_specs=pl.BlockSpec((1, N, D), lambda bi: (bi, 0, 0)),
        compiler_params=pltpu.CompilerParams(
            dimension_semantics=("parallel",)),
    )(x, g[None, :], b[None, :], w_qkv, wo, bo[None, :])


# ---------------------------------------------------------------------------
# Fused Residual(PreNorm(FeedForward)):
#   kernel A: LN + W1 + b1   ->   XLA exact GELU   ->   kernel B: W2 + b2 + x
# ---------------------------------------------------------------------------

def _ffn_in_kernel(x_ref, g_ref, b_ref, w1_ref, b1_ref, h_ref):
    xn = _layernorm(x_ref[0], g_ref[...], b_ref[...])
    h_ref[0] = (
        jnp.dot(xn, w1_ref[...], preferred_element_type=jnp.float32)
        + b1_ref[...]
    )


def ffn_in(x, g, b, w1, b1):
    B, N, D = x.shape
    M = w1.shape[1]
    return pl.pallas_call(
        _ffn_in_kernel,
        out_shape=jax.ShapeDtypeStruct((B, N, M), jnp.float32),
        grid=(B,),
        in_specs=[
            pl.BlockSpec((1, N, D), lambda bi: (bi, 0, 0)),
            pl.BlockSpec((1, D), lambda bi: (0, 0)),
            pl.BlockSpec((1, D), lambda bi: (0, 0)),
            pl.BlockSpec((D, M), lambda bi: (0, 0)),
            pl.BlockSpec((1, M), lambda bi: (0, 0)),
        ],
        out_specs=pl.BlockSpec((1, N, M), lambda bi: (bi, 0, 0)),
        compiler_params=pltpu.CompilerParams(
            dimension_semantics=("parallel",)),
    )(x, g[None, :], b[None, :], w1, b1[None, :])


def _ffn_out_kernel(h_ref, w2_ref, b2_ref, res_ref, o_ref):
    o_ref[0] = (
        jnp.dot(h_ref[0], w2_ref[...], preferred_element_type=jnp.float32)
        + b2_ref[...]
        + res_ref[0]                       # fused residual add
    )


def ffn_out(h, w2, b2, res):
    B, N, M = h.shape
    D = w2.shape[1]
    return pl.pallas_call(
        _ffn_out_kernel,
        out_shape=jax.ShapeDtypeStruct((B, N, D), jnp.float32),
        grid=(B,),
        in_specs=[
            pl.BlockSpec((1, N, M), lambda bi: (bi, 0, 0)),
            pl.BlockSpec((M, D), lambda bi: (0, 0)),
            pl.BlockSpec((1, D), lambda bi: (0, 0)),
            pl.BlockSpec((1, N, D), lambda bi: (bi, 0, 0)),
        ],
        out_specs=pl.BlockSpec((1, N, D), lambda bi: (bi, 0, 0)),
        compiler_params=pltpu.CompilerParams(
            dimension_semantics=("parallel",)),
    )(h, w2, b2[None, :], res)


# ---------------------------------------------------------------------------
# Parameter initialization (deterministic, shape-matching the PyTorch module)
# ---------------------------------------------------------------------------

def init_params(key, *, image_size, patch_size, channels, dim, depth, heads,
                dim_head, mlp_dim, num_classes):
    num_patches = (image_size // patch_size) ** 2
    patch_dim = channels * patch_size ** 2
    inner = heads * dim_head
    keys = iter(jax.random.split(key, 8 + depth * 8))

    def nrm(shape, s=0.02):
        return (s * jax.random.normal(next(keys), shape)).astype(jnp.float32)

    params = dict(
        pos_embedding=nrm((1, num_patches + 1, dim)),
        cls_token=nrm((1, 1, dim)),
        patch_w=nrm((patch_dim, dim)),            # x @ W layout
        patch_b=jnp.zeros((dim,), jnp.float32),
        head_ln_g=jnp.ones((dim,), jnp.float32),
        head_ln_b=jnp.zeros((dim,), jnp.float32),
        head_w=nrm((dim, num_classes)),
        head_b=jnp.zeros((num_classes,), jnp.float32),
        layers=[],
    )
    for _ in range(depth):
        params["layers"].append(dict(
            ln1_g=jnp.ones((dim,), jnp.float32),
            ln1_b=jnp.zeros((dim,), jnp.float32),
            # to_qkv (no bias), stored in x @ W layout as one lane-dense
            # (dim, 3*inner) matrix; column order = [q | k | v], each (h d).
            w_qkv=nrm((dim, 3 * inner)),
            wo=nrm((inner, dim)),                 # to_out Linear weight (x @ W)
            bo=jnp.zeros((dim,), jnp.float32),
            ln2_g=jnp.ones((dim,), jnp.float32),
            ln2_b=jnp.zeros((dim,), jnp.float32),
            w1=nrm((dim, mlp_dim)), b1=jnp.zeros((mlp_dim,), jnp.float32),
            w2=nrm((mlp_dim, dim)), b2=jnp.zeros((dim,), jnp.float32),
        ))
    return params


# ---------------------------------------------------------------------------
# ViT forward (mask=None path; dropout p=0 -> identity; pool='cls')
# ---------------------------------------------------------------------------

def vit_forward(img, params, *, patch_size, dim, heads, dim_head):
    b, c, H, W = img.shape
    p = patch_size
    hn, wn = H // p, W // p
    n = hn * wn

    # rearrange 'b c (h p1) (w p2) -> b (h w) (p1 p2 c)'  (plain-JAX glue)
    x = img.reshape(b, c, hn, p, wn, p)
    x = jnp.transpose(x, (0, 2, 4, 3, 5, 1)).reshape(b, n, p * p * c)

    # patch_to_embedding (Pallas, bias fused, batch-parallel grid)
    x = patch_embed(x, params["patch_w"], params["patch_b"])          # (b, n, dim)

    # cls token + positional embedding (cheap XLA glue)
    cls = jnp.broadcast_to(params["cls_token"], (b, 1, dim))
    x = jnp.concatenate([cls, x], axis=1)
    x = x + params["pos_embedding"][:, : n + 1]

    scale = dim ** (-0.5)   # reference Attention scales by dim**-0.5

    for layer in params["layers"]:
        # Residual(PreNorm(Attention)) — fully fused in one Pallas kernel
        x = attention_block(x, layer["ln1_g"], layer["ln1_b"],
                            layer["w_qkv"], layer["wo"], layer["bo"],
                            heads=heads, dim_head=dim_head, scale=scale)

        # Residual(PreNorm(FeedForward)) — LN/W1/b1 and W2/b2/residual fused
        h = ffn_in(x, layer["ln2_g"], layer["ln2_b"], layer["w1"], layer["b1"])
        # TODO(synk): exact (erf-based) GELU kept in plain JAX/XLA to avoid
        # relying on erf lowering in Mosaic; both surrounding matmuls (with
        # LN/bias/residual) are fused Pallas kernels.
        h = jax.nn.gelu(h, approximate=False)
        x = ffn_out(h, layer["w2"], layer["b2"], x)

    # pool='cls' + mlp_head. Per perf review: (B, dim) is sub-vreg, so a
    # dedicated pallas_call is pure launch/DMA overhead — leave it to XLA.
    pooled = x[:, 0]
    pooled = _layernorm(pooled, params["head_ln_g"], params["head_ln_b"])
    logits = pooled @ params["head_w"] + params["head_b"]
    return logits


# ---------------------------------------------------------------------------

if __name__ == "__main__":
    image_size, patch_size, channels = 16, 4, 3
    dim, depth, heads, dim_head = 32, 2, 4, 8
    mlp_dim, num_classes = 64, 10
    batch = 2

    key = jax.random.PRNGKey(0)
    pkey, ikey = jax.random.split(key)
    params = init_params(
        pkey, image_size=image_size, patch_size=patch_size, channels=channels,
        dim=dim, depth=depth, heads=heads, dim_head=dim_head,
        mlp_dim=mlp_dim, num_classes=num_classes)

    img = jax.random.normal(ikey, (batch, channels, image_size, image_size),
                            dtype=jnp.float32)

    fwd = jax.jit(functools.partial(vit_forward, patch_size=patch_size,
                                    dim=dim, heads=heads, dim_head=dim_head))
    logits = fwd(img, params)
    jax.block_until_ready(logits)
    assert logits.shape == (batch, num_classes)
    assert logits.dtype == jnp.float32
    print("KERNEL_OK")
</pallas_src>

<mosaic_0001>
module attributes {stable_mosaic.version = 11 : i64} {
  func.func @_patch_embed_kernel(%arg0: i32, %arg1: memref<1x16x48xf32, #tpu.memory_space<vmem>>, %arg2: memref<48x32xf32, #tpu.memory_space<vmem>>, %arg3: memref<1x32xf32, #tpu.memory_space<vmem>>, %arg4: memref<1x16x32xf32, #tpu.memory_space<vmem>>) attributes {dimension_semantics = [#tpu.dimension_semantics<parallel>], iteration_bounds = array<i64: 2>, scalar_prefetch = 0 : i64, scratch_operands = 0 : i64, tpu.core_type = #tpu.core_type<tc>, window_params = [{transform_indices = @transform_0, window_bounds = array<i64: 1, 16, 48>}, {pipeline_mode = #tpu.pipeline_mode<synchronous>, transform_indices = @transform_1, window_bounds = array<i64: 48, 32>}, {pipeline_mode = #tpu.pipeline_mode<synchronous>, transform_indices = @transform_2, window_bounds = array<i64: 1, 32>}, {transform_indices = @transform_3, window_bounds = array<i64: 1, 16, 32>}]} {
    %c0 = arith.constant 0 : index
    %c0_0 = arith.constant 0 : index
    %c0_1 = arith.constant 0 : index
    %0 = vector.load %arg1[%c0, %c0_0, %c0_1] : memref<1x16x48xf32, #tpu.memory_space<vmem>>, vector<1x16x48xf32>
    %1 = vector.shape_cast %0 : vector<1x16x48xf32> to vector<16x48xf32>
    %c0_2 = arith.constant 0 : index
    %c0_3 = arith.constant 0 : index
    %2 = vector.load %arg2[%c0_2, %c0_3] : memref<48x32xf32, #tpu.memory_space<vmem>>, vector<48x32xf32>
    %cst = arith.constant dense<0.000000e+00> : vector<16x32xf32>
    %3 = tpu.matmul %1, %2, %cst {dimension_numbers = #tpu.dot_dimension_numbers<[1], [0], [0], [1], [0, 0, 1, 1], [], []>} : vector<16x48xf32>, vector<48x32xf32>, vector<16x32xf32> -> vector<16x32xf32>
    %c0_4 = arith.constant 0 : index
    %c0_5 = arith.constant 0 : index
    %4 = vector.load %arg3[%c0_4, %c0_5] : memref<1x32xf32, #tpu.memory_space<vmem>>, vector<1x32xf32>
    %5 = vector.broadcast %4 : vector<1x32xf32> to vector<16x32xf32>
    %6 = arith.addf %3, %5 : vector<16x32xf32>
    %c0_6 = arith.constant 0 : index
    %c0_7 = arith.constant 0 : index
    %c0_8 = arith.constant 0 : index
    %7 = vector.load %arg4[%c0_6, %c0_7, %c0_8] : memref<1x16x32xf32, #tpu.memory_space<vmem>>, vector<1x16x32xf32>
    %8 = vector.shape_cast %7 : vector<1x16x32xf32> to vector<16x32xf32>
    %9 = vector.shape_cast %6 : vector<16x32xf32> to vector<1x16x32xf32>
    tpu.vector_store %arg4[%c0_6, %c0_7, %c0_8], %9 {strides = array<i32>} : memref<1x16x32xf32, #tpu.memory_space<vmem>>, vector<1x16x32xf32>,
    return
  }
  func.func @transform_0(%arg0: i32) -> (i32, i32, i32) {
    %c0_i32 = arith.constant 0 : i32
    %c0_i32_0 = arith.constant 0 : i32
    %c0_i32_1 = arith.constant 0 : i32
    return %arg0, %c0_i32, %c0_i32_0 : i32, i32, i32
  }
  func.func @transform_1(%arg0: i32) -> (i32, i32) {
    %c0_i32 = arith.constant 0 : i32
    %c0_i32_0 = arith.constant 0 : i32
    %c0_i32_1 = arith.constant 0 : i32
    return %c0_i32, %c0_i32_0 : i32, i32
  }
  func.func @transform_2(%arg0: i32) -> (i32, i32) {
    %c0_i32 = arith.constant 0 : i32
    %c0_i32_0 = arith.constant 0 : i32
    %c0_i32_1 = arith.constant 0 : i32
    return %c0_i32, %c0_i32_0 : i32, i32
  }
  func.func @transform_3(%arg0: i32) -> (i32, i32, i32) {
    %c0_i32 = arith.constant 0 : i32
    %c0_i32_0 = arith.constant 0 : i32
    %c0_i32_1 = arith.constant 0 : i32
    return %arg0, %c0_i32, %c0_i32_0 : i32, i32, i32
  }
}

module attributes {stable_mosaic.version = 11 : i64} {
  func.func @_attn_block_kernel(%arg0: i32, %arg1: memref<1x17x32xf32, #tpu.memory_space<vmem>>, %arg2: memref<1x32xf32, #tpu.memory_space<vmem>>, %arg3: memref<1x32xf32, #tpu.memory_space<vmem>>, %arg4: memref<32x96xf32, #tpu.memory_space<vmem>>, %arg5: memref<32x32xf32, #tpu.memory_space<vmem>>, %arg6: memref<1x32xf32, #tpu.memory_space<vmem>>, %arg7: memref<1x17x32xf32, #tpu.memory_space<vmem>>) attributes {dimension_semantics = [#tpu.dimension_semantics<parallel>], iteration_bounds = array<i64: 2>, scalar_prefetch = 0 : i64, scratch_operands = 0 : i64, tpu.core_type = #tpu.core_type<tc>, window_params = [{transform_indices = @transform_0, window_bounds = array<i64: 1, 17, 32>}, {pipeline_mode = #tpu.pipeline_mode<synchronous>, transform_indices = @transform_1, window_bounds = array<i64: 1, 32>}, {pipeline_mode = #tpu.pipeline_mode<synchronous>, transform_indices = @transform_2, window_bounds = array<i64: 1, 32>}, {pipeline_mode = #tpu.pipeline_mode<synchronous>, transform_indices = @transform_3, window_bounds = array<i64: 32, 96>}, {pipeline_mode = #tpu.pipeline_mode<synchronous>, transform_indices = @transform_4, window_bounds = array<i64: 32, 32>}, {pipeline_mode = #tpu.pipeline_mode<synchronous>, transform_indices = @transform_5, window_bounds = array<i64: 1, 32>}, {transform_indices = @transform_6, window_bounds = array<i64: 1, 17, 32>}]} {
    %c0 = arith.constant 0 : index
    %c0_0 = arith.constant 0 : index
    %c0_1 = arith.constant 0 : index
    %0 = vector.load %arg1[%c0, %c0_0, %c0_1] : memref<1x17x32xf32, #tpu.memory_space<vmem>>, vector<1x17x32xf32>
    %1 = vector.shape_cast %0 : vector<1x17x32xf32> to vector<17x32xf32>
    %c0_2 = arith.constant 0 : index
    %c0_3 = arith.constant 0 : index
    %2 = vector.load %arg2[%c0_2, %c0_3] : memref<1x32xf32, #tpu.memory_space<vmem>>, vector<1x32xf32>
    %c0_4 = arith.constant 0 : index
    %c0_5 = arith.constant 0 : index
    %3 = vector.load %arg3[%c0_4, %c0_5] : memref<1x32xf32, #tpu.memory_space<vmem>>, vector<1x32xf32>
    %cst = arith.constant dense<0.000000e+00> : vector<17xf32>
    %4 = vector.multi_reduction <add>, %1, %cst [1] : vector<17x32xf32> to vector<17xf32>
    %5 = vector.shape_cast %4 : vector<17xf32> to vector<17x1xf32>
    %cst_6 = arith.constant 3.200000e+01 : f32
    %6 = vector.broadcast %cst_6 : f32 to vector<17x1xf32>
    %7 = arith.divf %5, %6 : vector<17x1xf32>
    %8 = vector.broadcast %7 : vector<17x1xf32> to vector<17x32xf32>
    %9 = arith.subf %1, %8 : vector<17x32xf32>
    %10 = arith.mulf %9, %9 : vector<17x32xf32>
    %cst_7 = arith.constant dense<0.000000e+00> : vector<17xf32>
    %11 = vector.multi_reduction <add>, %10, %cst_7 [1] : vector<17x32xf32> to vector<17xf32>
    %12 = vector.shape_cast %11 : vector<17xf32> to vector<17x1xf32>
    %cst_8 = arith.constant 3.200000e+01 : f32
    %13 = vector.broadcast %cst_8 : f32 to vector<17x1xf32>
    %14 = arith.divf %12, %13 : vector<17x1xf32>
    %cst_9 = arith.constant 9.99999974E-6 : f32
    %15 = vector.broadcast %cst_9 : f32 to vector<17x1xf32>
    %16 = arith.addf %14, %15 : vector<17x1xf32>
    %17 = math.rsqrt %16 : vector<17x1xf32>
    %18 = vector.broadcast %17 : vector<17x1xf32> to vector<17x32xf32>
    %19 = arith.mulf %9, %18 : vector<17x32xf32>
    %20 = vector.broadcast %2 : vector<1x32xf32> to vector<17x32xf32>
    %21 = arith.mulf %19, %20 : vector<17x32xf32>
    %22 = vector.broadcast %3 : vector<1x32xf32> to vector<17x32xf32>
    %23 = arith.addf %21, %22 : vector<17x32xf32>
    %c0_10 = arith.constant 0 : index
    %c0_11 = arith.constant 0 : index
    %24 = vector.load %arg4[%c0_10, %c0_11] : memref<32x96xf32, #tpu.memory_space<vmem>>, vector<32x96xf32>
    %cst_12 = arith.constant dense<0.000000e+00> : vector<17x96xf32>
    %25 = tpu.matmul %23, %24, %cst_12 {dimension_numbers = #tpu.dot_dimension_numbers<[1], [0], [0], [1], [0, 0, 1, 1], [], []>} : vector<17x32xf32>, vector<32x96xf32>, vector<17x96xf32> -> vector<17x96xf32>
    %c0_13 = arith.constant 0 : index
    %c0_14 = arith.constant 0 : index
    %26 = vector.load %arg5[%c0_13, %c0_14] : memref<32x32xf32, #tpu.memory_space<vmem>>, vector<32x32xf32>
    %27 = vector.extract_strided_slice %25 {offsets = [0, 0], sizes = [17, 8], strides = [1, 1]} : vector<17x96xf32> to vector<17x8xf32>
    %28 = vector.extract_strided_slice %25 {offsets = [0, 32], sizes = [17, 8], strides = [1, 1]} : vector<17x96xf32> to vector<17x8xf32>
    %29 = vector.extract_strided_slice %25 {offsets = [0, 64], sizes = [17, 8], strides = [1, 1]} : vector<17x96xf32> to vector<17x8xf32>
    %cst_15 = arith.constant dense<0.000000e+00> : vector<17x17xf32>
    %30 = tpu.matmul %27, %28, %cst_15 {dimension_numbers = #tpu.dot_dimension_numbers<[1], [1], [0], [0], [0, 0, 1, 0], [], []>} : vector<17x8xf32>, vector<17x8xf32>, vector<17x17xf32> -> vector<17x17xf32>
    %cst_16 = arith.constant 0.176776692 : f32
    %31 = vector.broadcast %cst_16 : f32 to vector<17x17xf32>
    %32 = arith.mulf %30, %31 : vector<17x17xf32>
    %cst_17 = arith.constant dense<0xFF800000> : vector<17xf32>
    %33 = vector.multi_reduction <maximumf>, %32, %cst_17 [1] : vector<17x17xf32> to vector<17xf32>
    %34 = vector.shape_cast %33 : vector<17xf32> to vector<17x1xf32>
    %35 = vector.broadcast %34 : vector<17x1xf32> to vector<17x17xf32>
    %36 = arith.subf %32, %35 : vector<17x17xf32>
    %37 = math.exp %36 : vector<17x17xf32>
    %cst_18 = arith.constant dense<0.000000e+00> : vector<17xf32>
    %38 = vector.multi_reduction <add>, %37, %cst_18 [1] : vector<17x17xf32> to vector<17xf32>
    %39 = vector.shape_cast %38 : vector<17xf32> to vector<17x1xf32>
    %40 = tpu.reciprocal %39 {approx = true} : vector<17x1xf32> -> vector<17x1xf32>
    %41 = vector.broadcast %40 : vector<17x1xf32> to vector<17x17xf32>
    %42 = arith.mulf %37, %41 : vector<17x17xf32>
    %cst_19 = arith.constant dense<0.000000e+00> : vector<17x8xf32>
    %43 = tpu.matmul %42, %29, %cst_19 {dimension_numbers = #tpu.dot_dimension_numbers<[1], [0], [0], [1], [0, 0, 1, 1], [], []>} : vector<17x17xf32>, vector<17x8xf32>, vector<17x8xf32> -> vector<17x8xf32>
    %44 = vector.extract_strided_slice %26 {offsets = [0, 0], sizes = [8, 32], strides = [1, 1]} : vector<32x32xf32> to vector<8x32xf32>
    %cst_20 = arith.constant dense<0.000000e+00> : vector<17x32xf32>
    %45 = tpu.matmul %43, %44, %cst_20 {dimension_numbers = #tpu.dot_dimension_numbers<[1], [0], [0], [1], [0, 0, 1, 1], [], []>} : vector<17x8xf32>, vector<8x32xf32>, vector<17x32xf32> -> vector<17x32xf32>
    %46 = vector.extract_strided_slice %25 {offsets = [0, 8], sizes = [17, 8], strides = [1, 1]} : vector<17x96xf32> to vector<17x8xf32>
    %47 = vector.extract_strided_slice %25 {offsets = [0, 40], sizes = [17, 8], strides = [1, 1]} : vector<17x96xf32> to vector<17x8xf32>
    %48 = vector.extract_strided_slice %25 {offsets = [0, 72], sizes = [17, 8], strides = [1, 1]} : vector<17x96xf32> to vector<17x8xf32>
    %cst_21 = arith.constant dense<0.000000e+00> : vector<17x17xf32>
    %49 = tpu.matmul %46, %47, %cst_21 {dimension_numbers = #tpu.dot_dimension_numbers<[1], [1], [0], [0], [0, 0, 1, 0], [], []>} : vector<17x8xf32>, vector<17x8xf32>, vector<17x17xf32> -> vector<17x17xf32>
    %cst_22 = arith.constant 0.176776692 : f32
    %50 = vector.broadcast %cst_22 : f32 to vector<17x17xf32>
    %51 = arith.mulf %49, %50 : vector<17x17xf32>
    %cst_23 = arith.constant dense<0xFF800000> : vector<17xf32>
    %52 = vector.multi_reduction <maximumf>, %51, %cst_23 [1] : vector<17x17xf32> to vector<17xf32>
    %53 = vector.shape_cast %52 : vector<17xf32> to vector<17x1xf32>
    %54 = vector.broadcast %53 : vector<17x1xf32> to vector<17x17xf32>
    %55 = arith.subf %51, %54 : vector<17x17xf32>
    %56 = math.exp %55 : vector<17x17xf32>
    %cst_24 = arith.constant dense<0.000000e+00> : vector<17xf32>
    %57 = vector.multi_reduction <add>, %56, %cst_24 [1] : vector<17x17xf32> to vector<17xf32>
    %58 = vector.shape_cast %57 : vector<17xf32> to vector<17x1xf32>
    %59 = tpu.reciprocal %58 {approx = true} : vector<17x1xf32> -> vector<17x1xf32>
    %60 = vector.broadcast %59 : vector<17x1xf32> to vector<17x17xf32>
    %61 = arith.mulf %56, %60 : vector<17x17xf32>
    %cst_25 = arith.constant dense<0.000000e+00> : vector<17x8xf32>
    %62 = tpu.matmul %61, %48, %cst_25 {dimension_numbers = #tpu.dot_dimension_numbers<[1], [0], [0], [1], [0, 0, 1, 1], [], []>} : vector<17x17xf32>, vector<17x8xf32>, vector<17x8xf32> -> vector<17x8xf32>
    %63 = vector.extract_strided_slice %26 {offsets = [8, 0], sizes = [8, 32], strides = [1, 1]} : vector<32x32xf32> to vector<8x32xf32>
    %cst_26 = arith.constant dense<0.000000e+00> : vector<17x32xf32>
    %64 = tpu.matmul %62, %63, %cst_26 {dimension_numbers = #tpu.dot_dimension_numbers<[1], [0], [0], [1], [0, 0, 1, 1], [], []>} : vector<17x8xf32>, vector<8x32xf32>, vector<17x32xf32> -> vector<17x32xf32>
    %65 = arith.addf %45, %64 : vector<17x32xf32>
    %66 = vector.extract_strided_slice %25 {offsets = [0, 16], sizes = [17, 8], strides = [1, 1]} : vector<17x96xf32> to vector<17x8xf32>
    %67 = vector.extract_strided_slice %25 {offsets = [0, 48], sizes = [17, 8], strides = [1, 1]} : vector<17x96xf32> to vector<17x8xf32>
    %68 = vector.extract_strided_slice %25 {offsets = [0, 80], sizes = [17, 8], strides = [1, 1]} : vector<17x96xf32> to vector<17x8xf32>
    %cst_27 = arith.constant dense<0.000000e+00> : vector<17x17xf32>
    %69 = tpu.matmul %66, %67, %cst_27 {dimension_numbers = #tpu.dot_dimension_numbers<[1], [1], [0], [0], [0, 0, 1, 0], [], []>} : vector<17x8xf32>, vector<17x8xf32>, vector<17x17xf32> -> vector<17x17xf32>
    %cst_28 = arith.constant 0.176776692 : f32
    %70 = vector.broadcast %cst_28 : f32 to vector<17x17xf32>
    %71 = arith.mulf %69, %70 : vector<17x17xf32>
    %cst_29 = arith.constant dense<0xFF800000> : vector<17xf32>
    %72 = vector.multi_reduction <maximumf>, %71, %cst_29 [1] : vector<17x17xf32> to vector<17xf32>
    %73 = vector.shape_cast %72 : vector<17xf32> to vector<17x1xf32>
    %74 = vector.broadcast %73 : vector<17x1xf32> to vector<17x17xf32>
    %75 = arith.subf %71, %74 : vector<17x17xf32>
    %76 = math.exp %75 : vector<17x17xf32>
    %cst_30 = arith.constant dense<0.000000e+00> : vector<17xf32>
    %77 = vector.multi_reduction <add>, %76, %cst_30 [1] : vector<17x17xf32> to vector<17xf32>
    %78 = vector.shape_cast %77 : vector<17xf32> to vector<17x1xf32>
    %79 = tpu.reciprocal %78 {approx = true} : vector<17x1xf32> -> vector<17x1xf32>
    %80 = vector.broadcast %79 : vector<17x1xf32> to vector<17x17xf32>
    %81 = arith.mulf %76, %80 : vector<17x17xf32>
    %cst_31 = arith.constant dense<0.000000e+00> : vector<17x8xf32>
    %82 = tpu.matmul %81, %68, %cst_31 {dimension_numbers = #tpu.dot_dimension_numbers<[1], [0], [0], [1], [0, 0, 1, 1], [], []>} : vector<17x17xf32>, vector<17x8xf32>, vector<17x8xf32> -> vector<17x8xf32>
    %83 = vector.extract_strided_slice %26 {offsets = [16, 0], sizes = [8, 32], strides = [1, 1]} : vector<32x32xf32> to vector<8x32xf32>
    %cst_32 = arith.constant dense<0.000000e+00> : vector<17x32xf32>
    %84 = tpu.matmul %82, %83, %cst_32 {dimension_numbers = #tpu.dot_dimension_numbers<[1], [0], [0], [1], [0, 0, 1, 1], [], []>} : vector<17x8xf32>, vector<8x32xf32>, vector<17x32xf32> -> vector<17x32xf32>
    %85 = arith.addf %65, %84 : vector<17x32xf32>
    %86 = vector.extract_strided_slice %25 {offsets = [0, 24], sizes = [17, 8], strides = [1, 1]} : vector<17x96xf32> to vector<17x8xf32>
    %87 = vector.extract_strided_slice %25 {offsets = [0, 56], sizes = [17, 8], strides = [1, 1]} : vector<17x96xf32> to vector<17x8xf32>
    %88 = vector.extract_strided_slice %25 {offsets = [0, 88], sizes = [17, 8], strides = [1, 1]} : vector<17x96xf32> to vector<17x8xf32>
    %cst_33 = arith.constant dense<0.000000e+00> : vector<17x17xf32>
    %89 = tpu.matmul %86, %87, %cst_33 {dimension_numbers = #tpu.dot_dimension_numbers<[1], [1], [0], [0], [0, 0, 1, 0], [], []>} : vector<17x8xf32>, vector<17x8xf32>, vector<17x17xf32> -> vector<17x17xf32>
    %cst_34 = arith.constant 0.176776692 : f32
    %90 = vector.broadcast %cst_34 : f32 to vector<17x17xf32>
    %91 = arith.mulf %89, %90 : vector<17x17xf32>
    %cst_35 = arith.constant dense<0xFF800000> : vector<17xf32>
    %92 = vector.multi_reduction <maximumf>, %91, %cst_35 [1] : vector<17x17xf32> to vector<17xf32>
    %93 = vector.shape_cast %92 : vector<17xf32> to vector<17x1xf32>
    %94 = vector.broadcast %93 : vector<17x1xf32> to vector<17x17xf32>
    %95 = arith.subf %91, %94 : vector<17x17xf32>
    %96 = math.exp %95 : vector<17x17xf32>
    %cst_36 = arith.constant dense<0.000000e+00> : vector<17xf32>
    %97 = vector.multi_reduction <add>, %96, %cst_36 [1] : vector<17x17xf32> to vector<17xf32>
    %98 = vector.shape_cast %97 : vector<17xf32> to vector<17x1xf32>
    %99 = tpu.reciprocal %98 {approx = true} : vector<17x1xf32> -> vector<17x1xf32>
    %100 = vector.broadcast %99 : vector<17x1xf32> to vector<17x17xf32>
    %101 = arith.mulf %96, %100 : vector<17x17xf32>
    %cst_37 = arith.constant dense<0.000000e+00> : vector<17x8xf32>
    %102 = tpu.matmul %101, %88, %cst_37 {dimension_numbers = #tpu.dot_dimension_numbers<[1], [0], [0], [1], [0, 0, 1, 1], [], []>} : vector<17x17xf32>, vector<17x8xf32>, vector<17x8xf32> -> vector<17x8xf32>
    %103 = vector.extract_strided_slice %26 {offsets = [24, 0], sizes = [8, 32], strides = [1, 1]} : vector<32x32xf32> to vector<8x32xf32>
    %cst_38 = arith.constant dense<0.000000e+00> : vector<17x32xf32>
    %104 = tpu.matmul %102, %103, %cst_38 {dimension_numbers = #tpu.dot_dimension_numbers<[1], [0], [0], [1], [0, 0, 1, 1], [], []>} : vector<17x8xf32>, vector<8x32xf32>, vector<17x32xf32> -> vector<17x32xf32>
    %105 = arith.addf %85, %104 : vector<17x32xf32>
    %c0_39 = arith.constant 0 : index
    %c0_40 = arith.constant 0 : index
    %106 = vector.load %arg6[%c0_39, %c0_40] : memref<1x32xf32, #tpu.memory_space<vmem>>, vector<1x32xf32>
    %107 = vector.broadcast %106 : vector<1x32xf32> to vector<17x32xf32>
    %108 = arith.addf %105, %107 : vector<17x32xf32>
    %109 = arith.addf %108, %1 : vector<17x32xf32>
    %c0_41 = arith.constant 0 : index
    %c0_42 = arith.constant 0 : index
    %c0_43 = arith.constant 0 : index
    %110 = vector.load %arg7[%c0_41, %c0_42, %c0_43] : memref<1x17x32xf32, #tpu.memory_space<vmem>>, vector<1x17x32xf32>
    %111 = vector.shape_cast %110 : vector<1x17x32xf32> to vector<17x32xf32>
    %112 = vector.shape_cast %109 : vector<17x32xf32> to vector<1x17x32xf32>
    tpu.vector_store %arg7[%c0_41, %c0_42, %c0_43], %112 {strides = array<i32>} : memref<1x17x32xf32, #tpu.memory_space<vmem>>, vector<1x17x32xf32>,
    return
  }
  func.func @transform_0(%arg0: i32) -> (i32, i32, i32) {
    %c0_i32 = arith.constant 0 : i32
    %c0_i32_0 = arith.constant 0 : i32
    %c0_i32_1 = arith.constant 0 : i32
    return %arg0, %c0_i32, %c0_i32_0 : i32, i32, i32
  }
  func.func @transform_1(%arg0: i32) -> (i32, i32) {
    %c0_i32 = arith.constant 0 : i32
    %c0_i32_0 = arith.constant 0 : i32
    %c0_i32_1 = arith.constant 0 : i32
    return %c0_i32, %c0_i32_0 : i32, i32
  }
  func.func @transform_2(%arg0: i32) -> (i32, i32) {
    %c0_i32 = arith.constant 0 : i32
    %c0_i32_0 = arith.constant 0 : i32
    %c0_i32_1 = arith.constant 0 : i32
    return %c0_i32, %c0_i32_0 : i32, i32
  }
  func.func @transform_3(%arg0: i32) -> (i32, i32) {
    %c0_i32 = arith.constant 0 : i32
    %c0_i32_0 = arith.constant 0 : i32
    %c0_i32_1 = arith.constant 0 : i32
    return %c0_i32, %c0_i32_0 : i32, i32
  }
  func.func @transform_4(%arg0: i32) -> (i32, i32) {
    %c0_i32 = arith.constant 0 : i32
    %c0_i32_0 = arith.constant 0 : i32
    %c0_i32_1 = arith.constant 0 : i32
    return %c0_i32, %c0_i32_0 : i32, i32
  }
  func.func @transform_5(%arg0: i32) -> (i32, i32) {
    %c0_i32 = arith.constant 0 : i32
    %c0_i32_0 = arith.constant 0 : i32
    %c0_i32_1 = arith.constant 0 : i32
    return %c0_i32, %c0_i32_0 : i32, i32
  }
  func.func @transform_6(%arg0: i32) -> (i32, i32, i32) {
    %c0_i32 = arith.constant 0 : i32
    %c0_i32_0 = arith.constant 0 : i32
    %c0_i32_1 = arith.constant 0 : i32
    return %arg0, %c0_i32, %c0_i32_0 : i32, i32, i32
  }
}

module attributes {stable_mosaic.version = 11 : i64} {
  func.func @_ffn_in_kernel(%arg0: i32, %arg1: memref<1x17x32xf32, #tpu.memory_space<vmem>>, %arg2: memref<1x32xf32, #tpu.memory_space<vmem>>, %arg3: memref<1x32xf32, #tpu.memory_space<vmem>>, %arg4: memref<32x64xf32, #tpu.memory_space<vmem>>, %arg5: memref<1x64xf32, #tpu.memory_space<vmem>>, %arg6: memref<1x17x64xf32, #tpu.memory_space<vmem>>) attributes {dimension_semantics = [#tpu.dimension_semantics<parallel>], iteration_bounds = array<i64: 2>, scalar_prefetch = 0 : i64, scratch_operands = 0 : i64, tpu.core_type = #tpu.core_type<tc>, window_params = [{transform_indices = @transform_0, window_bounds = array<i64: 1, 17, 32>}, {pipeline_mode = #tpu.pipeline_mode<synchronous>, transform_indices = @transform_1, window_bounds = array<i64: 1, 32>}, {pipeline_mode = #tpu.pipeline_mode<synchronous>, transform_indices = @transform_2, window_bounds = array<i64: 1, 32>}, {pipeline_mode = #tpu.pipeline_mode<synchronous>, transform_indices = @transform_3, window_bounds = array<i64: 32, 64>}, {pipeline_mode = #tpu.pipeline_mode<synchronous>, transform_indices = @transform_4, window_bounds = array<i64: 1, 64>}, {transform_indices = @transform_5, window_bounds = array<i64: 1, 17, 64>}]} {
    %c0 = arith.constant 0 : index
    %c0_0 = arith.constant 0 : index
    %c0_1 = arith.constant 0 : index
    %0 = vector.load %arg1[%c0, %c0_0, %c0_1] : memref<1x17x32xf32, #tpu.memory_space<vmem>>, vector<1x17x32xf32>
    %1 = vector.shape_cast %0 : vector<1x17x32xf32> to vector<17x32xf32>
    %c0_2 = arith.constant 0 : index
    %c0_3 = arith.constant 0 : index
    %2 = vector.load %arg2[%c0_2, %c0_3] : memref<1x32xf32, #tpu.memory_space<vmem>>, vector<1x32xf32>
    %c0_4 = arith.constant 0 : index
    %c0_5 = arith.constant 0 : index
    %3 = vector.load %arg3[%c0_4, %c0_5] : memref<1x32xf32, #tpu.memory_space<vmem>>, vector<1x32xf32>
    %cst = arith.constant dense<0.000000e+00> : vector<17xf32>
    %4 = vector.multi_reduction <add>, %1, %cst [1] : vector<17x32xf32> to vector<17xf32>
    %5 = vector.shape_cast %4 : vector<17xf32> to vector<17x1xf32>
    %cst_6 = arith.constant 3.200000e+01 : f32
    %6 = vector.broadcast %cst_6 : f32 to vector<17x1xf32>
    %7 = arith.divf %5, %6 : vector<17x1xf32>
    %8 = vector.broadcast %7 : vector<17x1xf32> to vector<17x32xf32>
    %9 = arith.subf %1, %8 : vector<17x32xf32>
    %10 = arith.mulf %9, %9 : vector<17x32xf32>
    %cst_7 = arith.constant dense<0.000000e+00> : vector<17xf32>
    %11 = vector.multi_reduction <add>, %10, %cst_7 [1] : vector<17x32xf32> to vector<17xf32>
    %12 = vector.shape_cast %11 : vector<17xf32> to vector<17x1xf32>
    %cst_8 = arith.constant 3.200000e+01 : f32
    %13 = vector.broadcast %cst_8 : f32 to vector<17x1xf32>
    %14 = arith.divf %12, %13 : vector<17x1xf32>
    %cst_9 = arith.constant 9.99999974E-6 : f32
    %15 = vector.broadcast %cst_9 : f32 to vector<17x1xf32>
    %16 = arith.addf %14, %15 : vector<17x1xf32>
    %17 = math.rsqrt %16 : vector<17x1xf32>
    %18 = vector.broadcast %17 : vector<17x1xf32> to vector<17x32xf32>
    %19 = arith.mulf %9, %18 : vector<17x32xf32>
    %20 = vector.broadcast %2 : vector<1x32xf32> to vector<17x32xf32>
    %21 = arith.mulf %19, %20 : vector<17x32xf32>
    %22 = vector.broadcast %3 : vector<1x32xf32> to vector<17x32xf32>
    %23 = arith.addf %21, %22 : vector<17x32xf32>
    %c0_10 = arith.constant 0 : index
    %c0_11 = arith.constant 0 : index
    %24 = vector.load %arg4[%c0_10, %c0_11] : memref<32x64xf32, #tpu.memory_space<vmem>>, vector<32x64xf32>
    %cst_12 = arith.constant dense<0.000000e+00> : vector<17x64xf32>
    %25 = tpu.matmul %23, %24, %cst_12 {dimension_numbers = #tpu.dot_dimension_numbers<[1], [0], [0], [1], [0, 0, 1, 1], [], []>} : vector<17x32xf32>, vector<32x64xf32>, vector<17x64xf32> -> vector<17x64xf32>
    %c0_13 = arith.constant 0 : index
    %c0_14 = arith.constant 0 : index
    %26 = vector.load %arg5[%c0_13, %c0_14] : memref<1x64xf32, #tpu.memory_space<vmem>>, vector<1x64xf32>
    %27 = vector.broadcast %26 : vector<1x64xf32> to vector<17x64xf32>
    %28 = arith.addf %25, %27 : vector<17x64xf32>
    %c0_15 = arith.constant 0 : index
    %c0_16 = arith.constant 0 : index
    %c0_17 = arith.constant 0 : index
    %29 = vector.load %arg6[%c0_15, %c0_16, %c0_17] : memref<1x17x64xf32, #tpu.memory_space<vmem>>, vector<1x17x64xf32>
    %30 = vector.shape_cast %29 : vector<1x17x64xf32> to vector<17x64xf32>
    %31 = vector.shape_cast %28 : vector<17x64xf32> to vector<1x17x64xf32>
    tpu.vector_store %arg6[%c0_15, %c0_16, %c0_17], %31 {strides = array<i32>} : memref<1x17x64xf32, #tpu.memory_space<vmem>>, vector<1x17x64xf32>,
    return
  }
  func.func @transform_0(%arg0: i32) -> (i32, i32, i32) {
    %c0_i32 = arith.constant 0 : i32
    %c0_i32_0 = arith.constant 0 : i32
    %c0_i32_1 = arith.constant 0 : i32
    return %arg0, %c0_i32, %c0_i32_0 : i32, i32, i32
  }
  func.func @transform_1(%arg0: i32) -> (i32, i32) {
    %c0_i32 = arith.constant 0 : i32
    %c0_i32_0 = arith.constant 0 : i32
    %c0_i32_1 = arith.constant 0 : i32
    return %c0_i32, %c0_i32_0 : i32, i32
  }
  func.func @transform_2(%arg0: i32) -> (i32, i32) {
    %c0_i32 = arith.constant 0 : i32
    %c0_i32_0 = arith.constant 0 : i32
    %c0_i32_1 = arith.constant 0 : i32
    return %c0_i32, %c0_i32_0 : i32, i32
  }
  func.func @transform_3(%arg0: i32) -> (i32, i32) {
    %c0_i32 = arith.constant 0 : i32
    %c0_i32_0 = arith.constant 0 : i32
    %c0_i32_1 = arith.constant 0 : i32
    return %c0_i32, %c0_i32_0 : i32, i32
  }
  func.func @transform_4(%arg0: i32) -> (i32, i32) {
    %c0_i32 = arith.constant 0 : i32
    %c0_i32_0 = arith.constant 0 : i32
    %c0_i32_1 = arith.constant 0 : i32
    return %c0_i32, %c0_i32_0 : i32, i32
  }
  func.func @transform_5(%arg0: i32) -> (i32, i32, i32) {
    %c0_i32 = arith.constant 0 : i32
    %c0_i32_0 = arith.constant 0 : i32
    %c0_i32_1 = arith.constant 0 : i32
    return %arg0, %c0_i32, %c0_i32_0 : i32, i32, i32
  }
}

module attributes {stable_mosaic.version = 11 : i64} {
  func.func @_ffn_out_kernel(%arg0: i32, %arg1: memref<1x17x64xf32, #tpu.memory_space<vmem>>, %arg2: memref<64x32xf32, #tpu.memory_space<vmem>>, %arg3: memref<1x32xf32, #tpu.memory_space<vmem>>, %arg4: memref<1x17x32xf32, #tpu.memory_space<vmem>>, %arg5: memref<1x17x32xf32, #tpu.memory_space<vmem>>) attributes {dimension_semantics = [#tpu.dimension_semantics<parallel>], iteration_bounds = array<i64: 2>, scalar_prefetch = 0 : i64, scratch_operands = 0 : i64, tpu.core_type = #tpu.core_type<tc>, window_params = [{transform_indices = @transform_0, window_bounds = array<i64: 1, 17, 64>}, {pipeline_mode = #tpu.pipeline_mode<synchronous>, transform_indices = @transform_1, window_bounds = array<i64: 64, 32>}, {pipeline_mode = #tpu.pipeline_mode<synchronous>, transform_indices = @transform_2, window_bounds = array<i64: 1, 32>}, {transform_indices = @transform_3, window_bounds = array<i64: 1, 17, 32>}, {transform_indices = @transform_4, window_bounds = array<i64: 1, 17, 32>}]} {
    %c0 = arith.constant 0 : index
    %c0_0 = arith.constant 0 : index
    %c0_1 = arith.constant 0 : index
    %0 = vector.load %arg1[%c0, %c0_0, %c0_1] : memref<1x17x64xf32, #tpu.memory_space<vmem>>, vector<1x17x64xf32>
    %1 = vector.shape_cast %0 : vector<1x17x64xf32> to vector<17x64xf32>
    %c0_2 = arith.constant 0 : index
    %c0_3 = arith.constant 0 : index
    %2 = vector.load %arg2[%c0_2, %c0_3] : memref<64x32xf32, #tpu.memory_space<vmem>>, vector<64x32xf32>
    %cst = arith.constant dense<0.000000e+00> : vector<17x32xf32>
    %3 = tpu.matmul %1, %2, %cst {dimension_numbers = #tpu.dot_dimension_numbers<[1], [0], [0], [1], [0, 0, 1, 1], [], []>} : vector<17x64xf32>, vector<64x32xf32>, vector<17x32xf32> -> vector<17x32xf32>
    %c0_4 = arith.constant 0 : index
    %c0_5 = arith.constant 0 : index
    %4 = vector.load %arg3[%c0_4, %c0_5] : memref<1x32xf32, #tpu.memory_space<vmem>>, vector<1x32xf32>
    %5 = vector.broadcast %4 : vector<1x32xf32> to vector<17x32xf32>
    %6 = arith.addf %3, %5 : vector<17x32xf32>
    %c0_6 = arith.constant 0 : index
    %c0_7 = arith.constant 0 : index
    %c0_8 = arith.constant 0 : index
    %7 = vector.load %arg4[%c0_6, %c0_7, %c0_8] : memref<1x17x32xf32, #tpu.memory_space<vmem>>, vector<1x17x32xf32>
    %8 = vector.shape_cast %7 : vector<1x17x32xf32> to vector<17x32xf32>
    %9 = arith.addf %6, %8 : vector<17x32xf32>
    %c0_9 = arith.constant 0 : index
    %c0_10 = arith.constant 0 : index
    %c0_11 = arith.constant 0 : index
    %10 = vector.load %arg5[%c0_9, %c0_10, %c0_11] : memref<1x17x32xf32, #tpu.memory_space<vmem>>, vector<1x17x32xf32>
    %11 = vector.shape_cast %10 : vector<1x17x32xf32> to vector<17x32xf32>
    %12 = vector.shape_cast %9 : vector<17x32xf32> to vector<1x17x32xf32>
    tpu.vector_store %arg5[%c0_9, %c0_10, %c0_11], %12 {strides = array<i32>} : memref<1x17x32xf32, #tpu.memory_space<vmem>>, vector<1x17x32xf32>,
    return
  }
  func.func @transform_0(%arg0: i32) -> (i32, i32, i32) {
    %c0_i32 = arith.constant 0 : i32
    %c0_i32_0 = arith.constant 0 : i32
    %c0_i32_1 = arith.constant 0 : i32
    return %arg0, %c0_i32, %c0_i32_0 : i32, i32, i32
  }
  func.func @transform_1(%arg0: i32) -> (i32, i32) {
    %c0_i32 = arith.constant 0 : i32
    %c0_i32_0 = arith.constant 0 : i32
    %c0_i32_1 = arith.constant 0 : i32
    return %c0_i32, %c0_i32_0 : i32, i32
  }
  func.func @transform_2(%arg0: i32) -> (i32, i32) {
    %c0_i32 = arith.constant 0 : i32
    %c0_i32_0 = arith.constant 0 : i32
    %c0_i32_1 = arith.constant 0 : i32
    return %c0_i32, %c0_i32_0 : i32, i32
  }
  func.func @transform_3(%arg0: i32) -> (i32, i32, i32) {
    %c0_i32 = arith.constant 0 : i32
    %c0_i32_0 = arith.constant 0 : i32
    %c0_i32_1 = arith.constant 0 : i32
    return %arg0, %c0_i32, %c0_i32_0 : i32, i32, i32
  }
  func.func @transform_4(%arg0: i32) -> (i32, i32, i32) {
    %c0_i32 = arith.constant 0 : i32
    %c0_i32_0 = arith.constant 0 : i32
    %c0_i32_1 = arith.constant 0 : i32
    return %arg0, %c0_i32, %c0_i32_0 : i32, i32, i32
  }
}

</mosaic_0001>

<llo_original>
// kernel: vit_forward.9
$region0: #{vit_forward.9}
  #allocation0 [shape = 'u32[]', space=smem, size = 0x4, offset = 0x4, fixed_abs, tag = 'smem constant byte address 0x4 - core index']
  #allocation1 [shape = 'u32[144,128]{1,0:T(1,128)}', space=vmem, size = 0x12000, scoped, tag = 'internal scratch']
  %s0 = inlined_call_operand.vmem [shape: f32[2,17,32], index: 0, kind: input, shape index: {}]
  %s1 = inlined_call_operand.vmem [shape: f32[1,32], index: 1, kind: input, shape index: {}]
  %s2 = inlined_call_operand.vmem [shape: f32[1,32], index: 2, kind: input, shape index: {}]
  %s3 = inlined_call_operand.vmem [shape: f32[32,64], index: 3, kind: input, shape index: {}]
  %s4 = inlined_call_operand.vmem [shape: f32[1,64], index: 4, kind: input, shape index: {}]
  %s5 = inlined_call_operand.vmem [shape: f32[2,17,64], index: 5, kind: output, shape index: {}]
  %s6 = sld [smem:[#allocation0]]
  $region53: #{vit_forward.9} parent=0
    _
  %s8 = ssub.s32 1, %s6
  %s9 = scalar_select 0, %s8, %s6
  loop: start=0, step=1, limit=4
  $region2: #{vit_forward.9} parent=0 // loop_pre_header
    _
  $region3: #{vit_forward.9} parent=0 // loop_header
    %s11 = sphi 0, %s15
    %p12 = scmp.ge.s32.totalorder %s11, 4
    %s21 = sphi 0, %s23
    %s24 = sphi 0, %s21
    %s25 = sphi 0, %s24
    %s41 = sphi 0, %s25
    %s45 = sphi 0, %s45
    %s47 = sphi 0, %s45
    %s48 = sphi 0, %s47
    %s62 = sphi 0, %s48
    %s66 = sphi 0, %s66
    %s68 = sphi 0, %s66
    %s69 = sphi 0, %s68
    %s83 = sphi 0, %s69
    %s87 = sphi 0, %s87
    %s89 = sphi 0, %s87
    %s90 = sphi 0, %s89
    %s104 = sphi 0, %s90
    %s108 = sphi 0, %s108
    %s110 = sphi 0, %s108
    %s111 = sphi 0, %s110
    %s125 = sphi 0, %s111
    %s131 = sphi 0, %s133
    %s134 = sphi 0, %s131
    %s135 = sphi 0, %s134
    %s151 = sphi 0, %s135
  $region4: #{vit_forward.9} parent=0 // loop_header_branch
    %14 = sbr.rel (%p12) target = $region8
  $region5: #{vit_forward.9} parent=0 // loop_body
    %s16 = ssub.s32 %s11, 1
    %s17 = ssub.s32 %s11, 2
    %s18 = sadd.s32 %s11, 1
    %s19 = ssub.s32 %s11, %s18
    %p20 = scmp.eq.s32.totalorder %s19, 0
    %s22 = sadd.s32 %s21, 1
    %s23 = scalar_select %p20, %s21, %s22
    %p26 = pneg %p20
    %p27 = scmp.eq.s32.totalorder %s11, 1
    %p28 = por %p26, %p27
    %p29 = scmp.ne.s32.totalorder %s21, %s24
    %p30 = scmp.eq.s32.totalorder %s11, 0
    %p31 = por %p29, %p30
    %p32 = scmp.ne.s32.totalorder %s21, %s24
    %p33 = scmp.eq.s32.totalorder %s16, 1
    %p34 = por %p32, %p33
    %p35 = scmp.ne.s32.totalorder %s24, %s25
    %p36 = scmp.eq.s32.totalorder %s16, 0
    %p37 = por %p35, %p36
    %p38 = scmp.ne.s32.totalorder %s24, %s25
    %p39 = scmp.eq.s32.totalorder %s17, 1
    %p40 = por %p38, %p39
    %p42 = scmp.ne.s32.totalorder %s25, %s41
    %p43 = scmp.eq.s32.totalorder %s17, 0
    %p44 = por %p42, %p43
    %s46 = sadd.s32 %s45, 1
    %p49 = scmp.eq.s32.totalorder %s11, 1
    %p50 = scmp.ne.s32.totalorder %s45, %s47
    %p51 = scmp.eq.s32.totalorder %s11, 0
    %p52 = por %p50, %p51
    %p53 = scmp.ne.s32.totalorder %s45, %s47
    %p54 = scmp.eq.s32.totalorder %s16, 1
    %p55 = por %p53, %p54
    %p56 = scmp.ne.s32.totalorder %s47, %s48
    %p57 = scmp.eq.s32.totalorder %s16, 0
    %p58 = por %p56, %p57
    %p59 = scmp.ne.s32.totalorder %s47, %s48
    %p60 = scmp.eq.s32.totalorder %s17, 1
    %p61 = por %p59, %p60
    %p63 = scmp.ne.s32.totalorder %s48, %s62
    %p64 = scmp.eq.s32.totalorder %s17, 0
    %p65 = por %p63, %p64
    %s67 = sadd.s32 %s66, 1
    %p70 = scmp.eq.s32.totalorder %s11, 1
    %p71 = scmp.ne.s32.totalorder %s66, %s68
    %p72 = scmp.eq.s32.totalorder %s11, 0
    %p73 = por %p71, %p72
    %p74 = scmp.ne.s32.totalorder %s66, %s68
    %p75 = scmp.eq.s32.totalorder %s16, 1
    %p76 = por %p74, %p75
    %p77 = scmp.ne.s32.totalorder %s68, %s69
    %p78 = scmp.eq.s32.totalorder %s16, 0
    %p79 = por %p77, %p78
    %p80 = scmp.ne.s32.totalorder %s68, %s69
    %p81 = scmp.eq.s32.totalorder %s17, 1
    %p82 = por %p80, %p81
    %p84 = scmp.ne.s32.totalorder %s69, %s83
    %p85 = scmp.eq.s32.totalorder %s17, 0
    %p86 = por %p84, %p85
    %s88 = sadd.s32 %s87, 1
    %p91 = scmp.eq.s32.totalorder %s11, 1
    %p92 = scmp.ne.s32.totalorder %s87, %s89
    %p93 = scmp.eq.s32.totalorder %s11, 0
    %p94 = por %p92, %p93
    %p95 = scmp.ne.s32.totalorder %s87, %s89
    %p96 = scmp.eq.s32.totalorder %s16, 1
    %p97 = por %p95, %p96
    %p98 = scmp.ne.s32.totalorder %s89, %s90
    %p99 = scmp.eq.s32.totalorder %s16, 0
    %p100 = por %p98, %p99
    %p101 = scmp.ne.s32.totalorder %s89, %s90
    %p102 = scmp.eq.s32.totalorder %s17, 1
    %p103 = por %p101, %p102
    %p105 = scmp.ne.s32.totalorder %s90, %s104
    %p106 = scmp.eq.s32.totalorder %s17, 0
    %p107 = por %p105, %p106
    %s109 = sadd.s32 %s108, 1
    %p112 = scmp.eq.s32.totalorder %s11, 1
    %p113 = scmp.ne.s32.totalorder %s108, %s110
    %p114 = scmp.eq.s32.totalorder %s11, 0
    %p115 = por %p113, %p114
    %p116 = scmp.ne.s32.totalorder %s108, %s110
    %p117 = scmp.eq.s32.totalorder %s16, 1
    %p118 = por %p116, %p117
    %p119 = scmp.ne.s32.totalorder %s110, %s111
    %p120 = scmp.eq.s32.totalorder %s16, 0
    %p121 = por %p119, %p120
    %p122 = scmp.ne.s32.totalorder %s110, %s111
    %p123 = scmp.eq.s32.totalorder %s17, 1
    %p124 = por %p122, %p123
    %p126 = scmp.ne.s32.totalorder %s111, %s125
    %p127 = scmp.eq.s32.totalorder %s17, 0
    %p128 = por %p126, %p127
    %s129 = ssub.s32 %s11, %s18
    %p130 = scmp.eq.s32.totalorder %s129, 0
    %s132 = sadd.s32 %s131, 1
    %s133 = scalar_select %p130, %s131, %s132
    %p136 = pneg %p130
    %p137 = scmp.eq.s32.totalorder %s11, 1
    %p138 = por %p136, %p137
    %p139 = scmp.ne.s32.totalorder %s131, %s134
    %p140 = scmp.eq.s32.totalorder %s11, 0
    %p141 = por %p139, %p140
    %p142 = scmp.ne.s32.totalorder %s131, %s134
    %p143 = scmp.eq.s32.totalorder %s16, 1
    %p144 = por %p142, %p143
    %p145 = scmp.ne.s32.totalorder %s134, %s135
    %p146 = scmp.eq.s32.totalorder %s16, 0
    %p147 = por %p145, %p146
    %p148 = scmp.ne.s32.totalorder %s134, %s135
    %p149 = scmp.eq.s32.totalorder %s17, 1
    %p150 = por %p148, %p149
    %p152 = scmp.ne.s32.totalorder %s135, %s151
    %p153 = scmp.eq.s32.totalorder %s17, 0
    %p154 = por %p152, %p153
    %p155 = scmp.le.s32.totalorder 1, %s11
    %p156 = scmp.lt.s32.totalorder %s11, 3
    %p157 = pnand %p155, %p156
    %p158 = pneg %p157
    // Predicated region
    $region9: #{vit_forward.9} parent=5 // pred_check
      _
    $region10: #{vit_forward.9} parent=5 // pred_check_branch
      %160 = sbr.rel (%p157) target = $region12
    $region11: #{vit_forward.9} parent=5 // pred_region
      %s161 = ssub.s32 %s11, 1
      // Predicated region
      $region13: #{vit_forward.9} parent=11 // pred_check
        %p162 = pneg %p58
      $region14: #{vit_forward.9} parent=11 // pred_check_branch
        %164 = sbr.rel (%p162) target = $region16
      $region15: #{vit_forward.9} parent=11 // pred_region
        _
      $region16: #{vit_forward.9} parent=11 // pred_fallthru
        _
      // Predicated region
      $region17: #{vit_forward.9} parent=11 // pred_check
        %p165 = pneg %p79
      $region18: #{vit_forward.9} parent=11 // pred_check_branch
        %167 = sbr.rel (%p165) target = $region20
      $region19: #{vit_forward.9} parent=11 // pred_region
        _
      $region20: #{vit_forward.9} parent=11 // pred_fallthru
        _
      // Predicated region
      $region21: #{vit_forward.9} parent=11 // pred_check
        %p168 = pneg %p100
      $region22: #{vit_forward.9} parent=11 // pred_check_branch
        %170 = sbr.rel (%p168) target = $region24
      $region23: #{vit_forward.9} parent=11 // pred_region
        _
      $region24: #{vit_forward.9} parent=11 // pred_fallthru
        _
      // Predicated region
      $region25: #{vit_forward.9} parent=11 // pred_check
        %p171 = pneg %p121
      $region26: #{vit_forward.9} parent=11 // pred_check_branch
        %173 = sbr.rel (%p171) target = $region28
      $region27: #{vit_forward.9} parent=11 // pred_region
        _
      $region28: #{vit_forward.9} parent=11 // pred_fallthru
        _
    $region12: #{vit_forward.9} parent=5 // pred_fallthru
      _
    %p174 = scmp.lt.s32.totalorder %s11, 2
    // Predicated region
    $region29: #{vit_forward.9} parent=5 // pred_check
      %p175 = pneg %p174
    $region30: #{vit_forward.9} parent=5 // pred_check_branch
      %177 = sbr.rel (%p175) target = $region32
    $region31: #{vit_forward.9} parent=5 // pred_region
      // Predicated region
      $region33: #{vit_forward.9} parent=31 // pred_check
        %p178 = pneg %p31
      $region34: #{vit_forward.9} parent=31 // pred_check_branch
        %180 = sbr.rel (%p178) target = $region36
      $region35: #{vit_forward.9} parent=31 // pred_region
        %p181 = scmp.lt.s32.totalorder %s11, 1
        %s182 = scalar_select %p181, %s11, 1
        %s183 = smul.addr %s182, 3
        %s184 = smul.addr %s183, 8
        %s185 = scalar_lea.vmem %s0, %s184
      $region36: #{vit_forward.9} parent=31 // pred_fallthru
        _
    $region32: #{vit_forward.9} parent=5 // pred_fallthru
      _
    %p186 = scmp.le.s32.totalorder 1, %s11
    %p187 = scmp.lt.s32.totalorder %s11, 3
    %p188 = pnand %p186, %p187
    %p189 = pneg %p188
    // Predicated region
    $region37: #{vit_forward.9} parent=5 // pred_check
      _
    $region38: #{vit_forward.9} parent=5 // pred_check_branch
      %191 = sbr.rel (%p188) target = $region40
    $region39: #{vit_forward.9} parent=5 // pred_region
      %s192 = ssub.s32 %s11, 1
      %p193 = scmp.lt.s32.totalorder %s16, 1
      %s194 = scalar_select %p193, %s16, 1
      %s195 = smul.addr %s194, 3
      %s196 = smul.addr %s195, 8
      %s197 = scalar_lea.vmem %s0, %s196
      %p198 = pneg %p37
      %p199 = pneg %p34
      %p200 = pneg %p58
      %p201 = pneg %p55
      %p202 = pneg %p79
      %p203 = pneg %p76
      %p204 = pneg %p100
      %p205 = pneg %p97
      %p206 = pneg %p121
      %p207 = pneg %p118
      %p208 = pneg %p147
      %p209 = pneg %p144
      %p210 = scmp.lt.s32.totalorder %s16, 1
      %s211 = scalar_select %p210, %s16, 1
      %s212 = smul.addr %s211, 3
      %s213 = smul.addr %s212, 8
      %s214 = scalar_lea.vmem %s5, %s213
      %p215 = scmp.lt.s32.totalorder %s16, 1
      %s216 = scalar_select %p215, %s16, 1
      %s217 = smul.addr %s216, 3
      %s218 = smul.addr %s217, 8
      %s219 = scalar_lea.vmem %s0, %s218
      %p220 = scmp.lt.s32.totalorder %s16, 1
      %s221 = scalar_select %p220, %s16, 1
      %s222 = smul.addr %s221, 3
      %s223 = smul.addr %s222, 8
      %s224 = scalar_lea.vmem %s5, %s223
      %v225 = vld [vmem:[%s219] sm:$0xff]
      %v226 = vld [vmem:[%s219 + $0x8] sm:$0xff]
      %v227 = vld [vmem:[%s219 + $0x10] sm:$0x1]
      %v228 = vld [vmem:[%s1] sm:$0x1]
      %v229 = vld [vmem:[%s2] sm:$0x1]
      %vm230 = vcmask 261120
      %v231 = vsel %vm230, %v225, 0.0
      %232 = vadd.xlane.f32.xlu0 %v231
      %v233 = vpop.xlane.xlu0 %232
      %v234 = vsel %vm230, %v226, 0.0
      %235 = vadd.xlane.f32.xlu0 %v234
      %v236 = vpop.xlane.xlu0 %235
      %vm237 = vcmask 253952
      %v238 = vsel %vm237, %v227, 0.0
      %239 = vadd.xlane.f32.xlu0 %v238
      %v240 = vpop.xlane.xlu0 %239
      %v241 = vrcp.pop 32.0
      %v242 = vmul.f32 %v233, %v241
      %v243 = vmul.f32 %v236, %v241
      %v244 = vmul.f32 %v240, %v241
      %v245 = vsub.f32 %v225, %v242
      %v246 = vsub.f32 %v226, %v243
      %v247 = vsub.f32 %v227, %v244
      %v248 = vmul.f32 %v245, %v245
      %v249 = vmul.f32 %v246, %v246
      %v250 = vmul.f32 %v247, %v247
      %v251 = vsel %vm230, %v248, 0.0
      %252 = vadd.xlane.f32.xlu0 %v251
      %v253 = vpop.xlane.xlu0 %252
      %v254 = vsel %vm230, %v249, 0.0
      %255 = vadd.xlane.f32.xlu0 %v254
      %v256 = vpop.xlane.xlu0 %255
      %v257 = vsel %vm237, %v250, 0.0
      %258 = vadd.xlane.f32.xlu0 %v257
      %v259 = vpop.xlane.xlu0 %258
      %v260 = vmul.f32 %v253, %v241
      %v261 = vmul.f32 %v256, %v241
      %v262 = vmul.f32 %v259, %v241
      %v263 = vadd.f32 %v260, 1e-05
      %v264 = vadd.f32 %v261, 1e-05
      %v265 = vadd.f32 %v262, 1e-05
      %v266 = vrsqrt.pop %v263
      %v267 = vrsqrt.pop %v264
      %v268 = vrsqrt.pop %v265
      %v269 = vmul.f32 %v245, %v266
      %v270 = vmul.f32 %v246, %v267
      %v271 = vmul.f32 %v247, %v268
      %v273 = vlaneseq
      %v274 = vshrl.u32 %v273, 7
      %v275 = vsub.s32 0, %v274
      %v276 = vrot.slane %v228, %v275
      %v278 = vmul.f32 %v269, %v276
      %v279 = vmul.f32 %v270, %v276
      %v280 = vmul.f32 %v271, %v276
      %v282 = vlaneseq
      %v283 = vshrl.u32 %v282, 7
      %v284 = vsub.s32 0, %v283
      %v285 = vrot.slane %v229, %v284
      %v287 = vadd.f32 %v278, %v285
      %v288 = vadd.f32 %v279, %v285
      %v289 = vadd.f32 %v280, %v285
      %v290 = vld [vmem:[%s3] sm:$0xff]
      %v291 = vld [vmem:[%s3 + $0x8] sm:$0xff]
      %v292 = vld [vmem:[%s3 + $0x10] sm:$0xff]
      %v293 = vld [vmem:[%s3 + $0x18] sm:$0xff]
      %v294 = vld [vmem:[%s4] sm:$0x1]
      %v296 = vlaneseq
      %v297 = vshrl.u32 %v296, 7
      %v298 = vsub.s32 0, %v297
      %v299 = vrot.slane %v294, %v298
      %v302 = vsel %vm230, %v287, 0
      %v305 = vsel %vm230, %v288, 0
      %v308 = vsel %vm230, %v289, 0
      %310 = vmatprep.subr.mxu0 0.0
      %311 = vmatpush1.msra.mxu0 %v290
      %312 = vmatprep.subr.mxu0 0.0
      %313 = vmatpush1.msra.mxu0 %v291
      %314 = vmatprep.subr.mxu0 0.0
      %315 = vmatpush1.msra.mxu0 %v292
      %316 = vmatprep.subr.mxu0 0.0
      %317 = vmatpush1.msra.mxu0 %v293
      %318 = vmatprep.subr.mxu0 0.0
      %319 = vmatpush1.msra.mxu0 0.0
      %320 = vmatprep.subr.mxu0 0.0
      %321 = vmatpush1.msra.mxu0 0.0
      %322 = vmatprep.subr.mxu0 0.0
      %323 = vmatpush1.msra.mxu0 0.0
      %324 = vmatprep.subr.mxu0 0.0
      %325 = vmatpush1.msra.mxu0 0.0
      %326 = vmatprep.subr.mxu0 0.0
      %327 = vmatpush1.msra.mxu0 0.0
      %328 = vmatprep.subr.mxu0 0.0
      %329 = vmatpush1.msra.mxu0 0.0
      %330 = vmatprep.subr.mxu0 0.0
      %331 = vmatpush1.msra.mxu0 0.0
      %332 = vmatprep.subr.mxu0 0.0
      %333 = vmatpush1.msra.mxu0 0.0
      %334 = vmatprep.subr.mxu0 0.0
      %335 = vmatpush1.msra.mxu0 0.0
      %336 = vmatprep.subr.mxu0 0.0
      %337 = vmatpush1.msra.mxu0 0.0
      %338 = vmatprep.subr.mxu0 0.0
      %339 = vmatpush1.msra.mxu0 0.0
      %340 = vmatprep.subr.mxu0 0.0
      %341 = vmatpush1.msra.mxu0 0.0
      %342 = vmatprep.subr.mxu0 0.0
      %343 = vmatpush1.msra.mxu0 0.0
      %344 = vmatprep.subr.mxu0 0.0
      %345 = vmatpush1.msra.mxu0 0.0
      %346 = vmatprep.subr.mxu0 0.0
      %347 = vmatpush1.msra.mxu0 0.0
      %348 = vmatprep.subr.mxu0 0.0
      %349 = vmatpush1.msra.mxu0 0.0
      %350 = vmatprep.subr.mxu0 0.0
      %351 = vmatpush1.msra.mxu0 0.0
      %352 = vmatprep.subr.mxu0 0.0
      %353 = vmatpush1.msra.mxu0 0.0
      %354 = vmatprep.subr.mxu0 0.0
      %355 = vmatpush1.msra.mxu0 0.0
      %356 = vmatprep.subr.mxu0 0.0
      %357 = vmatpush1.msra.mxu0 0.0
      %358 = vmatprep.subr.mxu0 0.0
      %359 = vmatpush1.msra.mxu0 0.0
      %360 = vmatprep.subr.mxu0 0.0
      %361 = vmatpush1.msra.mxu0 0.0
      %362 = vmatprep.subr.mxu0 0.0
      %363 = vmatpush1.msra.mxu0 0.0
      %364 = vmatprep.subr.mxu0 0.0
      %365 = vmatpush1.msra.mxu0 0.0
      %366 = vmatprep.subr.mxu0 0.0
      %367 = vmatpush1.msra.mxu0 0.0
      %368 = vmatprep.subr.mxu0 0.0
      %369 = vmatpush1.msra.mxu0 0.0
      %370 = vmatprep.subr.mxu0 0.0
      %371 = vmatpush1.msra.mxu0 0.0
      %372 = vmatprep.subr.mxu0 0.0
      %373 = vmatpush1.msra.mxu0 0.0
      %374 = vmatprep.mubr.f32.mxu0 0.0
      %375 = vmatmul.mubr.f32.gmra.mrb[0].mxu0 %v302
      %v376 = vpop.f32.mrb[0].mxu0
      %v377 = vadd.f32 %v299, %v376
      %v378 = vpop.f32.mrb[0].mxu0
      %379 = vmatprep.mubr.f32.mxu0 0.0
      %380 = vmatmul.mubr.f32.gmra.mrb[0].mxu0 %v305
      %v381 = vpop.f32.mrb[0].mxu0
      %v382 = vadd.f32 %v299, %v381
      %v383 = vpop.f32.mrb[0].mxu0
      %384 = vmatprep.mubr.f32.mxu0 0.0
      %385 = vmatmul.mubr.f32.gmra.mrb[0].mxu0 %v308
      %v386 = vpop.f32.mrb[0].mxu0
      %v387 = vadd.f32 %v299, %v386
      %v388 = vpop.f32.mrb[0].mxu0
      %389 = vdwg.mxu0
      %vm390 = vcmask 523264
      %391 = vst.msk [vmem:[%s224] sm:$0xff] %vm390, %v377
      %392 = vst.msk [vmem:[%s224 + $0x8] sm:$0xff] %vm390, %v382
      %vm393 = vcmask 516096
      %394 = vst.msk [vmem:[%s224 + $0x10] sm:$0x1] %vm393, %v387
      %p395 = scmp.lt.s32.totalorder %s16, 1
      %s396 = scalar_select %p395, %s16, 1
      %s397 = smul.addr %s396, 3
      %s398 = smul.addr %s397, 8
      %s399 = scalar_lea.vmem %s5, %s398
      // Predicated region
      $region41: #{vit_forward.9} parent=39 // pred_check
        %p400 = pneg %p144
      $region42: #{vit_forward.9} parent=39 // pred_check_branch
        %402 = sbr.rel (%p400) target = $region44
      $region43: #{vit_forward.9} parent=39 // pred_region
        _
      $region44: #{vit_forward.9} parent=39 // pred_fallthru
        _
    $region40: #{vit_forward.9} parent=5 // pred_fallthru
      _
    %p403 = scmp.le.s32.totalorder 2, %s11
    // Predicated region
    $region45: #{vit_forward.9} parent=5 // pred_check
      %p404 = pneg %p403
    $region46: #{vit_forward.9} parent=5 // pred_check_branch
      %406 = sbr.rel (%p404) target = $region48
    $region47: #{vit_forward.9} parent=5 // pred_region
      %s407 = ssub.s32 %s11, 2
      // Predicated region
      $region49: #{vit_forward.9} parent=47 // pred_check
        %p408 = pneg %p150
      $region50: #{vit_forward.9} parent=47 // pred_check_branch
        %410 = sbr.rel (%p408) target = $region52
      $region51: #{vit_forward.9} parent=47 // pred_region
        %p411 = scmp.lt.s32.totalorder %s17, 1
        %s412 = scalar_select %p411, %s17, 1
        %s413 = smul.addr %s412, 3
        %s414 = smul.addr %s413, 8
        %s415 = scalar_lea.vmem %s5, %s414
      $region52: #{vit_forward.9} parent=47 // pred_fallthru
        _
    $region48: #{vit_forward.9} parent=5 // pred_fallthru
      _
  $region6: #{vit_forward.9} parent=0 // loop_footer
    %s15 = sadd.s32 1, %s11
  $region7: #{vit_forward.9} parent=0 // loop_footer_branch
    %10 = sbr.rel target = $region3
  $region8: #{vit_forward.9} parent=0 // loop_exit
    _

// kernel: vit_forward.7
$region0: #{vit_forward.7}
  #allocation0 [shape = 'u32[]', space=smem, size = 0x4, offset = 0x4, fixed_abs, tag = 'smem constant byte address 0x4 - core index']
  #allocation1 [shape = 'u32[144,128]{1,0:T(1,128)}', space=vmem, size = 0x12000, scoped, tag = 'internal scratch']
  %s0 = inlined_call_operand.vmem [shape: f32[2,16,48], index: 0, kind: input, shape index: {}]
  %s1 = inlined_call_operand.vmem [shape: f32[48,32], index: 1, kind: input, shape index: {}]
  %s2 = inlined_call_operand.vmem [shape: f32[1,32], index: 2, kind: input, shape index: {}]
  %s3 = inlined_call_operand.vmem [shape: f32[2,16,32], index: 3, kind: output, shape index: {}]
  %s4 = sld [smem:[#allocation0]]
  $region45: #{vit_forward.7} parent=0
    _
  %s6 = ssub.s32 1, %s4
  %s7 = scalar_select 0, %s6, %s4
  loop: start=0, step=1, limit=4
  $region2: #{vit_forward.7} parent=0 // loop_pre_header
    _
  $region3: #{vit_forward.7} parent=0 // loop_header
    %s9 = sphi 0, %s13
    %p10 = scmp.ge.s32.totalorder %s9, 4
    %s19 = sphi 0, %s21
    %s22 = sphi 0, %s19
    %s23 = sphi 0, %s22
    %s39 = sphi 0, %s23
    %s43 = sphi 0, %s43
    %s45 = sphi 0, %s43
    %s46 = sphi 0, %s45
    %s60 = sphi 0, %s46
    %s64 = sphi 0, %s64
    %s66 = sphi 0, %s64
    %s67 = sphi 0, %s66
    %s81 = sphi 0, %s67
    %s87 = sphi 0, %s89
    %s90 = sphi 0, %s87
    %s91 = sphi 0, %s90
    %s107 = sphi 0, %s91
  $region4: #{vit_forward.7} parent=0 // loop_header_branch
    %12 = sbr.rel (%p10) target = $region8
  $region5: #{vit_forward.7} parent=0 // loop_body
    %s14 = ssub.s32 %s9, 1
    %s15 = ssub.s32 %s9, 2
    %s16 = sadd.s32 %s9, 1
    %s17 = ssub.s32 %s9, %s16
    %p18 = scmp.eq.s32.totalorder %s17, 0
    %s20 = sadd.s32 %s19, 1
    %s21 = scalar_select %p18, %s19, %s20
    %p24 = pneg %p18
    %p25 = scmp.eq.s32.totalorder %s9, 1
    %p26 = por %p24, %p25
    %p27 = scmp.ne.s32.totalorder %s19, %s22
    %p28 = scmp.eq.s32.totalorder %s9, 0
    %p29 = por %p27, %p28
    %p30 = scmp.ne.s32.totalorder %s19, %s22
    %p31 = scmp.eq.s32.totalorder %s14, 1
    %p32 = por %p30, %p31
    %p33 = scmp.ne.s32.totalorder %s22, %s23
    %p34 = scmp.eq.s32.totalorder %s14, 0
    %p35 = por %p33, %p34
    %p36 = scmp.ne.s32.totalorder %s22, %s23
    %p37 = scmp.eq.s32.totalorder %s15, 1
    %p38 = por %p36, %p37
    %p40 = scmp.ne.s32.totalorder %s23, %s39
    %p41 = scmp.eq.s32.totalorder %s15, 0
    %p42 = por %p40, %p41
    %s44 = sadd.s32 %s43, 1
    %p47 = scmp.eq.s32.totalorder %s9, 1
    %p48 = scmp.ne.s32.totalorder %s43, %s45
    %p49 = scmp.eq.s32.totalorder %s9, 0
    %p50 = por %p48, %p49
    %p51 = scmp.ne.s32.totalorder %s43, %s45
    %p52 = scmp.eq.s32.totalorder %s14, 1
    %p53 = por %p51, %p52
    %p54 = scmp.ne.s32.totalorder %s45, %s46
    %p55 = scmp.eq.s32.totalorder %s14, 0
    %p56 = por %p54, %p55
    %p57 = scmp.ne.s32.totalorder %s45, %s46
    %p58 = scmp.eq.s32.totalorder %s15, 1
    %p59 = por %p57, %p58
    %p61 = scmp.ne.s32.totalorder %s46, %s60
    %p62 = scmp.eq.s32.totalorder %s15, 0
    %p63 = por %p61, %p62
    %s65 = sadd.s32 %s64, 1
    %p68 = scmp.eq.s32.totalorder %s9, 1
    %p69 = scmp.ne.s32.totalorder %s64, %s66
    %p70 = scmp.eq.s32.totalorder %s9, 0
    %p71 = por %p69, %p70
    %p72 = scmp.ne.s32.totalorder %s64, %s66
    %p73 = scmp.eq.s32.totalorder %s14, 1
    %p74 = por %p72, %p73
    %p75 = scmp.ne.s32.totalorder %s66, %s67
    %p76 = scmp.eq.s32.totalorder %s14, 0
    %p77 = por %p75, %p76
    %p78 = scmp.ne.s32.totalorder %s66, %s67
    %p79 = scmp.eq.s32.totalorder %s15, 1
    %p80 = por %p78, %p79
    %p82 = scmp.ne.s32.totalorder %s67, %s81
    %p83 = scmp.eq.s32.totalorder %s15, 0
    %p84 = por %p82, %p83
    %s85 = ssub.s32 %s9, %s16
    %p86 = scmp.eq.s32.totalorder %s85, 0
    %s88 = sadd.s32 %s87, 1
    %s89 = scalar_select %p86, %s87, %s88
    %p92 = pneg %p86
    %p93 = scmp.eq.s32.totalorder %s9, 1
    %p94 = por %p92, %p93
    %p95 = scmp.ne.s32.totalorder %s87, %s90
    %p96 = scmp.eq.s32.totalorder %s9, 0
    %p97 = por %p95, %p96
    %p98 = scmp.ne.s32.totalorder %s87, %s90
    %p99 = scmp.eq.s32.totalorder %s14, 1
    %p100 = por %p98, %p99
    %p101 = scmp.ne.s32.totalorder %s90, %s91
    %p102 = scmp.eq.s32.totalorder %s14, 0
    %p103 = por %p101, %p102
    %p104 = scmp.ne.s32.totalorder %s90, %s91
    %p105 = scmp.eq.s32.totalorder %s15, 1
    %p106 = por %p104, %p105
    %p108 = scmp.ne.s32.totalorder %s91, %s107
    %p109 = scmp.eq.s32.totalorder %s15, 0
    %p110 = por %p108, %p109
    %p111 = scmp.le.s32.totalorder 1, %s9
    %p112 = scmp.lt.s32.totalorder %s9, 3
    %p113 = pnand %p111, %p112
    %p114 = pneg %p113
    // Predicated region
    $region9: #{vit_forward.7} parent=5 // pred_check
      _
    $region10: #{vit_forward.7} parent=5 // pred_check_branch
      %116 = sbr.rel (%p113) target = $region12
    $region11: #{vit_forward.7} parent=5 // pred_region
      %s117 = ssub.s32 %s9, 1
      // Predicated region
      $region13: #{vit_forward.7} parent=11 // pred_check
        %p118 = pneg %p56
      $region14: #{vit_forward.7} parent=11 // pred_check_branch
        %120 = sbr.rel (%p118) target = $region16
      $region15: #{vit_forward.7} parent=11 // pred_region
        _
      $region16: #{vit_forward.7} parent=11 // pred_fallthru
        _
      // Predicated region
      $region17: #{vit_forward.7} parent=11 // pred_check
        %p121 = pneg %p77
      $region18: #{vit_forward.7} parent=11 // pred_check_branch
        %123 = sbr.rel (%p121) target = $region20
      $region19: #{vit_forward.7} parent=11 // pred_region
        _
      $region20: #{vit_forward.7} parent=11 // pred_fallthru
        _
    $region12: #{vit_forward.7} parent=5 // pred_fallthru
      _
    %p124 = scmp.lt.s32.totalorder %s9, 2
    // Predicated region
    $region21: #{vit_forward.7} parent=5 // pred_check
      %p125 = pneg %p124
    $region22: #{vit_forward.7} parent=5 // pred_check_branch
      %127 = sbr.rel (%p125) target = $region24
    $region23: #{vit_forward.7} parent=5 // pred_region
      // Predicated region
      $region25: #{vit_forward.7} parent=23 // pred_check
        %p128 = pneg %p29
      $region26: #{vit_forward.7} parent=23 // pred_check_branch
        %130 = sbr.rel (%p128) target = $region28
      $region27: #{vit_forward.7} parent=23 // pred_region
        %p131 = scmp.lt.s32.totalorder %s9, 1
        %s132 = scalar_select %p131, %s9, 1
        %s133 = smul.addr %s132, 2
        %s134 = smul.addr %s133, 8
        %s135 = scalar_lea.vmem %s0, %s134
      $region28: #{vit_forward.7} parent=23 // pred_fallthru
        _
    $region24: #{vit_forward.7} parent=5 // pred_fallthru
      _
    %p136 = scmp.le.s32.totalorder 1, %s9
    %p137 = scmp.lt.s32.totalorder %s9, 3
    %p138 = pnand %p136, %p137
    %p139 = pneg %p138
    // Predicated region
    $region29: #{vit_forward.7} parent=5 // pred_check
      _
    $region30: #{vit_forward.7} parent=5 // pred_check_branch
      %141 = sbr.rel (%p138) target = $region32
    $region31: #{vit_forward.7} parent=5 // pred_region
      %s142 = ssub.s32 %s9, 1
      %p143 = scmp.lt.s32.totalorder %s14, 1
      %s144 = scalar_select %p143, %s14, 1
      %s145 = smul.addr %s144, 2
      %s146 = smul.addr %s145, 8
      %s147 = scalar_lea.vmem %s0, %s146
      %p148 = pneg %p35
      %p149 = pneg %p32
      %p150 = pneg %p56
      %p151 = pneg %p53
      %p152 = pneg %p77
      %p153 = pneg %p74
      %p154 = pneg %p103
      %p155 = pneg %p100
      %p156 = scmp.lt.s32.totalorder %s14, 1
      %s157 = scalar_select %p156, %s14, 1
      %s158 = smul.addr %s157, 2
      %s159 = smul.addr %s158, 8
      %s160 = scalar_lea.vmem %s3, %s159
      %p161 = scmp.lt.s32.totalorder %s14, 1
      %s162 = scalar_select %p161, %s14, 1
      %s163 = smul.addr %s162, 2
      %s164 = smul.addr %s163, 8
      %s165 = scalar_lea.vmem %s0, %s164
      %p166 = scmp.lt.s32.totalorder %s14, 1
      %s167 = scalar_select %p166, %s14, 1
      %s168 = smul.addr %s167, 2
      %s169 = smul.addr %s168, 8
      %s170 = scalar_lea.vmem %s3, %s169
      %v171 = vld [vmem:[%s165] sm:$0xff]
      %v172 = vld [vmem:[%s165 + $0x8] sm:$0xff]
      %v173 = vld [vmem:[%s1] sm:$0xff]
      %v174 = vld [vmem:[%s1 + $0x8] sm:$0xff]
      %v175 = vld [vmem:[%s1 + $0x10] sm:$0xff]
      %v176 = vld [vmem:[%s1 + $0x18] sm:$0xff]
      %v177 = vld [vmem:[%s1 + $0x20] sm:$0xff]
      %v178 = vld [vmem:[%s1 + $0x28] sm:$0xff]
      %v179 = vld [vmem:[%s2] sm:$0x1]
      %v181 = vlaneseq
      %v182 = vshrl.u32 %v181, 7
      %v183 = vsub.s32 0, %v182
      %v184 = vrot.slane %v179, %v183
      %vm186 = vcmask 392192
      %v188 = vsel %vm186, %v171, 0
      %v191 = vsel %vm186, %v172, 0
      %193 = vmatprep.subr.mxu0 0.0
      %194 = vmatpush1.msra.mxu0 %v173
      %195 = vmatprep.subr.mxu0 0.0
      %196 = vmatpush1.msra.mxu0 %v174
      %197 = vmatprep.subr.mxu0 0.0
      %198 = vmatpush1.msra.mxu0 %v175
      %199 = vmatprep.subr.mxu0 0.0
      %200 = vmatpush1.msra.mxu0 %v176
      %201 = vmatprep.subr.mxu0 0.0
      %202 = vmatpush1.msra.mxu0 %v177
      %203 = vmatprep.subr.mxu0 0.0
      %204 = vmatpush1.msra.mxu0 %v178
      %205 = vmatprep.subr.mxu0 0.0
      %206 = vmatpush1.msra.mxu0 0.0
      %207 = vmatprep.subr.mxu0 0.0
      %208 = vmatpush1.msra.mxu0 0.0
      %209 = vmatprep.subr.mxu0 0.0
      %210 = vmatpush1.msra.mxu0 0.0
      %211 = vmatprep.subr.mxu0 0.0
      %212 = vmatpush1.msra.mxu0 0.0
      %213 = vmatprep.subr.mxu0 0.0
      %214 = vmatpush1.msra.mxu0 0.0
      %215 = vmatprep.subr.mxu0 0.0
      %216 = vmatpush1.msra.mxu0 0.0
      %217 = vmatprep.subr.mxu0 0.0
      %218 = vmatpush1.msra.mxu0 0.0
      %219 = vmatprep.subr.mxu0 0.0
      %220 = vmatpush1.msra.mxu0 0.0
      %221 = vmatprep.subr.mxu0 0.0
      %222 = vmatpush1.msra.mxu0 0.0
      %223 = vmatprep.subr.mxu0 0.0
      %224 = vmatpush1.msra.mxu0 0.0
      %225 = vmatprep.subr.mxu0 0.0
      %226 = vmatpush1.msra.mxu0 0.0
      %227 = vmatprep.subr.mxu0 0.0
      %228 = vmatpush1.msra.mxu0 0.0
      %229 = vmatprep.subr.mxu0 0.0
      %230 = vmatpush1.msra.mxu0 0.0
      %231 = vmatprep.subr.mxu0 0.0
      %232 = vmatpush1.msra.mxu0 0.0
      %233 = vmatprep.subr.mxu0 0.0
      %234 = vmatpush1.msra.mxu0 0.0
      %235 = vmatprep.subr.mxu0 0.0
      %236 = vmatpush1.msra.mxu0 0.0
      %237 = vmatprep.subr.mxu0 0.0
      %238 = vmatpush1.msra.mxu0 0.0
      %239 = vmatprep.subr.mxu0 0.0
      %240 = vmatpush1.msra.mxu0 0.0
      %241 = vmatprep.subr.mxu0 0.0
      %242 = vmatpush1.msra.mxu0 0.0
      %243 = vmatprep.subr.mxu0 0.0
      %244 = vmatpush1.msra.mxu0 0.0
      %245 = vmatprep.subr.mxu0 0.0
      %246 = vmatpush1.msra.mxu0 0.0
      %247 = vmatprep.subr.mxu0 0.0
      %248 = vmatpush1.msra.mxu0 0.0
      %249 = vmatprep.subr.mxu0 0.0
      %250 = vmatpush1.msra.mxu0 0.0
      %251 = vmatprep.subr.mxu0 0.0
      %252 = vmatpush1.msra.mxu0 0.0
      %253 = vmatprep.subr.mxu0 0.0
      %254 = vmatpush1.msra.mxu0 0.0
      %255 = vmatprep.subr.mxu0 0.0
      %256 = vmatpush1.msra.mxu0 0.0
      %257 = vmatprep.mubr.f32.mxu0 0.0
      %258 = vmatmul.mubr.f32.gmra.mrb[0].mxu0 %v188
      %v259 = vpop.f32.mrb[0].mxu0
      %v260 = vadd.f32 %v184, %v259
      %v261 = vpop.f32.mrb[0].mxu0
      %262 = vmatprep.mubr.f32.mxu0 0.0
      %263 = vmatmul.mubr.f32.gmra.mrb[0].mxu0 %v191
      %v264 = vpop.f32.mrb[0].mxu0
      %v265 = vadd.f32 %v184, %v264
      %v266 = vpop.f32.mrb[0].mxu0
      %267 = vdwg.mxu0
      %vm268 = vcmask 261120
      %269 = vst.msk [vmem:[%s170] sm:$0xff] %vm268, %v260
      %270 = vst.msk [vmem:[%s170 + $0x8] sm:$0xff] %vm268, %v265
      %p271 = scmp.lt.s32.totalorder %s14, 1
      %s272 = scalar_select %p271, %s14, 1
      %s273 = smul.addr %s272, 2
      %s274 = smul.addr %s273, 8
      %s275 = scalar_lea.vmem %s3, %s274
      // Predicated region
      $region33: #{vit_forward.7} parent=31 // pred_check
        %p276 = pneg %p100
      $region34: #{vit_forward.7} parent=31 // pred_check_branch
        %278 = sbr.rel (%p276) target = $region36
      $region35: #{vit_forward.7} parent=31 // pred_region
        _
      $region36: #{vit_forward.7} parent=31 // pred_fallthru
        _
    $region32: #{vit_forward.7} parent=5 // pred_fallthru
      _
    %p279 = scmp.le.s32.totalorder 2, %s9
    // Predicated region
    $region37: #{vit_forward.7} parent=5 // pred_check
      %p280 = pneg %p279
    $region38: #{vit_forward.7} parent=5 // pred_check_branch
      %282 = sbr.rel (%p280) target = $region40
    $region39: #{vit_forward.7} parent=5 // pred_region
      %s283 = ssub.s32 %s9, 2
      // Predicated region
      $region41: #{vit_forward.7} parent=39 // pred_check
        %p284 = pneg %p106
      $region42: #{vit_forward.7} parent=39 // pred_check_branch
        %286 = sbr.rel (%p284) target = $region44
      $region43: #{vit_forward.7} parent=39 // pred_region
        %p287 = scmp.lt.s32.totalorder %s15, 1
        %s288 = scalar_select %p287, %s15, 1
        %s289 = smul.addr %s288, 2
        %s290 = smul.addr %s289, 8
        %s291 = scalar_lea.vmem %s3, %s290
      $region44: #{vit_forward.7} parent=39 // pred_fallthru
        _
    $region40: #{vit_forward.7} parent=5 // pred_fallthru
      _
  $region6: #{vit_forward.7} parent=0 // loop_footer
    %s13 = sadd.s32 1, %s9
  $region7: #{vit_forward.7} parent=0 // loop_footer_branch
    %8 = sbr.rel target = $region3
  $region8: #{vit_forward.7} parent=0 // loop_exit
    _

// kernel: vit_forward.10
$region0: #{vit_forward.10}
  #allocation0 [shape = 'u32[]', space=smem, size = 0x4, offset = 0x4, fixed_abs, tag = 'smem constant byte address 0x4 - core index']
  #allocation1 [shape = 'u32[144,128]{1,0:T(1,128)}', space=vmem, size = 0x12000, scoped, tag = 'internal scratch']
  %s0 = inlined_call_operand.vmem [shape: f32[2,17,64], index: 0, kind: input, shape index: {}]
  %s1 = inlined_call_operand.vmem [shape: f32[64,32], index: 1, kind: input, shape index: {}]
  %s2 = inlined_call_operand.vmem [shape: f32[1,32], index: 2, kind: input, shape index: {}]
  %s3 = inlined_call_operand.vmem [shape: f32[2,17,32], index: 3, kind: input, shape index: {}]
  %s4 = inlined_call_operand.vmem [shape: f32[2,17,32], index: 4, kind: output, shape index: {}]
  %s5 = sld [smem:[#allocation0]]
  $region49: #{vit_forward.10} parent=0
    _
  %s7 = ssub.s32 1, %s5
  %s8 = scalar_select 0, %s7, %s5
  loop: start=0, step=1, limit=4
  $region2: #{vit_forward.10} parent=0 // loop_pre_header
    _
  $region3: #{vit_forward.10} parent=0 // loop_header
    %s10 = sphi 0, %s14
    %p11 = scmp.ge.s32.totalorder %s10, 4
    %s20 = sphi 0, %s22
    %s23 = sphi 0, %s20
    %s24 = sphi 0, %s23
    %s40 = sphi 0, %s24
    %s44 = sphi 0, %s44
    %s46 = sphi 0, %s44
    %s47 = sphi 0, %s46
    %s61 = sphi 0, %s47
    %s65 = sphi 0, %s65
    %s67 = sphi 0, %s65
    %s68 = sphi 0, %s67
    %s82 = sphi 0, %s68
    %s88 = sphi 0, %s90
    %s91 = sphi 0, %s88
    %s92 = sphi 0, %s91
    %s108 = sphi 0, %s92
    %s114 = sphi 0, %s116
    %s117 = sphi 0, %s114
    %s118 = sphi 0, %s117
    %s134 = sphi 0, %s118
  $region4: #{vit_forward.10} parent=0 // loop_header_branch
    %13 = sbr.rel (%p11) target = $region8
  $region5: #{vit_forward.10} parent=0 // loop_body
    %s15 = ssub.s32 %s10, 1
    %s16 = ssub.s32 %s10, 2
    %s17 = sadd.s32 %s10, 1
    %s18 = ssub.s32 %s10, %s17
    %p19 = scmp.eq.s32.totalorder %s18, 0
    %s21 = sadd.s32 %s20, 1
    %s22 = scalar_select %p19, %s20, %s21
    %p25 = pneg %p19
    %p26 = scmp.eq.s32.totalorder %s10, 1
    %p27 = por %p25, %p26
    %p28 = scmp.ne.s32.totalorder %s20, %s23
    %p29 = scmp.eq.s32.totalorder %s10, 0
    %p30 = por %p28, %p29
    %p31 = scmp.ne.s32.totalorder %s20, %s23
    %p32 = scmp.eq.s32.totalorder %s15, 1
    %p33 = por %p31, %p32
    %p34 = scmp.ne.s32.totalorder %s23, %s24
    %p35 = scmp.eq.s32.totalorder %s15, 0
    %p36 = por %p34, %p35
    %p37 = scmp.ne.s32.totalorder %s23, %s24
    %p38 = scmp.eq.s32.totalorder %s16, 1
    %p39 = por %p37, %p38
    %p41 = scmp.ne.s32.totalorder %s24, %s40
    %p42 = scmp.eq.s32.totalorder %s16, 0
    %p43 = por %p41, %p42
    %s45 = sadd.s32 %s44, 1
    %p48 = scmp.eq.s32.totalorder %s10, 1
    %p49 = scmp.ne.s32.totalorder %s44, %s46
    %p50 = scmp.eq.s32.totalorder %s10, 0
    %p51 = por %p49, %p50
    %p52 = scmp.ne.s32.totalorder %s44, %s46
    %p53 = scmp.eq.s32.totalorder %s15, 1
    %p54 = por %p52, %p53
    %p55 = scmp.ne.s32.totalorder %s46, %s47
    %p56 = scmp.eq.s32.totalorder %s15, 0
    %p57 = por %p55, %p56
    %p58 = scmp.ne.s32.totalorder %s46, %s47
    %p59 = scmp.eq.s32.totalorder %s16, 1
    %p60 = por %p58, %p59
    %p62 = scmp.ne.s32.totalorder %s47, %s61
    %p63 = scmp.eq.s32.totalorder %s16, 0
    %p64 = por %p62, %p63
    %s66 = sadd.s32 %s65, 1
    %p69 = scmp.eq.s32.totalorder %s10, 1
    %p70 = scmp.ne.s32.totalorder %s65, %s67
    %p71 = scmp.eq.s32.totalorder %s10, 0
    %p72 = por %p70, %p71
    %p73 = scmp.ne.s32.totalorder %s65, %s67
    %p74 = scmp.eq.s32.totalorder %s15, 1
    %p75 = por %p73, %p74
    %p76 = scmp.ne.s32.totalorder %s67, %s68
    %p77 = scmp.eq.s32.totalorder %s15, 0
    %p78 = por %p76, %p77
    %p79 = scmp.ne.s32.totalorder %s67, %s68
    %p80 = scmp.eq.s32.totalorder %s16, 1
    %p81 = por %p79, %p80
    %p83 = scmp.ne.s32.totalorder %s68, %s82
    %p84 = scmp.eq.s32.totalorder %s16, 0
    %p85 = por %p83, %p84
    %s86 = ssub.s32 %s10, %s17
    %p87 = scmp.eq.s32.totalorder %s86, 0
    %s89 = sadd.s32 %s88, 1
    %s90 = scalar_select %p87, %s88, %s89
    %p93 = pneg %p87
    %p94 = scmp.eq.s32.totalorder %s10, 1
    %p95 = por %p93, %p94
    %p96 = scmp.ne.s32.totalorder %s88, %s91
    %p97 = scmp.eq.s32.totalorder %s10, 0
    %p98 = por %p96, %p97
    %p99 = scmp.ne.s32.totalorder %s88, %s91
    %p100 = scmp.eq.s32.totalorder %s15, 1
    %p101 = por %p99, %p100
    %p102 = scmp.ne.s32.totalorder %s91, %s92
    %p103 = scmp.eq.s32.totalorder %s15, 0
    %p104 = por %p102, %p103
    %p105 = scmp.ne.s32.totalorder %s91, %s92
    %p106 = scmp.eq.s32.totalorder %s16, 1
    %p107 = por %p105, %p106
    %p109 = scmp.ne.s32.totalorder %s92, %s108
    %p110 = scmp.eq.s32.totalorder %s16, 0
    %p111 = por %p109, %p110
    %s112 = ssub.s32 %s10, %s17
    %p113 = scmp.eq.s32.totalorder %s112, 0
    %s115 = sadd.s32 %s114, 1
    %s116 = scalar_select %p113, %s114, %s115
    %p119 = pneg %p113
    %p120 = scmp.eq.s32.totalorder %s10, 1
    %p121 = por %p119, %p120
    %p122 = scmp.ne.s32.totalorder %s114, %s117
    %p123 = scmp.eq.s32.totalorder %s10, 0
    %p124 = por %p122, %p123
    %p125 = scmp.ne.s32.totalorder %s114, %s117
    %p126 = scmp.eq.s32.totalorder %s15, 1
    %p127 = por %p125, %p126
    %p128 = scmp.ne.s32.totalorder %s117, %s118
    %p129 = scmp.eq.s32.totalorder %s15, 0
    %p130 = por %p128, %p129
    %p131 = scmp.ne.s32.totalorder %s117, %s118
    %p132 = scmp.eq.s32.totalorder %s16, 1
    %p133 = por %p131, %p132
    %p135 = scmp.ne.s32.totalorder %s118, %s134
    %p136 = scmp.eq.s32.totalorder %s16, 0
    %p137 = por %p135, %p136
    %p138 = scmp.le.s32.totalorder 1, %s10
    %p139 = scmp.lt.s32.totalorder %s10, 3
    %p140 = pnand %p138, %p139
    %p141 = pneg %p140
    // Predicated region
    $region9: #{vit_forward.10} parent=5 // pred_check
      _
    $region10: #{vit_forward.10} parent=5 // pred_check_branch
      %143 = sbr.rel (%p140) target = $region12
    $region11: #{vit_forward.10} parent=5 // pred_region
      %s144 = ssub.s32 %s10, 1
      // Predicated region
      $region13: #{vit_forward.10} parent=11 // pred_check
        %p145 = pneg %p57
      $region14: #{vit_forward.10} parent=11 // pred_check_branch
        %147 = sbr.rel (%p145) target = $region16
      $region15: #{vit_forward.10} parent=11 // pred_region
        _
      $region16: #{vit_forward.10} parent=11 // pred_fallthru
        _
      // Predicated region
      $region17: #{vit_forward.10} parent=11 // pred_check
        %p148 = pneg %p78
      $region18: #{vit_forward.10} parent=11 // pred_check_branch
        %150 = sbr.rel (%p148) target = $region20
      $region19: #{vit_forward.10} parent=11 // pred_region
        _
      $region20: #{vit_forward.10} parent=11 // pred_fallthru
        _
    $region12: #{vit_forward.10} parent=5 // pred_fallthru
      _
    %p151 = scmp.lt.s32.totalorder %s10, 2
    // Predicated region
    $region21: #{vit_forward.10} parent=5 // pred_check
      %p152 = pneg %p151
    $region22: #{vit_forward.10} parent=5 // pred_check_branch
      %154 = sbr.rel (%p152) target = $region24
    $region23: #{vit_forward.10} parent=5 // pred_region
      // Predicated region
      $region25: #{vit_forward.10} parent=23 // pred_check
        %p155 = pneg %p30
      $region26: #{vit_forward.10} parent=23 // pred_check_branch
        %157 = sbr.rel (%p155) target = $region28
      $region27: #{vit_forward.10} parent=23 // pred_region
        %p158 = scmp.lt.s32.totalorder %s10, 1
        %s159 = scalar_select %p158, %s10, 1
        %s160 = smul.addr %s159, 3
        %s161 = smul.addr %s160, 8
        %s162 = scalar_lea.vmem %s0, %s161
      $region28: #{vit_forward.10} parent=23 // pred_fallthru
        _
      // Predicated region
      $region29: #{vit_forward.10} parent=23 // pred_check
        %p163 = pneg %p98
      $region30: #{vit_forward.10} parent=23 // pred_check_branch
        %165 = sbr.rel (%p163) target = $region32
      $region31: #{vit_forward.10} parent=23 // pred_region
        %p166 = scmp.lt.s32.totalorder %s10, 1
        %s167 = scalar_select %p166, %s10, 1
        %s168 = smul.addr %s167, 3
        %s169 = smul.addr %s168, 8
        %s170 = scalar_lea.vmem %s3, %s169
      $region32: #{vit_forward.10} parent=23 // pred_fallthru
        _
    $region24: #{vit_forward.10} parent=5 // pred_fallthru
      _
    %p171 = scmp.le.s32.totalorder 1, %s10
    %p172 = scmp.lt.s32.totalorder %s10, 3
    %p173 = pnand %p171, %p172
    %p174 = pneg %p173
    // Predicated region
    $region33: #{vit_forward.10} parent=5 // pred_check
      _
    $region34: #{vit_forward.10} parent=5 // pred_check_branch
      %176 = sbr.rel (%p173) target = $region36
    $region35: #{vit_forward.10} parent=5 // pred_region
      %s177 = ssub.s32 %s10, 1
      %p178 = scmp.lt.s32.totalorder %s15, 1
      %s179 = scalar_select %p178, %s15, 1
      %s180 = smul.addr %s179, 3
      %s181 = smul.addr %s180, 8
      %s182 = scalar_lea.vmem %s0, %s181
      %p183 = pneg %p36
      %p184 = pneg %p33
      %p185 = pneg %p57
      %p186 = pneg %p54
      %p187 = pneg %p78
      %p188 = pneg %p75
      %p189 = scmp.lt.s32.totalorder %s15, 1
      %s190 = scalar_select %p189, %s15, 1
      %s191 = smul.addr %s190, 3
      %s192 = smul.addr %s191, 8
      %s193 = scalar_lea.vmem %s3, %s192
      %p194 = pneg %p104
      %p195 = pneg %p101
      %p196 = pneg %p130
      %p197 = pneg %p127
      %p198 = scmp.lt.s32.totalorder %s15, 1
      %s199 = scalar_select %p198, %s15, 1
      %s200 = smul.addr %s199, 3
      %s201 = smul.addr %s200, 8
      %s202 = scalar_lea.vmem %s4, %s201
      %p203 = scmp.lt.s32.totalorder %s15, 1
      %s204 = scalar_select %p203, %s15, 1
      %s205 = smul.addr %s204, 3
      %s206 = smul.addr %s205, 8
      %s207 = scalar_lea.vmem %s0, %s206
      %p208 = scmp.lt.s32.totalorder %s15, 1
      %s209 = scalar_select %p208, %s15, 1
      %s210 = smul.addr %s209, 3
      %s211 = smul.addr %s210, 8
      %s212 = scalar_lea.vmem %s3, %s211
      %p213 = scmp.lt.s32.totalorder %s15, 1
      %s214 = scalar_select %p213, %s15, 1
      %s215 = smul.addr %s214, 3
      %s216 = smul.addr %s215, 8
      %s217 = scalar_lea.vmem %s4, %s216
      %v218 = vld [vmem:[%s207] sm:$0xff]
      %v219 = vld [vmem:[%s207 + $0x8] sm:$0xff]
      %v220 = vld [vmem:[%s207 + $0x10] sm:$0x1]
      %v221 = vld [vmem:[%s1] sm:$0xff]
      %v222 = vld [vmem:[%s1 + $0x8] sm:$0xff]
      %v223 = vld [vmem:[%s1 + $0x10] sm:$0xff]
      %v224 = vld [vmem:[%s1 + $0x18] sm:$0xff]
      %v225 = vld [vmem:[%s1 + $0x20] sm:$0xff]
      %v226 = vld [vmem:[%s1 + $0x28] sm:$0xff]
      %v227 = vld [vmem:[%s1 + $0x30] sm:$0xff]
      %v228 = vld [vmem:[%s1 + $0x38] sm:$0xff]
      %v229 = vld [vmem:[%s2] sm:$0x1]
      %v231 = vlaneseq
      %v232 = vshrl.u32 %v231, 7
      %v233 = vsub.s32 0, %v232
      %v234 = vrot.slane %v229, %v233
      %vm236 = vcmask 523264
      %v238 = vsel %vm236, %v218, 0
      %v241 = vsel %vm236, %v219, 0
      %v244 = vsel %vm236, %v220, 0
      %246 = vmatprep.subr.mxu0 0.0
      %247 = vmatpush1.msra.mxu0 %v221
      %248 = vmatprep.subr.mxu0 0.0
      %249 = vmatpush1.msra.mxu0 %v222
      %250 = vmatprep.subr.mxu0 0.0
      %251 = vmatpush1.msra.mxu0 %v223
      %252 = vmatprep.subr.mxu0 0.0
      %253 = vmatpush1.msra.mxu0 %v224
      %254 = vmatprep.subr.mxu0 0.0
      %255 = vmatpush1.msra.mxu0 %v225
      %256 = vmatprep.subr.mxu0 0.0
      %257 = vmatpush1.msra.mxu0 %v226
      %258 = vmatprep.subr.mxu0 0.0
      %259 = vmatpush1.msra.mxu0 %v227
      %260 = vmatprep.subr.mxu0 0.0
      %261 = vmatpush1.msra.mxu0 %v228
      %262 = vmatprep.subr.mxu0 0.0
      %263 = vmatpush1.msra.mxu0 0.0
      %264 = vmatprep.subr.mxu0 0.0
      %265 = vmatpush1.msra.mxu0 0.0
      %266 = vmatprep.subr.mxu0 0.0
      %267 = vmatpush1.msra.mxu0 0.0
      %268 = vmatprep.subr.mxu0 0.0
      %269 = vmatpush1.msra.mxu0 0.0
      %270 = vmatprep.subr.mxu0 0.0
      %271 = vmatpush1.msra.mxu0 0.0
      %272 = vmatprep.subr.mxu0 0.0
      %273 = vmatpush1.msra.mxu0 0.0
      %274 = vmatprep.subr.mxu0 0.0
      %275 = vmatpush1.msra.mxu0 0.0
      %276 = vmatprep.subr.mxu0 0.0
      %277 = vmatpush1.msra.mxu0 0.0
      %278 = vmatprep.subr.mxu0 0.0
      %279 = vmatpush1.msra.mxu0 0.0
      %280 = vmatprep.subr.mxu0 0.0
      %281 = vmatpush1.msra.mxu0 0.0
      %282 = vmatprep.subr.mxu0 0.0
      %283 = vmatpush1.msra.mxu0 0.0
      %284 = vmatprep.subr.mxu0 0.0
      %285 = vmatpush1.msra.mxu0 0.0
      %286 = vmatprep.subr.mxu0 0.0
      %287 = vmatpush1.msra.mxu0 0.0
      %288 = vmatprep.subr.mxu0 0.0
      %289 = vmatpush1.msra.mxu0 0.0
      %290 = vmatprep.subr.mxu0 0.0
      %291 = vmatpush1.msra.mxu0 0.0
      %292 = vmatprep.subr.mxu0 0.0
      %293 = vmatpush1.msra.mxu0 0.0
      %294 = vmatprep.subr.mxu0 0.0
      %295 = vmatpush1.msra.mxu0 0.0
      %296 = vmatprep.subr.mxu0 0.0
      %297 = vmatpush1.msra.mxu0 0.0
      %298 = vmatprep.subr.mxu0 0.0
      %299 = vmatpush1.msra.mxu0 0.0
      %300 = vmatprep.subr.mxu0 0.0
      %301 = vmatpush1.msra.mxu0 0.0
      %302 = vmatprep.subr.mxu0 0.0
      %303 = vmatpush1.msra.mxu0 0.0
      %304 = vmatprep.subr.mxu0 0.0
      %305 = vmatpush1.msra.mxu0 0.0
      %306 = vmatprep.subr.mxu0 0.0
      %307 = vmatpush1.msra.mxu0 0.0
      %308 = vmatprep.subr.mxu0 0.0
      %309 = vmatpush1.msra.mxu0 0.0
      %310 = vmatprep.mubr.f32.mxu0 0.0
      %311 = vmatmul.mubr.f32.gmra.mrb[0].mxu0 %v238
      %v312 = vpop.f32.mrb[0].mxu0
      %v313 = vadd.f32 %v234, %v312
      %v314 = vpop.f32.mrb[0].mxu0
      %315 = vmatprep.mubr.f32.mxu0 0.0
      %316 = vmatmul.mubr.f32.gmra.mrb[0].mxu0 %v241
      %v317 = vpop.f32.mrb[0].mxu0
      %v318 = vadd.f32 %v234, %v317
      %v319 = vpop.f32.mrb[0].mxu0
      %320 = vmatprep.mubr.f32.mxu0 0.0
      %321 = vmatmul.mubr.f32.gmra.mrb[0].mxu0 %v244
      %v322 = vpop.f32.mrb[0].mxu0
      %v323 = vadd.f32 %v234, %v322
      %v324 = vpop.f32.mrb[0].mxu0
      %325 = vdwg.mxu0
      %v326 = vld [vmem:[%s212] sm:$0xff]
      %v327 = vld [vmem:[%s212 + $0x8] sm:$0xff]
      %v328 = vld [vmem:[%s212 + $0x10] sm:$0x1]
      %v329 = vadd.f32 %v313, %v326
      %v330 = vadd.f32 %v318, %v327
      %v331 = vadd.f32 %v323, %v328
      %vm332 = vcmask 261120
      %333 = vst.msk [vmem:[%s217] sm:$0xff] %vm332, %v329
      %334 = vst.msk [vmem:[%s217 + $0x8] sm:$0xff] %vm332, %v330
      %vm335 = vcmask 253952
      %336 = vst.msk [vmem:[%s217 + $0x10] sm:$0x1] %vm335, %v331
      %p337 = scmp.lt.s32.totalorder %s15, 1
      %s338 = scalar_select %p337, %s15, 1
      %s339 = smul.addr %s338, 3
      %s340 = smul.addr %s339, 8
      %s341 = scalar_lea.vmem %s4, %s340
      // Predicated region
      $region37: #{vit_forward.10} parent=35 // pred_check
        %p342 = pneg %p127
      $region38: #{vit_forward.10} parent=35 // pred_check_branch
        %344 = sbr.rel (%p342) target = $region40
      $region39: #{vit_forward.10} parent=35 // pred_region
        _
      $region40: #{vit_forward.10} parent=35 // pred_fallthru
        _
    $region36: #{vit_forward.10} parent=5 // pred_fallthru
      _
    %p345 = scmp.le.s32.totalorder 2, %s10
    // Predicated region
    $region41: #{vit_forward.10} parent=5 // pred_check
      %p346 = pneg %p345
    $region42: #{vit_forward.10} parent=5 // pred_check_branch
      %348 = sbr.rel (%p346) target = $region44
    $region43: #{vit_forward.10} parent=5 // pred_region
      %s349 = ssub.s32 %s10, 2
      // Predicated region
      $region45: #{vit_forward.10} parent=43 // pred_check
        %p350 = pneg %p133
      $region46: #{vit_forward.10} parent=43 // pred_check_branch
        %352 = sbr.rel (%p350) target = $region48
      $region47: #{vit_forward.10} parent=43 // pred_region
        %p353 = scmp.lt.s32.totalorder %s16, 1
        %s354 = scalar_select %p353, %s16, 1
        %s355 = smul.addr %s354, 3
        %s356 = smul.addr %s355, 8
        %s357 = scalar_lea.vmem %s4, %s356
      $region48: #{vit_forward.10} parent=43 // pred_fallthru
        _
    $region44: #{vit_forward.10} parent=5 // pred_fallthru
      _
  $region6: #{vit_forward.10} parent=0 // loop_footer
    %s14 = sadd.s32 1, %s10
  $region7: #{vit_forward.10} parent=0 // loop_footer_branch
    %9 = sbr.rel target = $region3
  $region8: #{vit_forward.10} parent=0 // loop_exit
    _

// kernel: vit_forward.8
$region0: #{vit_forward.8}
  #allocation0 [shape = 'u32[]', space=smem, size = 0x4, offset = 0x4, fixed_abs, tag = 'smem constant byte address 0x4 - core index']
  #allocation1 [shape = 'u32[144,128]{1,0:T(1,128)}', space=vmem, size = 0x12000, scoped, tag = 'internal scratch']
  %s0 = inlined_call_operand.vmem [shape: f32[2,17,32], index: 0, kind: input, shape index: {}]
  %s1 = inlined_call_operand.vmem [shape: f32[1,32], index: 1, kind: input, shape index: {}]
  %s2 = inlined_call_operand.vmem [shape: f32[1,32], index: 2, kind: input, shape index: {}]
  %s3 = inlined_call_operand.vmem [shape: f32[32,96], index: 3, kind: input, shape index: {}]
  %s4 = inlined_call_operand.vmem [shape: f32[32,32], index: 4, kind: input, shape index: {}]
  %s5 = inlined_call_operand.vmem [shape: f32[1,32], index: 5, kind: input, shape index: {}]
  %s6 = inlined_call_operand.vmem [shape: f32[2,17,32], index: 6, kind: output, shape index: {}]
  %s7 = sld [smem:[#allocation0]]
  $region57: #{vit_forward.8} parent=0
    _
  %s9 = ssub.s32 1, %s7
  %s10 = scalar_select 0, %s9, %s7
  loop: start=0, step=1, limit=4
  $region2: #{vit_forward.8} parent=0 // loop_pre_header
    _
  $region3: #{vit_forward.8} parent=0 // loop_header
    %s12 = sphi 0, %s16
    %p13 = scmp.ge.s32.totalorder %s12, 4
    %s22 = sphi 0, %s24
    %s25 = sphi 0, %s22
    %s26 = sphi 0, %s25
    %s42 = sphi 0, %s26
    %s46 = sphi 0, %s46
    %s48 = sphi 0, %s46
    %s49 = sphi 0, %s48
    %s63 = sphi 0, %s49
    %s67 = sphi 0, %s67
    %s69 = sphi 0, %s67
    %s70 = sphi 0, %s69
    %s84 = sphi 0, %s70
    %s88 = sphi 0, %s88
    %s90 = sphi 0, %s88
    %s91 = sphi 0, %s90
    %s105 = sphi 0, %s91
    %s109 = sphi 0, %s109
    %s111 = sphi 0, %s109
    %s112 = sphi 0, %s111
    %s126 = sphi 0, %s112
    %s130 = sphi 0, %s130
    %s132 = sphi 0, %s130
    %s133 = sphi 0, %s132
    %s147 = sphi 0, %s133
    %s153 = sphi 0, %s155
    %s156 = sphi 0, %s153
    %s157 = sphi 0, %s156
    %s173 = sphi 0, %s157
  $region4: #{vit_forward.8} parent=0 // loop_header_branch
    %15 = sbr.rel (%p13) target = $region8
  $region5: #{vit_forward.8} parent=0 // loop_body
    %s17 = ssub.s32 %s12, 1
    %s18 = ssub.s32 %s12, 2
    %s19 = sadd.s32 %s12, 1
    %s20 = ssub.s32 %s12, %s19
    %p21 = scmp.eq.s32.totalorder %s20, 0
    %s23 = sadd.s32 %s22, 1
    %s24 = scalar_select %p21, %s22, %s23
    %p27 = pneg %p21
    %p28 = scmp.eq.s32.totalorder %s12, 1
    %p29 = por %p27, %p28
    %p30 = scmp.ne.s32.totalorder %s22, %s25
    %p31 = scmp.eq.s32.totalorder %s12, 0
    %p32 = por %p30, %p31
    %p33 = scmp.ne.s32.totalorder %s22, %s25
    %p34 = scmp.eq.s32.totalorder %s17, 1
    %p35 = por %p33, %p34
    %p36 = scmp.ne.s32.totalorder %s25, %s26
    %p37 = scmp.eq.s32.totalorder %s17, 0
    %p38 = por %p36, %p37
    %p39 = scmp.ne.s32.totalorder %s25, %s26
    %p40 = scmp.eq.s32.totalorder %s18, 1
    %p41 = por %p39, %p40
    %p43 = scmp.ne.s32.totalorder %s26, %s42
    %p44 = scmp.eq.s32.totalorder %s18, 0
    %p45 = por %p43, %p44
    %s47 = sadd.s32 %s46, 1
    %p50 = scmp.eq.s32.totalorder %s12, 1
    %p51 = scmp.ne.s32.totalorder %s46, %s48
    %p52 = scmp.eq.s32.totalorder %s12, 0
    %p53 = por %p51, %p52
    %p54 = scmp.ne.s32.totalorder %s46, %s48
    %p55 = scmp.eq.s32.totalorder %s17, 1
    %p56 = por %p54, %p55
    %p57 = scmp.ne.s32.totalorder %s48, %s49
    %p58 = scmp.eq.s32.totalorder %s17, 0
    %p59 = por %p57, %p58
    %p60 = scmp.ne.s32.totalorder %s48, %s49
    %p61 = scmp.eq.s32.totalorder %s18, 1
    %p62 = por %p60, %p61
    %p64 = scmp.ne.s32.totalorder %s49, %s63
    %p65 = scmp.eq.s32.totalorder %s18, 0
    %p66 = por %p64, %p65
    %s68 = sadd.s32 %s67, 1
    %p71 = scmp.eq.s32.totalorder %s12, 1
    %p72 = scmp.ne.s32.totalorder %s67, %s69
    %p73 = scmp.eq.s32.totalorder %s12, 0
    %p74 = por %p72, %p73
    %p75 = scmp.ne.s32.totalorder %s67, %s69
    %p76 = scmp.eq.s32.totalorder %s17, 1
    %p77 = por %p75, %p76
    %p78 = scmp.ne.s32.totalorder %s69, %s70
    %p79 = scmp.eq.s32.totalorder %s17, 0
    %p80 = por %p78, %p79
    %p81 = scmp.ne.s32.totalorder %s69, %s70
    %p82 = scmp.eq.s32.totalorder %s18, 1
    %p83 = por %p81, %p82
    %p85 = scmp.ne.s32.totalorder %s70, %s84
    %p86 = scmp.eq.s32.totalorder %s18, 0
    %p87 = por %p85, %p86
    %s89 = sadd.s32 %s88, 1
    %p92 = scmp.eq.s32.totalorder %s12, 1
    %p93 = scmp.ne.s32.totalorder %s88, %s90
    %p94 = scmp.eq.s32.totalorder %s12, 0
    %p95 = por %p93, %p94
    %p96 = scmp.ne.s32.totalorder %s88, %s90
    %p97 = scmp.eq.s32.totalorder %s17, 1
    %p98 = por %p96, %p97
    %p99 = scmp.ne.s32.totalorder %s90, %s91
    %p100 = scmp.eq.s32.totalorder %s17, 0
    %p101 = por %p99, %p100
    %p102 = scmp.ne.s32.totalorder %s90, %s91
    %p103 = scmp.eq.s32.totalorder %s18, 1
    %p104 = por %p102, %p103
    %p106 = scmp.ne.s32.totalorder %s91, %s105
    %p107 = scmp.eq.s32.totalorder %s18, 0
    %p108 = por %p106, %p107
    %s110 = sadd.s32 %s109, 1
    %p113 = scmp.eq.s32.totalorder %s12, 1
    %p114 = scmp.ne.s32.totalorder %s109, %s111
    %p115 = scmp.eq.s32.totalorder %s12, 0
    %p116 = por %p114, %p115
    %p117 = scmp.ne.s32.totalorder %s109, %s111
    %p118 = scmp.eq.s32.totalorder %s17, 1
    %p119 = por %p117, %p118
    %p120 = scmp.ne.s32.totalorder %s111, %s112
    %p121 = scmp.eq.s32.totalorder %s17, 0
    %p122 = por %p120, %p121
    %p123 = scmp.ne.s32.totalorder %s111, %s112
    %p124 = scmp.eq.s32.totalorder %s18, 1
    %p125 = por %p123, %p124
    %p127 = scmp.ne.s32.totalorder %s112, %s126
    %p128 = scmp.eq.s32.totalorder %s18, 0
    %p129 = por %p127, %p128
    %s131 = sadd.s32 %s130, 1
    %p134 = scmp.eq.s32.totalorder %s12, 1
    %p135 = scmp.ne.s32.totalorder %s130, %s132
    %p136 = scmp.eq.s32.totalorder %s12, 0
    %p137 = por %p135, %p136
    %p138 = scmp.ne.s32.totalorder %s130, %s132
    %p139 = scmp.eq.s32.totalorder %s17, 1
    %p140 = por %p138, %p139
    %p141 = scmp.ne.s32.totalorder %s132, %s133
    %p142 = scmp.eq.s32.totalorder %s17, 0
    %p143 = por %p141, %p142
    %p144 = scmp.ne.s32.totalorder %s132, %s133
    %p145 = scmp.eq.s32.totalorder %s18, 1
    %p146 = por %p144, %p145
    %p148 = scmp.ne.s32.totalorder %s133, %s147
    %p149 = scmp.eq.s32.totalorder %s18, 0
    %p150 = por %p148, %p149
    %s151 = ssub.s32 %s12, %s19
    %p152 = scmp.eq.s32.totalorder %s151, 0
    %s154 = sadd.s32 %s153, 1
    %s155 = scalar_select %p152, %s153, %s154
    %p158 = pneg %p152
    %p159 = scmp.eq.s32.totalorder %s12, 1
    %p160 = por %p158, %p159
    %p161 = scmp.ne.s32.totalorder %s153, %s156
    %p162 = scmp.eq.s32.totalorder %s12, 0
    %p163 = por %p161, %p162
    %p164 = scmp.ne.s32.totalorder %s153, %s156
    %p165 = scmp.eq.s32.totalorder %s17, 1
    %p166 = por %p164, %p165
    %p167 = scmp.ne.s32.totalorder %s156, %s157
    %p168 = scmp.eq.s32.totalorder %s17, 0
    %p169 = por %p167, %p168
    %p170 = scmp.ne.s32.totalorder %s156, %s157
    %p171 = scmp.eq.s32.totalorder %s18, 1
    %p172 = por %p170, %p171
    %p174 = scmp.ne.s32.totalorder %s157, %s173
    %p175 = scmp.eq.s32.totalorder %s18, 0
    %p176 = por %p174, %p175
    %p177 = scmp.le.s32.totalorder 1, %s12
    %p178 = scmp.lt.s32.totalorder %s12, 3
    %p179 = pnand %p177, %p178
    %p180 = pneg %p179
    // Predicated region
    $region9: #{vit_forward.8} parent=5 // pred_check
      _
    $region10: #{vit_forward.8} parent=5 // pred_check_branch
      %182 = sbr.rel (%p179) target = $region12
    $region11: #{vit_forward.8} parent=5 // pred_region
      %s183 = ssub.s32 %s12, 1
      // Predicated region
      $region13: #{vit_forward.8} parent=11 // pred_check
        %p184 = pneg %p59
      $region14: #{vit_forward.8} parent=11 // pred_check_branch
        %186 = sbr.rel (%p184) target = $region16
      $region15: #{vit_forward.8} parent=11 // pred_region
        _
      $region16: #{vit_forward.8} parent=11 // pred_fallthru
        _
      // Predicated region
      $region17: #{vit_forward.8} parent=11 // pred_check
        %p187 = pneg %p80
      $region18: #{vit_forward.8} parent=11 // pred_check_branch
        %189 = sbr.rel (%p187) target = $region20
      $region19: #{vit_forward.8} parent=11 // pred_region
        _
      $region20: #{vit_forward.8} parent=11 // pred_fallthru
        _
      // Predicated region
      $region21: #{vit_forward.8} parent=11 // pred_check
        %p190 = pneg %p101
      $region22: #{vit_forward.8} parent=11 // pred_check_branch
        %192 = sbr.rel (%p190) target = $region24
      $region23: #{vit_forward.8} parent=11 // pred_region
        _
      $region24: #{vit_forward.8} parent=11 // pred_fallthru
        _
      // Predicated region
      $region25: #{vit_forward.8} parent=11 // pred_check
        %p193 = pneg %p122
      $region26: #{vit_forward.8} parent=11 // pred_check_branch
        %195 = sbr.rel (%p193) target = $region28
      $region27: #{vit_forward.8} parent=11 // pred_region
        _
      $region28: #{vit_forward.8} parent=11 // pred_fallthru
        _
      // Predicated region
      $region29: #{vit_forward.8} parent=11 // pred_check
        %p196 = pneg %p143
      $region30: #{vit_forward.8} parent=11 // pred_check_branch
        %198 = sbr.rel (%p196) target = $region32
      $region31: #{vit_forward.8} parent=11 // pred_region
        _
      $region32: #{vit_forward.8} parent=11 // pred_fallthru
        _
    $region12: #{vit_forward.8} parent=5 // pred_fallthru
      _
    %p199 = scmp.lt.s32.totalorder %s12, 2
    // Predicated region
    $region33: #{vit_forward.8} parent=5 // pred_check
      %p200 = pneg %p199
    $region34: #{vit_forward.8} parent=5 // pred_check_branch
      %202 = sbr.rel (%p200) target = $region36
    $region35: #{vit_forward.8} parent=5 // pred_region
      // Predicated region
      $region37: #{vit_forward.8} parent=35 // pred_check
        %p203 = pneg %p32
      $region38: #{vit_forward.8} parent=35 // pred_check_branch
        %205 = sbr.rel (%p203) target = $region40
      $region39: #{vit_forward.8} parent=35 // pred_region
        %p206 = scmp.lt.s32.totalorder %s12, 1
        %s207 = scalar_select %p206, %s12, 1
        %s208 = smul.addr %s207, 3
        %s209 = smul.addr %s208, 8
        %s210 = scalar_lea.vmem %s0, %s209
      $region40: #{vit_forward.8} parent=35 // pred_fallthru
        _
    $region36: #{vit_forward.8} parent=5 // pred_fallthru
      _
    %p211 = scmp.le.s32.totalorder 1, %s12
    %p212 = scmp.lt.s32.totalorder %s12, 3
    %p213 = pnand %p211, %p212
    %p214 = pneg %p213
    // Predicated region
    $region41: #{vit_forward.8} parent=5 // pred_check
      _
    $region42: #{vit_forward.8} parent=5 // pred_check_branch
      %216 = sbr.rel (%p213) target = $region44
    $region43: #{vit_forward.8} parent=5 // pred_region
      %s217 = ssub.s32 %s12, 1
      %p218 = scmp.lt.s32.totalorder %s17, 1
      %s219 = scalar_select %p218, %s17, 1
      %s220 = smul.addr %s219, 3
      %s221 = smul.addr %s220, 8
      %s222 = scalar_lea.vmem %s0, %s221
      %p223 = pneg %p38
      %p224 = pneg %p35
      %p225 = pneg %p59
      %p226 = pneg %p56
      %p227 = pneg %p80
      %p228 = pneg %p77
      %p229 = pneg %p101
      %p230 = pneg %p98
      %p231 = pneg %p122
      %p232 = pneg %p119
      %p233 = pneg %p143
      %p234 = pneg %p140
      %p235 = pneg %p169
      %p236 = pneg %p166
      %p237 = scmp.lt.s32.totalorder %s17, 1
      %s238 = scalar_select %p237, %s17, 1
      %s239 = smul.addr %s238, 3
      %s240 = smul.addr %s239, 8
      %s241 = scalar_lea.vmem %s6, %s240
      %p242 = scmp.lt.s32.totalorder %s17, 1
      %s243 = scalar_select %p242, %s17, 1
      %s244 = smul.addr %s243, 3
      %s245 = smul.addr %s244, 8
      %s246 = scalar_lea.vmem %s0, %s245
      %p247 = scmp.lt.s32.totalorder %s17, 1
      %s248 = scalar_select %p247, %s17, 1
      %s249 = smul.addr %s248, 3
      %s250 = smul.addr %s249, 8
      %s251 = scalar_lea.vmem %s6, %s250
      %v252 = vld [vmem:[%s246] sm:$0xff]
      %v253 = vld [vmem:[%s246 + $0x8] sm:$0xff]
      %v254 = vld [vmem:[%s246 + $0x10] sm:$0x1]
      %v255 = vld [vmem:[%s1] sm:$0x1]
      %v256 = vld [vmem:[%s2] sm:$0x1]
      %vm257 = vcmask 261120
      %v258 = vsel %vm257, %v252, 0.0
      %259 = vadd.xlane.f32.xlu0 %v258
      %v260 = vpop.xlane.xlu0 %259
      %v261 = vsel %vm257, %v253, 0.0
      %262 = vadd.xlane.f32.xlu0 %v261
      %v263 = vpop.xlane.xlu0 %262
      %vm264 = vcmask 253952
      %v265 = vsel %vm264, %v254, 0.0
      %266 = vadd.xlane.f32.xlu0 %v265
      %v267 = vpop.xlane.xlu0 %266
      %v268 = vrcp.pop 32.0
      %v269 = vmul.f32 %v260, %v268
      %v270 = vmul.f32 %v263, %v268
      %v271 = vmul.f32 %v267, %v268
      %v272 = vsub.f32 %v252, %v269
      %v273 = vsub.f32 %v253, %v270
      %v274 = vsub.f32 %v254, %v271
      %v275 = vmul.f32 %v272, %v272
      %v276 = vmul.f32 %v273, %v273
      %v277 = vmul.f32 %v274, %v274
      %v278 = vsel %vm257, %v275, 0.0
      %279 = vadd.xlane.f32.xlu0 %v278
      %v280 = vpop.xlane.xlu0 %279
      %v281 = vsel %vm257, %v276, 0.0
      %282 = vadd.xlane.f32.xlu0 %v281
      %v283 = vpop.xlane.xlu0 %282
      %v284 = vsel %vm264, %v277, 0.0
      %285 = vadd.xlane.f32.xlu0 %v284
      %v286 = vpop.xlane.xlu0 %285
      %v287 = vmul.f32 %v280, %v268
      %v288 = vmul.f32 %v283, %v268
      %v289 = vmul.f32 %v286, %v268
      %v290 = vadd.f32 %v287, 1e-05
      %v291 = vadd.f32 %v288, 1e-05
      %v292 = vadd.f32 %v289, 1e-05
      %v293 = vrsqrt.pop %v290
      %v294 = vrsqrt.pop %v291
      %v295 = vrsqrt.pop %v292
      %v296 = vmul.f32 %v272, %v293
      %v297 = vmul.f32 %v273, %v294
      %v298 = vmul.f32 %v274, %v295
      %v300 = vlaneseq
      %v301 = vshrl.u32 %v300, 7
      %v302 = vsub.s32 0, %v301
      %v303 = vrot.slane %v255, %v302
      %v305 = vmul.f32 %v296, %v303
      %v306 = vmul.f32 %v297, %v303
      %v307 = vmul.f32 %v298, %v303
      %v309 = vlaneseq
      %v310 = vshrl.u32 %v309, 7
      %v311 = vsub.s32 0, %v310
      %v312 = vrot.slane %v256, %v311
      %v314 = vadd.f32 %v305, %v312
      %v315 = vadd.f32 %v306, %v312
      %v316 = vadd.f32 %v307, %v312
      %v317 = vld [vmem:[%s3] sm:$0xff]
      %v318 = vld [vmem:[%s3 + $0x8] sm:$0xff]
      %v319 = vld [vmem:[%s3 + $0x10] sm:$0xff]
      %v320 = vld [vmem:[%s3 + $0x18] sm:$0xff]
      %v322 = vsel %vm257, %v314, 0
      %v325 = vsel %vm257, %v315, 0
      %v328 = vsel %vm257, %v316, 0
      %330 = vmatprep.subr.mxu0 0.0
      %331 = vmatpush1.msra.mxu0 %v317
      %332 = vmatprep.subr.mxu0 0.0
      %333 = vmatpush1.msra.mxu0 %v318
      %334 = vmatprep.subr.mxu0 0.0
      %335 = vmatpush1.msra.mxu0 %v319
      %336 = vmatprep.subr.mxu0 0.0
      %337 = vmatpush1.msra.mxu0 %v320
      %338 = vmatprep.subr.mxu0 0.0
      %339 = vmatpush1.msra.mxu0 0.0
      %340 = vmatprep.subr.mxu0 0.0
      %341 = vmatpush1.msra.mxu0 0.0
      %342 = vmatprep.subr.mxu0 0.0
      %343 = vmatpush1.msra.mxu0 0.0
      %344 = vmatprep.subr.mxu0 0.0
      %345 = vmatpush1.msra.mxu0 0.0
      %346 = vmatprep.subr.mxu0 0.0
      %347 = vmatpush1.msra.mxu0 0.0
      %348 = vmatprep.subr.mxu0 0.0
      %349 = vmatpush1.msra.mxu0 0.0
      %350 = vmatprep.subr.mxu0 0.0
      %351 = vmatpush1.msra.mxu0 0.0
      %352 = vmatprep.subr.mxu0 0.0
      %353 = vmatpush1.msra.mxu0 0.0
      %354 = vmatprep.subr.mxu0 0.0
      %355 = vmatpush1.msra.mxu0 0.0
      %356 = vmatprep.subr.mxu0 0.0
      %357 = vmatpush1.msra.mxu0 0.0
      %358 = vmatprep.subr.mxu0 0.0
      %359 = vmatpush1.msra.mxu0 0.0
      %360 = vmatprep.subr.mxu0 0.0
      %361 = vmatpush1.msra.mxu0 0.0
      %362 = vmatprep.subr.mxu0 0.0
      %363 = vmatpush1.msra.mxu0 0.0
      %364 = vmatprep.subr.mxu0 0.0
      %365 = vmatpush1.msra.mxu0 0.0
      %366 = vmatprep.subr.mxu0 0.0
      %367 = vmatpush1.msra.mxu0 0.0
      %368 = vmatprep.subr.mxu0 0.0
      %369 = vmatpush1.msra.mxu0 0.0
      %370 = vmatprep.subr.mxu0 0.0
      %371 = vmatpush1.msra.mxu0 0.0
      %372 = vmatprep.subr.mxu0 0.0
      %373 = vmatpush1.msra.mxu0 0.0
      %374 = vmatprep.subr.mxu0 0.0
      %375 = vmatpush1.msra.mxu0 0.0
      %376 = vmatprep.subr.mxu0 0.0
      %377 = vmatpush1.msra.mxu0 0.0
      %378 = vmatprep.subr.mxu0 0.0
      %379 = vmatpush1.msra.mxu0 0.0
      %380 = vmatprep.subr.mxu0 0.0
      %381 = vmatpush1.msra.mxu0 0.0
      %382 = vmatprep.subr.mxu0 0.0
      %383 = vmatpush1.msra.mxu0 0.0
      %384 = vmatprep.subr.mxu0 0.0
      %385 = vmatpush1.msra.mxu0 0.0
      %386 = vmatprep.subr.mxu0 0.0
      %387 = vmatpush1.msra.mxu0 0.0
      %388 = vmatprep.subr.mxu0 0.0
      %389 = vmatpush1.msra.mxu0 0.0
      %390 = vmatprep.subr.mxu0 0.0
      %391 = vmatpush1.msra.mxu0 0.0
      %392 = vmatprep.subr.mxu0 0.0
      %393 = vmatpush1.msra.mxu0 0.0
      %394 = vmatprep.mubr.f32.mxu0 0.0
      %395 = vmatmul.mubr.f32.gmra.mrb[0].mxu0 %v322
      %v396 = vpop.f32.mrb[0].mxu0
      %v397 = vadd.f32 0.0, %v396
      %v398 = vpop.f32.mrb[0].mxu0
      %399 = vmatprep.mubr.f32.mxu0 0.0
      %400 = vmatmul.mubr.f32.gmra.mrb[0].mxu0 %v325
      %v401 = vpop.f32.mrb[0].mxu0
      %v402 = vadd.f32 0.0, %v401
      %v403 = vpop.f32.mrb[0].mxu0
      %404 = vmatprep.mubr.f32.mxu0 0.0
      %405 = vmatmul.mubr.f32.gmra.mrb[0].mxu0 %v328
      %v406 = vpop.f32.mrb[0].mxu0
      %v407 = vadd.f32 0.0, %v406
      %v408 = vpop.f32.mrb[0].mxu0
      %409 = vdwg.mxu0
      %v410 = vld [vmem:[%s4] sm:$0xff]
      %v411 = vld [vmem:[%s4 + $0x8] sm:$0xff]
      %v412 = vld [vmem:[%s4 + $0x10] sm:$0xff]
      %v413 = vld [vmem:[%s4 + $0x18] sm:$0xff]
      %417 = vrot.lane.b32.xlu0 %v397, 96
      %v418 = vpop.permute.xlu0 %417
      %419 = vrot.lane.b32.xlu0 %v402, 96
      %v420 = vpop.permute.xlu0 %419
      %421 = vrot.lane.b32.xlu0 %v407, 96
      %v422 = vpop.permute.xlu0 %421
      %vm423 = vcmask 64512
      %v424 = vsel %vm423, %v397, 0
      %v426 = vsel %vm423, %v402, 0
      %v428 = vsel %vm423, %v407, 0
      %v430 = vsel %vm423, %v418, 0
      %v432 = vsel %vm423, %v420, 0
      %v434 = vsel %vm423, %v422, 0
      %436 = vmatprep.subr.mxu0 0.0
      %437 = vmatpush1.xpose.msra.mxu0 %v430
      %438 = vmatprep.subr.mxu0 0.0
      %439 = vmatpush1.xpose.msra.mxu0 %v432
      %440 = vmatprep.subr.mxu0 0.0
      %441 = vmatpush1.xpose.msra.mxu0 %v434
      %442 = vmatprep.subr.mxu0 0.0
      %443 = vmatpush1.xpose.msra.mxu0 0.0
      %444 = vmatprep.subr.mxu0 0.0
      %445 = vmatpush1.xpose.msra.mxu0 0.0
      %446 = vmatprep.subr.mxu0 0.0
      %447 = vmatpush1.xpose.msra.mxu0 0.0
      %448 = vmatprep.subr.mxu0 0.0
      %449 = vmatpush1.xpose.msra.mxu0 0.0
      %450 = vmatprep.subr.mxu0 0.0
      %451 = vmatpush1.xpose.msra.mxu0 0.0
      %452 = vmatprep.subr.mxu0 0.0
      %453 = vmatpush1.xpose.msra.mxu0 0.0
      %454 = vmatprep.subr.mxu0 0.0
      %455 = vmatpush1.xpose.msra.mxu0 0.0
      %456 = vmatprep.subr.mxu0 0.0
      %457 = vmatpush1.xpose.msra.mxu0 0.0
      %458 = vmatprep.subr.mxu0 0.0
      %459 = vmatpush1.xpose.msra.mxu0 0.0
      %460 = vmatprep.subr.mxu0 0.0
      %461 = vmatpush1.xpose.msra.mxu0 0.0
      %462 = vmatprep.subr.mxu0 0.0
      %463 = vmatpush1.xpose.msra.mxu0 0.0
      %464 = vmatprep.subr.mxu0 0.0
      %465 = vmatpush1.xpose.msra.mxu0 0.0
      %466 = vmatprep.subr.mxu0 0.0
      %467 = vmatpush1.xpose.msra.mxu0 0.0
      %468 = vmatprep.subr.mxu0 0.0
      %469 = vmatpush1.xpose.msra.mxu0 0.0
      %470 = vmatprep.subr.mxu0 0.0
      %471 = vmatpush1.xpose.msra.mxu0 0.0
      %472 = vmatprep.subr.mxu0 0.0
      %473 = vmatpush1.xpose.msra.mxu0 0.0
      %474 = vmatprep.subr.mxu0 0.0
      %475 = vmatpush1.xpose.msra.mxu0 0.0
      %476 = vmatprep.subr.mxu0 0.0
      %477 = vmatpush1.xpose.msra.mxu0 0.0
      %478 = vmatprep.subr.mxu0 0.0
      %479 = vmatpush1.xpose.msra.mxu0 0.0
      %480 = vmatprep.subr.mxu0 0.0
      %481 = vmatpush1.xpose.msra.mxu0 0.0
      %482 = vmatprep.subr.mxu0 0.0
      %483 = vmatpush1.xpose.msra.mxu0 0.0
      %484 = vmatprep.subr.mxu0 0.0
      %485 = vmatpush1.xpose.msra.mxu0 0.0
      %486 = vmatprep.subr.mxu0 0.0
      %487 = vmatpush1.xpose.msra.mxu0 0.0
      %488 = vmatprep.subr.mxu0 0.0
      %489 = vmatpush1.xpose.msra.mxu0 0.0
      %490 = vmatprep.subr.mxu0 0.0
      %491 = vmatpush1.xpose.msra.mxu0 0.0
      %492 = vmatprep.subr.mxu0 0.0
      %493 = vmatpush1.xpose.msra.mxu0 0.0
      %494 = vmatprep.subr.mxu0 0.0
      %495 = vmatpush1.xpose.msra.mxu0 0.0
      %496 = vmatprep.subr.mxu0 0.0
      %497 = vmatpush1.xpose.msra.mxu0 0.0
      %498 = vmatprep.subr.mxu0 0.0
      %499 = vmatpush1.xpose.msra.mxu0 0.0
      %500 = vmatprep.mubr.f32.mxu0 0.0
      %501 = vmatmul.mubr.f32.gmra.mrb[0].mxu0 %v424
      %v502 = vpop.f32.mrb[0].mxu0
      %v503 = vadd.f32 0.0, %v502
      %v504 = vpop.f32.mrb[0].mxu0
      %505 = vmatprep.mubr.f32.mxu0 0.0
      %506 = vmatmul.mubr.f32.gmra.mrb[0].mxu0 %v426
      %v507 = vpop.f32.mrb[0].mxu0
      %v508 = vadd.f32 0.0, %v507
      %v509 = vpop.f32.mrb[0].mxu0
      %510 = vmatprep.mubr.f32.mxu0 0.0
      %511 = vmatmul.mubr.f32.gmra.mrb[0].mxu0 %v428
      %v512 = vpop.f32.mrb[0].mxu0
      %v513 = vadd.f32 0.0, %v512
      %v514 = vpop.f32.mrb[0].mxu0
      %515 = vdwg.mxu0
      %v516 = vmul.f32 %v503, 0.17677669
      %v517 = vmul.f32 %v508, 0.17677669
      %v518 = vmul.f32 %v513, 0.17677669
      %vm519 = vcmask 138240
      %v520 = vsel %vm519, %v516, -inf
      %521 = vmax.xlane.f32.xlu0 %v520
      %v522 = vpop.xlane.xlu0 %521
      %v523 = vsel %vm519, %v517, -inf
      %524 = vmax.xlane.f32.xlu0 %v523
      %v525 = vpop.xlane.xlu0 %524
      %vm526 = vcmask 131072
      %v527 = vsel %vm526, %v518, -inf
      %528 = vmax.xlane.f32.xlu0 %v527
      %v529 = vpop.xlane.xlu0 %528
      %v530 = vsub.f32 %v516, %v522
      %v531 = vsub.f32 %v517, %v525
      %v532 = vsub.f32 %v518, %v529
      %v533 = vmul.f32 %v530, 1.442695
      %v534 = vpow.pop %v533
      %v535 = vmul.f32 %v531, 1.442695
      %v536 = vpow.pop %v535
      %v537 = vmul.f32 %v532, 1.442695
      %v538 = vpow.pop %v537
      %v539 = vsel %vm519, %v534, 0.0
      %540 = vadd.xlane.f32.xlu0 %v539
      %v541 = vpop.xlane.xlu0 %540
      %v542 = vsel %vm519, %v536, 0.0
      %543 = vadd.xlane.f32.xlu0 %v542
      %v544 = vpop.xlane.xlu0 %543
      %v545 = vsel %vm526, %v538, 0.0
      %546 = vadd.xlane.f32.xlu0 %v545
      %v547 = vpop.xlane.xlu0 %546
      %v548 = vrcp.pop %v541
      %v549 = vrcp.pop %v544
      %v550 = vrcp.pop %v547
      %v551 = vmul.f32 %v534, %v548
      %v552 = vmul.f32 %v536, %v549
      %v553 = vmul.f32 %v538, %v550
      %554 = vrot.lane.b32.xlu0 %v397, 64
      %v555 = vpop.permute.xlu0 %554
      %556 = vrot.lane.b32.xlu0 %v402, 64
      %v557 = vpop.permute.xlu0 %556
      %558 = vrot.lane.b32.xlu0 %v407, 64
      %v559 = vpop.permute.xlu0 %558
      %v563 = vsel %vm519, %v551, 0
      %v566 = vsel %vm519, %v552, 0
      %v569 = vsel %vm519, %v553, 0
      %vm571 = vcmask 1040384
      %v572 = vsel %vm571, %v559, 0
      %574 = vmatprep.subr.mxu0 0.0
      %575 = vmatpush1.msra.mxu0 %v555
      %576 = vmatprep.subr.mxu0 0.0
      %577 = vmatpush1.msra.mxu0 %v557
      %578 = vmatprep.subr.mxu0 0.0
      %579 = vmatpush1.msra.mxu0 %v572
      %580 = vmatprep.subr.mxu0 0.0
      %581 = vmatpush1.msra.mxu0 0.0
      %582 = vmatprep.subr.mxu0 0.0
      %583 = vmatpush1.msra.mxu0 0.0
      %584 = vmatprep.subr.mxu0 0.0
      %585 = vmatpush1.msra.mxu0 0.0
      %586 = vmatprep.subr.mxu0 0.0
      %587 = vmatpush1.msra.mxu0 0.0
      %588 = vmatprep.subr.mxu0 0.0
      %589 = vmatpush1.msra.mxu0 0.0
      %590 = vmatprep.subr.mxu0 0.0
      %591 = vmatpush1.msra.mxu0 0.0
      %592 = vmatprep.subr.mxu0 0.0
      %593 = vmatpush1.msra.mxu0 0.0
      %594 = vmatprep.subr.mxu0 0.0
      %595 = vmatpush1.msra.mxu0 0.0
      %596 = vmatprep.subr.mxu0 0.0
      %597 = vmatpush1.msra.mxu0 0.0
      %598 = vmatprep.subr.mxu0 0.0
      %599 = vmatpush1.msra.mxu0 0.0
      %600 = vmatprep.subr.mxu0 0.0
      %601 = vmatpush1.msra.mxu0 0.0
      %602 = vmatprep.subr.mxu0 0.0
      %603 = vmatpush1.msra.mxu0 0.0
      %604 = vmatprep.subr.mxu0 0.0
      %605 = vmatpush1.msra.mxu0 0.0
      %606 = vmatprep.subr.mxu0 0.0
      %607 = vmatpush1.msra.mxu0 0.0
      %608 = vmatprep.subr.mxu0 0.0
      %609 = vmatpush1.msra.mxu0 0.0
      %610 = vmatprep.subr.mxu0 0.0
      %611 = vmatpush1.msra.mxu0 0.0
      %612 = vmatprep.subr.mxu0 0.0
      %613 = vmatpush1.msra.mxu0 0.0
      %614 = vmatprep.subr.mxu0 0.0
      %615 = vmatpush1.msra.mxu0 0.0
      %616 = vmatprep.subr.mxu0 0.0
      %617 = vmatpush1.msra.mxu0 0.0
      %618 = vmatprep.subr.mxu0 0.0
      %619 = vmatpush1.msra.mxu0 0.0
      %620 = vmatprep.subr.mxu0 0.0
      %621 = vmatpush1.msra.mxu0 0.0
      %622 = vmatprep.subr.mxu0 0.0
      %623 = vmatpush1.msra.mxu0 0.0
      %624 = vmatprep.subr.mxu0 0.0
      %625 = vmatpush1.msra.mxu0 0.0
      %626 = vmatprep.subr.mxu0 0.0
      %627 = vmatpush1.msra.mxu0 0.0
      %628 = vmatprep.subr.mxu0 0.0
      %629 = vmatpush1.msra.mxu0 0.0
      %630 = vmatprep.subr.mxu0 0.0
      %631 = vmatpush1.msra.mxu0 0.0
      %632 = vmatprep.subr.mxu0 0.0
      %633 = vmatpush1.msra.mxu0 0.0
      %634 = vmatprep.subr.mxu0 0.0
      %635 = vmatpush1.msra.mxu0 0.0
      %636 = vmatprep.subr.mxu0 0.0
      %637 = vmatpush1.msra.mxu0 0.0
      %638 = vmatprep.mubr.f32.mxu0 0.0
      %639 = vmatmul.mubr.f32.gmra.mrb[0].mxu0 %v563
      %v640 = vpop.f32.mrb[0].mxu0
      %v641 = vadd.f32 0.0, %v640
      %v642 = vpop.f32.mrb[0].mxu0
      %643 = vmatprep.mubr.f32.mxu0 0.0
      %644 = vmatmul.mubr.f32.gmra.mrb[0].mxu0 %v566
      %v645 = vpop.f32.mrb[0].mxu0
      %v646 = vadd.f32 0.0, %v645
      %v647 = vpop.f32.mrb[0].mxu0
      %648 = vmatprep.mubr.f32.mxu0 0.0
      %649 = vmatmul.mubr.f32.gmra.mrb[0].mxu0 %v569
      %v650 = vpop.f32.mrb[0].mxu0
      %v651 = vadd.f32 0.0, %v650
      %v652 = vpop.f32.mrb[0].mxu0
      %653 = vdwg.mxu0
      %654 = vrot.lane.b32.xlu0 %v397, 120
      %v655 = vpop.permute.xlu0 %654
      %656 = vrot.lane.b32.xlu0 %v402, 120
      %v657 = vpop.permute.xlu0 %656
      %658 = vrot.lane.b32.xlu0 %v407, 120
      %v659 = vpop.permute.xlu0 %658
      %660 = vrot.lane.b32.xlu0 %v397, 88
      %v661 = vpop.permute.xlu0 %660
      %662 = vrot.lane.b32.xlu0 %v402, 88
      %v663 = vpop.permute.xlu0 %662
      %664 = vrot.lane.b32.xlu0 %v407, 88
      %v665 = vpop.permute.xlu0 %664
      %v666 = vsel %vm423, %v655, 0
      %v668 = vsel %vm423, %v657, 0
      %v670 = vsel %vm423, %v659, 0
      %v672 = vsel %vm423, %v661, 0
      %v674 = vsel %vm423, %v663, 0
      %v676 = vsel %vm423, %v665, 0
      %678 = vmatprep.subr.mxu0 0.0
      %679 = vmatpush1.xpose.msra.mxu0 %v672
      %680 = vmatprep.subr.mxu0 0.0
      %681 = vmatpush1.xpose.msra.mxu0 %v674
      %682 = vmatprep.subr.mxu0 0.0
      %683 = vmatpush1.xpose.msra.mxu0 %v676
      %684 = vmatprep.subr.mxu0 0.0
      %685 = vmatpush1.xpose.msra.mxu0 0.0
      %686 = vmatprep.subr.mxu0 0.0
      %687 = vmatpush1.xpose.msra.mxu0 0.0
      %688 = vmatprep.subr.mxu0 0.0
      %689 = vmatpush1.xpose.msra.mxu0 0.0
      %690 = vmatprep.subr.mxu0 0.0
      %691 = vmatpush1.xpose.msra.mxu0 0.0
      %692 = vmatprep.subr.mxu0 0.0
      %693 = vmatpush1.xpose.msra.mxu0 0.0
      %694 = vmatprep.subr.mxu0 0.0
      %695 = vmatpush1.xpose.msra.mxu0 0.0
      %696 = vmatprep.subr.mxu0 0.0
      %697 = vmatpush1.xpose.msra.mxu0 0.0
      %698 = vmatprep.subr.mxu0 0.0
      %699 = vmatpush1.xpose.msra.mxu0 0.0
      %700 = vmatprep.subr.mxu0 0.0
      %701 = vmatpush1.xpose.msra.mxu0 0.0
      %702 = vmatprep.subr.mxu0 0.0
      %703 = vmatpush1.xpose.msra.mxu0 0.0
      %704 = vmatprep.subr.mxu0 0.0
      %705 = vmatpush1.xpose.msra.mxu0 0.0
      %706 = vmatprep.subr.mxu0 0.0
      %707 = vmatpush1.xpose.msra.mxu0 0.0
      %708 = vmatprep.subr.mxu0 0.0
      %709 = vmatpush1.xpose.msra.mxu0 0.0
      %710 = vmatprep.subr.mxu0 0.0
      %711 = vmatpush1.xpose.msra.mxu0 0.0
      %712 = vmatprep.subr.mxu0 0.0
      %713 = vmatpush1.xpose.msra.mxu0 0.0
      %714 = vmatprep.subr.mxu0 0.0
      %715 = vmatpush1.xpose.msra.mxu0 0.0
      %716 = vmatprep.subr.mxu0 0.0
      %717 = vmatpush1.xpose.msra.mxu0 0.0
      %718 = vmatprep.subr.mxu0 0.0
      %719 = vmatpush1.xpose.msra.mxu0 0.0
      %720 = vmatprep.subr.mxu0 0.0
      %721 = vmatpush1.xpose.msra.mxu0 0.0
      %722 = vmatprep.subr.mxu0 0.0
      %723 = vmatpush1.xpose.msra.mxu0 0.0
      %724 = vmatprep.subr.mxu0 0.0
      %725 = vmatpush1.xpose.msra.mxu0 0.0
      %726 = vmatprep.subr.mxu0 0.0
      %727 = vmatpush1.xpose.msra.mxu0 0.0
      %728 = vmatprep.subr.mxu0 0.0
      %729 = vmatpush1.xpose.msra.mxu0 0.0
      %730 = vmatprep.subr.mxu0 0.0
      %731 = vmatpush1.xpose.msra.mxu0 0.0
      %732 = vmatprep.subr.mxu0 0.0
      %733 = vmatpush1.xpose.msra.mxu0 0.0
      %734 = vmatprep.subr.mxu0 0.0
      %735 = vmatpush1.xpose.msra.mxu0 0.0
      %736 = vmatprep.subr.mxu0 0.0
      %737 = vmatpush1.xpose.msra.mxu0 0.0
      %738 = vmatprep.subr.mxu0 0.0
      %739 = vmatpush1.xpose.msra.mxu0 0.0
      %740 = vmatprep.subr.mxu0 0.0
      %741 = vmatpush1.xpose.msra.mxu0 0.0
      %742 = vmatprep.mubr.f32.mxu0 0.0
      %743 = vmatmul.mubr.f32.gmra.mrb[0].mxu0 %v666
      %v744 = vpop.f32.mrb[0].mxu0
      %v745 = vadd.f32 0.0, %v744
      %v746 = vpop.f32.mrb[0].mxu0
      %747 = vmatprep.mubr.f32.mxu0 0.0
      %748 = vmatmul.mubr.f32.gmra.mrb[0].mxu0 %v668
      %v749 = vpop.f32.mrb[0].mxu0
      %v750 = vadd.f32 0.0, %v749
      %v751 = vpop.f32.mrb[0].mxu0
      %752 = vmatprep.mubr.f32.mxu0 0.0
      %753 = vmatmul.mubr.f32.gmra.mrb[0].mxu0 %v670
      %v754 = vpop.f32.mrb[0].mxu0
      %v755 = vadd.f32 0.0, %v754
      %v756 = vpop.f32.mrb[0].mxu0
      %757 = vdwg.mxu0
      %v758 = vmul.f32 %v745, 0.17677669
      %v759 = vmul.f32 %v750, 0.17677669
      %v760 = vmul.f32 %v755, 0.17677669
      %v761 = vsel %vm519, %v758, -inf
      %762 = vmax.xlane.f32.xlu0 %v761
      %v763 = vpop.xlane.xlu0 %762
      %v764 = vsel %vm519, %v759, -inf
      %765 = vmax.xlane.f32.xlu0 %v764
      %v766 = vpop.xlane.xlu0 %765
      %v767 = vsel %vm526, %v760, -inf
      %768 = vmax.xlane.f32.xlu0 %v767
      %v769 = vpop.xlane.xlu0 %768
      %v770 = vsub.f32 %v758, %v763
      %v771 = vsub.f32 %v759, %v766
      %v772 = vsub.f32 %v760, %v769
      %v773 = vmul.f32 %v770, 1.442695
      %v774 = vpow.pop %v773
      %v775 = vmul.f32 %v771, 1.442695
      %v776 = vpow.pop %v775
      %v777 = vmul.f32 %v772, 1.442695
      %v778 = vpow.pop %v777
      %v779 = vsel %vm519, %v774, 0.0
      %780 = vadd.xlane.f32.xlu0 %v779
      %v781 = vpop.xlane.xlu0 %780
      %v782 = vsel %vm519, %v776, 0.0
      %783 = vadd.xlane.f32.xlu0 %v782
      %v784 = vpop.xlane.xlu0 %783
      %v785 = vsel %vm526, %v778, 0.0
      %786 = vadd.xlane.f32.xlu0 %v785
      %v787 = vpop.xlane.xlu0 %786
      %v788 = vrcp.pop %v781
      %v789 = vrcp.pop %v784
      %v790 = vrcp.pop %v787
      %v791 = vmul.f32 %v774, %v788
      %v792 = vmul.f32 %v776, %v789
      %v793 = vmul.f32 %v778, %v790
      %794 = vrot.lane.b32.xlu0 %v397, 56
      %v795 = vpop.permute.xlu0 %794
      %796 = vrot.lane.b32.xlu0 %v402, 56
      %v797 = vpop.permute.xlu0 %796
      %798 = vrot.lane.b32.xlu0 %v407, 56
      %v799 = vpop.permute.xlu0 %798
      %v803 = vsel %vm519, %v791, 0
      %v806 = vsel %vm519, %v792, 0
      %v809 = vsel %vm519, %v793, 0
      %v811 = vsel %vm571, %v799, 0
      %813 = vmatprep.subr.mxu0 0.0
      %814 = vmatpush1.msra.mxu0 %v795
      %815 = vmatprep.subr.mxu0 0.0
      %816 = vmatpush1.msra.mxu0 %v797
      %817 = vmatprep.subr.mxu0 0.0
      %818 = vmatpush1.msra.mxu0 %v811
      %819 = vmatprep.subr.mxu0 0.0
      %820 = vmatpush1.msra.mxu0 0.0
      %821 = vmatprep.subr.mxu0 0.0
      %822 = vmatpush1.msra.mxu0 0.0
      %823 = vmatprep.subr.mxu0 0.0
      %824 = vmatpush1.msra.mxu0 0.0
      %825 = vmatprep.subr.mxu0 0.0
      %826 = vmatpush1.msra.mxu0 0.0
      %827 = vmatprep.subr.mxu0 0.0
      %828 = vmatpush1.msra.mxu0 0.0
      %829 = vmatprep.subr.mxu0 0.0
      %830 = vmatpush1.msra.mxu0 0.0
      %831 = vmatprep.subr.mxu0 0.0
      %832 = vmatpush1.msra.mxu0 0.0
      %833 = vmatprep.subr.mxu0 0.0
      %834 = vmatpush1.msra.mxu0 0.0
      %835 = vmatprep.subr.mxu0 0.0
      %836 = vmatpush1.msra.mxu0 0.0
      %837 = vmatprep.subr.mxu0 0.0
      %838 = vmatpush1.msra.mxu0 0.0
      %839 = vmatprep.subr.mxu0 0.0
      %840 = vmatpush1.msra.mxu0 0.0
      %841 = vmatprep.subr.mxu0 0.0
      %842 = vmatpush1.msra.mxu0 0.0
      %843 = vmatprep.subr.mxu0 0.0
      %844 = vmatpush1.msra.mxu0 0.0
      %845 = vmatprep.subr.mxu0 0.0
      %846 = vmatpush1.msra.mxu0 0.0
      %847 = vmatprep.subr.mxu0 0.0
      %848 = vmatpush1.msra.mxu0 0.0
      %849 = vmatprep.subr.mxu0 0.0
      %850 = vmatpush1.msra.mxu0 0.0
      %851 = vmatprep.subr.mxu0 0.0
      %852 = vmatpush1.msra.mxu0 0.0
      %853 = vmatprep.subr.mxu0 0.0
      %854 = vmatpush1.msra.mxu0 0.0
      %855 = vmatprep.subr.mxu0 0.0
      %856 = vmatpush1.msra.mxu0 0.0
      %857 = vmatprep.subr.mxu0 0.0
      %858 = vmatpush1.msra.mxu0 0.0
      %859 = vmatprep.subr.mxu0 0.0
      %860 = vmatpush1.msra.mxu0 0.0
      %861 = vmatprep.subr.mxu0 0.0
      %862 = vmatpush1.msra.mxu0 0.0
      %863 = vmatprep.subr.mxu0 0.0
      %864 = vmatpush1.msra.mxu0 0.0
      %865 = vmatprep.subr.mxu0 0.0
      %866 = vmatpush1.msra.mxu0 0.0
      %867 = vmatprep.subr.mxu0 0.0
      %868 = vmatpush1.msra.mxu0 0.0
      %869 = vmatprep.subr.mxu0 0.0
      %870 = vmatpush1.msra.mxu0 0.0
      %871 = vmatprep.subr.mxu0 0.0
      %872 = vmatpush1.msra.mxu0 0.0
      %873 = vmatprep.subr.mxu0 0.0
      %874 = vmatpush1.msra.mxu0 0.0
      %875 = vmatprep.subr.mxu0 0.0
      %876 = vmatpush1.msra.mxu0 0.0
      %877 = vmatprep.mubr.f32.mxu0 0.0
      %878 = vmatmul.mubr.f32.gmra.mrb[0].mxu0 %v803
      %v879 = vpop.f32.mrb[0].mxu0
      %v880 = vadd.f32 0.0, %v879
      %v881 = vpop.f32.mrb[0].mxu0
      %882 = vmatprep.mubr.f32.mxu0 0.0
      %883 = vmatmul.mubr.f32.gmra.mrb[0].mxu0 %v806
      %v884 = vpop.f32.mrb[0].mxu0
      %v885 = vadd.f32 0.0, %v884
      %v886 = vpop.f32.mrb[0].mxu0
      %887 = vmatprep.mubr.f32.mxu0 0.0
      %888 = vmatmul.mubr.f32.gmra.mrb[0].mxu0 %v809
      %v889 = vpop.f32.mrb[0].mxu0
      %v890 = vadd.f32 0.0, %v889
      %v891 = vpop.f32.mrb[0].mxu0
      %892 = vdwg.mxu0
      %v894 = vsel %vm423, %v880, 0
      %v897 = vsel %vm423, %v885, 0
      %v900 = vsel %vm423, %v890, 0
      %902 = vmatprep.subr.mxu0 0.0
      %903 = vmatpush1.msra.mxu0 %v411
      %904 = vmatprep.subr.mxu0 0.0
      %905 = vmatpush1.msra.mxu0 0.0
      %906 = vmatprep.subr.mxu0 0.0
      %907 = vmatpush1.msra.mxu0 0.0
      %908 = vmatprep.subr.mxu0 0.0
      %909 = vmatpush1.msra.mxu0 0.0
      %910 = vmatprep.subr.mxu0 0.0
      %911 = vmatpush1.msra.mxu0 0.0
      %912 = vmatprep.subr.mxu0 0.0
      %913 = vmatpush1.msra.mxu0 0.0
      %914 = vmatprep.subr.mxu0 0.0
      %915 = vmatpush1.msra.mxu0 0.0
      %916 = vmatprep.subr.mxu0 0.0
      %917 = vmatpush1.msra.mxu0 0.0
      %918 = vmatprep.subr.mxu0 0.0
      %919 = vmatpush1.msra.mxu0 0.0
      %920 = vmatprep.subr.mxu0 0.0
      %921 = vmatpush1.msra.mxu0 0.0
      %922 = vmatprep.subr.mxu0 0.0
      %923 = vmatpush1.msra.mxu0 0.0
      %924 = vmatprep.subr.mxu0 0.0
      %925 = vmatpush1.msra.mxu0 0.0
      %926 = vmatprep.subr.mxu0 0.0
      %927 = vmatpush1.msra.mxu0 0.0
      %928 = vmatprep.subr.mxu0 0.0
      %929 = vmatpush1.msra.mxu0 0.0
      %930 = vmatprep.subr.mxu0 0.0
      %931 = vmatpush1.msra.mxu0 0.0
      %932 = vmatprep.subr.mxu0 0.0
      %933 = vmatpush1.msra.mxu0 0.0
      %934 = vmatprep.subr.mxu0 0.0
      %935 = vmatpush1.msra.mxu0 0.0
      %936 = vmatprep.subr.mxu0 0.0
      %937 = vmatpush1.msra.mxu0 0.0
      %938 = vmatprep.subr.mxu0 0.0
      %939 = vmatpush1.msra.mxu0 0.0
      %940 = vmatprep.subr.mxu0 0.0
      %941 = vmatpush1.msra.mxu0 0.0
      %942 = vmatprep.subr.mxu0 0.0
      %943 = vmatpush1.msra.mxu0 0.0
      %944 = vmatprep.subr.mxu0 0.0
      %945 = vmatpush1.msra.mxu0 0.0
      %946 = vmatprep.subr.mxu0 0.0
      %947 = vmatpush1.msra.mxu0 0.0
      %948 = vmatprep.subr.mxu0 0.0
      %949 = vmatpush1.msra.mxu0 0.0
      %950 = vmatprep.subr.mxu0 0.0
      %951 = vmatpush1.msra.mxu0 0.0
      %952 = vmatprep.subr.mxu0 0.0
      %953 = vmatpush1.msra.mxu0 0.0
      %954 = vmatprep.subr.mxu0 0.0
      %955 = vmatpush1.msra.mxu0 0.0
      %956 = vmatprep.subr.mxu0 0.0
      %957 = vmatpush1.msra.mxu0 0.0
      %958 = vmatprep.subr.mxu0 0.0
      %959 = vmatpush1.msra.mxu0 0.0
      %960 = vmatprep.subr.mxu0 0.0
      %961 = vmatpush1.msra.mxu0 0.0
      %962 = vmatprep.subr.mxu0 0.0
      %963 = vmatpush1.msra.mxu0 0.0
      %964 = vmatprep.subr.mxu0 0.0
      %965 = vmatpush1.msra.mxu0 0.0
      %966 = vmatprep.mubr.f32.mxu0 0.0
      %967 = vmatmul.mubr.f32.gmra.mrb[0].mxu0 %v894
      %v968 = vpop.f32.mrb[0].mxu0
      %v969 = vadd.f32 0.0, %v968
      %v970 = vpop.f32.mrb[0].mxu0
      %971 = vmatprep.mubr.f32.mxu0 0.0
      %972 = vmatmul.mubr.f32.gmra.mrb[0].mxu0 %v897
      %v973 = vpop.f32.mrb[0].mxu0
      %v974 = vadd.f32 0.0, %v973
      %v975 = vpop.f32.mrb[0].mxu0
      %976 = vmatprep.mubr.f32.mxu0 0.0
      %977 = vmatmul.mubr.f32.gmra.mrb[0].mxu0 %v900
      %v978 = vpop.f32.mrb[0].mxu0
      %v979 = vadd.f32 0.0, %v978
      %v980 = vpop.f32.mrb[0].mxu0
      %981 = vdwg.mxu0
      %v983 = vsel %vm423, %v641, 0
      %v986 = vsel %vm423, %v646, 0
      %v989 = vsel %vm423, %v651, 0
      %991 = vmatprep.subr.mxu0 0.0
      %992 = vmatpush1.msra.mxu0 %v410
      %993 = vmatprep.subr.mxu0 0.0
      %994 = vmatpush1.msra.mxu0 0.0
      %995 = vmatprep.subr.mxu0 0.0
      %996 = vmatpush1.msra.mxu0 0.0
      %997 = vmatprep.subr.mxu0 0.0
      %998 = vmatpush1.msra.mxu0 0.0
      %999 = vmatprep.subr.mxu0 0.0
      %1000 = vmatpush1.msra.mxu0 0.0
      %1001 = vmatprep.subr.mxu0 0.0
      %1002 = vmatpush1.msra.mxu0 0.0
      %1003 = vmatprep.subr.mxu0 0.0
      %1004 = vmatpush1.msra.mxu0 0.0
      %1005 = vmatprep.subr.mxu0 0.0
      %1006 = vmatpush1.msra.mxu0 0.0
      %1007 = vmatprep.subr.mxu0 0.0
      %1008 = vmatpush1.msra.mxu0 0.0
      %1009 = vmatprep.subr.mxu0 0.0
      %1010 = vmatpush1.msra.mxu0 0.0
      %1011 = vmatprep.subr.mxu0 0.0
      %1012 = vmatpush1.msra.mxu0 0.0
      %1013 = vmatprep.subr.mxu0 0.0
      %1014 = vmatpush1.msra.mxu0 0.0
      %1015 = vmatprep.subr.mxu0 0.0
      %1016 = vmatpush1.msra.mxu0 0.0
      %1017 = vmatprep.subr.mxu0 0.0
      %1018 = vmatpush1.msra.mxu0 0.0
      %1019 = vmatprep.subr.mxu0 0.0
      %1020 = vmatpush1.msra.mxu0 0.0
      %1021 = vmatprep.subr.mxu0 0.0
      %1022 = vmatpush1.msra.mxu0 0.0
      %1023 = vmatprep.subr.mxu0 0.0
      %1024 = vmatpush1.msra.mxu0 0.0
      %1025 = vmatprep.subr.mxu0 0.0
      %1026 = vmatpush1.msra.mxu0 0.0
      %1027 = vmatprep.subr.mxu0 0.0
      %1028 = vmatpush1.msra.mxu0 0.0
      %1029 = vmatprep.subr.mxu0 0.0
      %1030 = vmatpush1.msra.mxu0 0.0
      %1031 = vmatprep.subr.mxu0 0.0
      %1032 = vmatpush1.msra.mxu0 0.0
      %1033 = vmatprep.subr.mxu0 0.0
      %1034 = vmatpush1.msra.mxu0 0.0
      %1035 = vmatprep.subr.mxu0 0.0
      %1036 = vmatpush1.msra.mxu0 0.0
      %1037 = vmatprep.subr.mxu0 0.0
      %1038 = vmatpush1.msra.mxu0 0.0
      %1039 = vmatprep.subr.mxu0 0.0
      %1040 = vmatpush1.msra.mxu0 0.0
      %1041 = vmatprep.subr.mxu0 0.0
      %1042 = vmatpush1.msra.mxu0 0.0
      %1043 = vmatprep.subr.mxu0 0.0
      %1044 = vmatpush1.msra.mxu0 0.0
      %1045 = vmatprep.subr.mxu0 0.0
      %1046 = vmatpush1.msra.mxu0 0.0
      %1047 = vmatprep.subr.mxu0 0.0
      %1048 = vmatpush1.msra.mxu0 0.0
      %1049 = vmatprep.subr.mxu0 0.0
      %1050 = vmatpush1.msra.mxu0 0.0
      %1051 = vmatprep.subr.mxu0 0.0
      %1052 = vmatpush1.msra.mxu0 0.0
      %1053 = vmatprep.subr.mxu0 0.0
      %1054 = vmatpush1.msra.mxu0 0.0
      %1055 = vmatprep.mubr.f32.mxu0 0.0
      %1056 = vmatmul.mubr.f32.gmra.mrb[0].mxu0 %v983
      %v1057 = vpop.f32.mrb[0].mxu0
      %v1058 = vadd.f32 %v969, %v1057
      %v1059 = vpop.f32.mrb[0].mxu0
      %1060 = vmatprep.mubr.f32.mxu0 0.0
      %1061 = vmatmul.mubr.f32.gmra.mrb[0].mxu0 %v986
      %v1062 = vpop.f32.mrb[0].mxu0
      %v1063 = vadd.f32 %v974, %v1062
      %v1064 = vpop.f32.mrb[0].mxu0
      %1065 = vmatprep.mubr.f32.mxu0 0.0
      %1066 = vmatmul.mubr.f32.gmra.mrb[0].mxu0 %v989
      %v1067 = vpop.f32.mrb[0].mxu0
      %v1068 = vadd.f32 %v979, %v1067
      %v1069 = vpop.f32.mrb[0].mxu0
      %1070 = vdwg.mxu0
      %1071 = vrot.lane.b32.xlu0 %v397, 112
      %v1072 = vpop.permute.xlu0 %1071
      %1073 = vrot.lane.b32.xlu0 %v402, 112
      %v1074 = vpop.permute.xlu0 %1073
      %1075 = vrot.lane.b32.xlu0 %v407, 112
      %v1076 = vpop.permute.xlu0 %1075
      %1077 = vrot.lane.b32.xlu0 %v397, 80
      %v1078 = vpop.permute.xlu0 %1077
      %1079 = vrot.lane.b32.xlu0 %v402, 80
      %v1080 = vpop.permute.xlu0 %1079
      %1081 = vrot.lane.b32.xlu0 %v407, 80
      %v1082 = vpop.permute.xlu0 %1081
      %v1083 = vsel %vm423, %v1072, 0
      %v1085 = vsel %vm423, %v1074, 0
      %v1087 = vsel %vm423, %v1076, 0
      %v1089 = vsel %vm423, %v1078, 0
      %v1091 = vsel %vm423, %v1080, 0
      %v1093 = vsel %vm423, %v1082, 0
      %1095 = vmatprep.subr.mxu0 0.0
      %1096 = vmatpush1.xpose.msra.mxu0 %v1089
      %1097 = vmatprep.subr.mxu0 0.0
      %1098 = vmatpush1.xpose.msra.mxu0 %v1091
      %1099 = vmatprep.subr.mxu0 0.0
      %1100 = vmatpush1.xpose.msra.mxu0 %v1093
      %1101 = vmatprep.subr.mxu0 0.0
      %1102 = vmatpush1.xpose.msra.mxu0 0.0
      %1103 = vmatprep.subr.mxu0 0.0
      %1104 = vmatpush1.xpose.msra.mxu0 0.0
      %1105 = vmatprep.subr.mxu0 0.0
      %1106 = vmatpush1.xpose.msra.mxu0 0.0
      %1107 = vmatprep.subr.mxu0 0.0
      %1108 = vmatpush1.xpose.msra.mxu0 0.0
      %1109 = vmatprep.subr.mxu0 0.0
      %1110 = vmatpush1.xpose.msra.mxu0 0.0
      %1111 = vmatprep.subr.mxu0 0.0
      %1112 = vmatpush1.xpose.msra.mxu0 0.0
      %1113 = vmatprep.subr.mxu0 0.0
      %1114 = vmatpush1.xpose.msra.mxu0 0.0
      %1115 = vmatprep.subr.mxu0 0.0
      %1116 = vmatpush1.xpose.msra.mxu0 0.0
      %1117 = vmatprep.subr.mxu0 0.0
      %1118 = vmatpush1.xpose.msra.mxu0 0.0
      %1119 = vmatprep.subr.mxu0 0.0
      %1120 = vmatpush1.xpose.msra.mxu0 0.0
      %1121 = vmatprep.subr.mxu0 0.0
      %1122 = vmatpush1.xpose.msra.mxu0 0.0
      %1123 = vmatprep.subr.mxu0 0.0
      %1124 = vmatpush1.xpose.msra.mxu0 0.0
      %1125 = vmatprep.subr.mxu0 0.0
      %1126 = vmatpush1.xpose.msra.mxu0 0.0
      %1127 = vmatprep.subr.mxu0 0.0
      %1128 = vmatpush1.xpose.msra.mxu0 0.0
      %1129 = vmatprep.subr.mxu0 0.0
      %1130 = vmatpush1.xpose.msra.mxu0 0.0
      %1131 = vmatprep.subr.mxu0 0.0
      %1132 = vmatpush1.xpose.msra.mxu0 0.0
      %1133 = vmatprep.subr.mxu0 0.0
      %1134 = vmatpush1.xpose.msra.mxu0 0.0
      %1135 = vmatprep.subr.mxu0 0.0
      %1136 = vmatpush1.xpose.msra.mxu0 0.0
      %1137 = vmatprep.subr.mxu0 0.0
      %1138 = vmatpush1.xpose.msra.mxu0 0.0
      %1139 = vmatprep.subr.mxu0 0.0
      %1140 = vmatpush1.xpose.msra.mxu0 0.0
      %1141 = vmatprep.subr.mxu0 0.0
      %1142 = vmatpush1.xpose.msra.mxu0 0.0
      %1143 = vmatprep.subr.mxu0 0.0
      %1144 = vmatpush1.xpose.msra.mxu0 0.0
      %1145 = vmatprep.subr.mxu0 0.0
      %1146 = vmatpush1.xpose.msra.mxu0 0.0
      %1147 = vmatprep.subr.mxu0 0.0
      %1148 = vmatpush1.xpose.msra.mxu0 0.0
      %1149 = vmatprep.subr.mxu0 0.0
      %1150 = vmatpush1.xpose.msra.mxu0 0.0
      %1151 = vmatprep.subr.mxu0 0.0
      %1152 = vmatpush1.xpose.msra.mxu0 0.0
      %1153 = vmatprep.subr.mxu0 0.0
      %1154 = vmatpush1.xpose.msra.mxu0 0.0
      %1155 = vmatprep.subr.mxu0 0.0
      %1156 = vmatpush1.xpose.msra.mxu0 0.0
      %1157 = vmatprep.subr.mxu0 0.0
      %1158 = vmatpush1.xpose.msra.mxu0 0.0
      %1159 = vmatprep.mubr.f32.mxu0 0.0
      %1160 = vmatmul.mubr.f32.gmra.mrb[0].mxu0 %v1083
      %v1161 = vpop.f32.mrb[0].mxu0
      %v1162 = vadd.f32 0.0, %v1161
      %v1163 = vpop.f32.mrb[0].mxu0
      %1164 = vmatprep.mubr.f32.mxu0 0.0
      %1165 = vmatmul.mubr.f32.gmra.mrb[0].mxu0 %v1085
      %v1166 = vpop.f32.mrb[0].mxu0
      %v1167 = vadd.f32 0.0, %v1166
      %v1168 = vpop.f32.mrb[0].mxu0
      %1169 = vmatprep.mubr.f32.mxu0 0.0
      %1170 = vmatmul.mubr.f32.gmra.mrb[0].mxu0 %v1087
      %v1171 = vpop.f32.mrb[0].mxu0
      %v1172 = vadd.f32 0.0, %v1171
      %v1173 = vpop.f32.mrb[0].mxu0
      %1174 = vdwg.mxu0
      %v1175 = vmul.f32 %v1162, 0.17677669
      %v1176 = vmul.f32 %v1167, 0.17677669
      %v1177 = vmul.f32 %v1172, 0.17677669
      %v1178 = vsel %vm519, %v1175, -inf
      %1179 = vmax.xlane.f32.xlu0 %v1178
      %v1180 = vpop.xlane.xlu0 %1179
      %v1181 = vsel %vm519, %v1176, -inf
      %1182 = vmax.xlane.f32.xlu0 %v1181
      %v1183 = vpop.xlane.xlu0 %1182
      %v1184 = vsel %vm526, %v1177, -inf
      %1185 = vmax.xlane.f32.xlu0 %v1184
      %v1186 = vpop.xlane.xlu0 %1185
      %v1187 = vsub.f32 %v1175, %v1180
      %v1188 = vsub.f32 %v1176, %v1183
      %v1189 = vsub.f32 %v1177, %v1186
      %v1190 = vmul.f32 %v1187, 1.442695
      %v1191 = vpow.pop %v1190
      %v1192 = vmul.f32 %v1188, 1.442695
      %v1193 = vpow.pop %v1192
      %v1194 = vmul.f32 %v1189, 1.442695
      %v1195 = vpow.pop %v1194
      %v1196 = vsel %vm519, %v1191, 0.0
      %1197 = vadd.xlane.f32.xlu0 %v1196
      %v1198 = vpop.xlane.xlu0 %1197
      %v1199 = vsel %vm519, %v1193, 0.0
      %1200 = vadd.xlane.f32.xlu0 %v1199
      %v1201 = vpop.xlane.xlu0 %1200
      %v1202 = vsel %vm526, %v1195, 0.0
      %1203 = vadd.xlane.f32.xlu0 %v1202
      %v1204 = vpop.xlane.xlu0 %1203
      %v1205 = vrcp.pop %v1198
      %v1206 = vrcp.pop %v1201
      %v1207 = vrcp.pop %v1204
      %v1208 = vmul.f32 %v1191, %v1205
      %v1209 = vmul.f32 %v1193, %v1206
      %v1210 = vmul.f32 %v1195, %v1207
      %1211 = vrot.lane.b32.xlu0 %v397, 48
      %v1212 = vpop.permute.xlu0 %1211
      %1213 = vrot.lane.b32.xlu0 %v402, 48
      %v1214 = vpop.permute.xlu0 %1213
      %1215 = vrot.lane.b32.xlu0 %v407, 48
      %v1216 = vpop.permute.xlu0 %1215
      %v1220 = vsel %vm519, %v1208, 0
      %v1223 = vsel %vm519, %v1209, 0
      %v1226 = vsel %vm519, %v1210, 0
      %v1228 = vsel %vm571, %v1216, 0
      %1230 = vmatprep.subr.mxu0 0.0
      %1231 = vmatpush1.msra.mxu0 %v1212
      %1232 = vmatprep.subr.mxu0 0.0
      %1233 = vmatpush1.msra.mxu0 %v1214
      %1234 = vmatprep.subr.mxu0 0.0
      %1235 = vmatpush1.msra.mxu0 %v1228
      %1236 = vmatprep.subr.mxu0 0.0
      %1237 = vmatpush1.msra.mxu0 0.0
      %1238 = vmatprep.subr.mxu0 0.0
      %1239 = vmatpush1.msra.mxu0 0.0
      %1240 = vmatprep.subr.mxu0 0.0
      %1241 = vmatpush1.msra.mxu0 0.0
      %1242 = vmatprep.subr.mxu0 0.0
      %1243 = vmatpush1.msra.mxu0 0.0
      %1244 = vmatprep.subr.mxu0 0.0
      %1245 = vmatpush1.msra.mxu0 0.0
      %1246 = vmatprep.subr.mxu0 0.0
      %1247 = vmatpush1.msra.mxu0 0.0
      %1248 = vmatprep.subr.mxu0 0.0
      %1249 = vmatpush1.msra.mxu0 0.0
      %1250 = vmatprep.subr.mxu0 0.0
      %1251 = vmatpush1.msra.mxu0 0.0
      %1252 = vmatprep.subr.mxu0 0.0
      %1253 = vmatpush1.msra.mxu0 0.0
      %1254 = vmatprep.subr.mxu0 0.0
      %1255 = vmatpush1.msra.mxu0 0.0
      %1256 = vmatprep.subr.mxu0 0.0
      %1257 = vmatpush1.msra.mxu0 0.0
      %1258 = vmatprep.subr.mxu0 0.0
      %1259 = vmatpush1.msra.mxu0 0.0
      %1260 = vmatprep.subr.mxu0 0.0
      %1261 = vmatpush1.msra.mxu0 0.0
      %1262 = vmatprep.subr.mxu0 0.0
      %1263 = vmatpush1.msra.mxu0 0.0
      %1264 = vmatprep.subr.mxu0 0.0
      %1265 = vmatpush1.msra.mxu0 0.0
      %1266 = vmatprep.subr.mxu0 0.0
      %1267 = vmatpush1.msra.mxu0 0.0
      %1268 = vmatprep.subr.mxu0 0.0
      %1269 = vmatpush1.msra.mxu0 0.0
      %1270 = vmatprep.subr.mxu0 0.0
      %1271 = vmatpush1.msra.mxu0 0.0
      %1272 = vmatprep.subr.mxu0 0.0
      %1273 = vmatpush1.msra.mxu0 0.0
      %1274 = vmatprep.subr.mxu0 0.0
      %1275 = vmatpush1.msra.mxu0 0.0
      %1276 = vmatprep.subr.mxu0 0.0
      %1277 = vmatpush1.msra.mxu0 0.0
      %1278 = vmatprep.subr.mxu0 0.0
      %1279 = vmatpush1.msra.mxu0 0.0
      %1280 = vmatprep.subr.mxu0 0.0
      %1281 = vmatpush1.msra.mxu0 0.0
      %1282 = vmatprep.subr.mxu0 0.0
      %1283 = vmatpush1.msra.mxu0 0.0
      %1284 = vmatprep.subr.mxu0 0.0
      %1285 = vmatpush1.msra.mxu0 0.0
      %1286 = vmatprep.subr.mxu0 0.0
      %1287 = vmatpush1.msra.mxu0 0.0
      %1288 = vmatprep.subr.mxu0 0.0
      %1289 = vmatpush1.msra.mxu0 0.0
      %1290 = vmatprep.subr.mxu0 0.0
      %1291 = vmatpush1.msra.mxu0 0.0
      %1292 = vmatprep.subr.mxu0 0.0
      %1293 = vmatpush1.msra.mxu0 0.0
      %1294 = vmatprep.mubr.f32.mxu0 0.0
      %1295 = vmatmul.mubr.f32.gmra.mrb[0].mxu0 %v1220
      %v1296 = vpop.f32.mrb[0].mxu0
      %v1297 = vadd.f32 0.0, %v1296
      %v1298 = vpop.f32.mrb[0].mxu0
      %1299 = vmatprep.mubr.f32.mxu0 0.0
      %1300 = vmatmul.mubr.f32.gmra.mrb[0].mxu0 %v1223
      %v1301 = vpop.f32.mrb[0].mxu0
      %v1302 = vadd.f32 0.0, %v1301
      %v1303 = vpop.f32.mrb[0].mxu0
      %1304 = vmatprep.mubr.f32.mxu0 0.0
      %1305 = vmatmul.mubr.f32.gmra.mrb[0].mxu0 %v1226
      %v1306 = vpop.f32.mrb[0].mxu0
      %v1307 = vadd.f32 0.0, %v1306
      %v1308 = vpop.f32.mrb[0].mxu0
      %1309 = vdwg.mxu0
      %v1311 = vsel %vm423, %v1297, 0
      %v1314 = vsel %vm423, %v1302, 0
      %v1317 = vsel %vm423, %v1307, 0
      %1319 = vmatprep.subr.mxu0 0.0
      %1320 = vmatpush1.msra.mxu0 %v412
      %1321 = vmatprep.subr.mxu0 0.0
      %1322 = vmatpush1.msra.mxu0 0.0
      %1323 = vmatprep.subr.mxu0 0.0
      %1324 = vmatpush1.msra.mxu0 0.0
      %1325 = vmatprep.subr.mxu0 0.0
      %1326 = vmatpush1.msra.mxu0 0.0
      %1327 = vmatprep.subr.mxu0 0.0
      %1328 = vmatpush1.msra.mxu0 0.0
      %1329 = vmatprep.subr.mxu0 0.0
      %1330 = vmatpush1.msra.mxu0 0.0
      %1331 = vmatprep.subr.mxu0 0.0
      %1332 = vmatpush1.msra.mxu0 0.0
      %1333 = vmatprep.subr.mxu0 0.0
      %1334 = vmatpush1.msra.mxu0 0.0
      %1335 = vmatprep.subr.mxu0 0.0
      %1336 = vmatpush1.msra.mxu0 0.0
      %1337 = vmatprep.subr.mxu0 0.0
      %1338 = vmatpush1.msra.mxu0 0.0
      %1339 = vmatprep.subr.mxu0 0.0
      %1340 = vmatpush1.msra.mxu0 0.0
      %1341 = vmatprep.subr.mxu0 0.0
      %1342 = vmatpush1.msra.mxu0 0.0
      %1343 = vmatprep.subr.mxu0 0.0
      %1344 = vmatpush1.msra.mxu0 0.0
      %1345 = vmatprep.subr.mxu0 0.0
      %1346 = vmatpush1.msra.mxu0 0.0
      %1347 = vmatprep.subr.mxu0 0.0
      %1348 = vmatpush1.msra.mxu0 0.0
      %1349 = vmatprep.subr.mxu0 0.0
      %1350 = vmatpush1.msra.mxu0 0.0
      %1351 = vmatprep.subr.mxu0 0.0
      %1352 = vmatpush1.msra.mxu0 0.0
      %1353 = vmatprep.subr.mxu0 0.0
      %1354 = vmatpush1.msra.mxu0 0.0
      %1355 = vmatprep.subr.mxu0 0.0
      %1356 = vmatpush1.msra.mxu0 0.0
      %1357 = vmatprep.subr.mxu0 0.0
      %1358 = vmatpush1.msra.mxu0 0.0
      %1359 = vmatprep.subr.mxu0 0.0
      %1360 = vmatpush1.msra.mxu0 0.0
      %1361 = vmatprep.subr.mxu0 0.0
      %1362 = vmatpush1.msra.mxu0 0.0
      %1363 = vmatprep.subr.mxu0 0.0
      %1364 = vmatpush1.msra.mxu0 0.0
      %1365 = vmatprep.subr.mxu0 0.0
      %1366 = vmatpush1.msra.mxu0 0.0
      %1367 = vmatprep.subr.mxu0 0.0
      %1368 = vmatpush1.msra.mxu0 0.0
      %1369 = vmatprep.subr.mxu0 0.0
      %1370 = vmatpush1.msra.mxu0 0.0
      %1371 = vmatprep.subr.mxu0 0.0
      %1372 = vmatpush1.msra.mxu0 0.0
      %1373 = vmatprep.subr.mxu0 0.0
      %1374 = vmatpush1.msra.mxu0 0.0
      %1375 = vmatprep.subr.mxu0 0.0
      %1376 = vmatpush1.msra.mxu0 0.0
      %1377 = vmatprep.subr.mxu0 0.0
      %1378 = vmatpush1.msra.mxu0 0.0
      %1379 = vmatprep.subr.mxu0 0.0
      %1380 = vmatpush1.msra.mxu0 0.0
      %1381 = vmatprep.subr.mxu0 0.0
      %1382 = vmatpush1.msra.mxu0 0.0
      %1383 = vmatprep.mubr.f32.mxu0 0.0
      %1384 = vmatmul.mubr.f32.gmra.mrb[0].mxu0 %v1311
      %v1385 = vpop.f32.mrb[0].mxu0
      %v1386 = vadd.f32 0.0, %v1385
      %v1387 = vpop.f32.mrb[0].mxu0
      %1388 = vmatprep.mubr.f32.mxu0 0.0
      %1389 = vmatmul.mubr.f32.gmra.mrb[0].mxu0 %v1314
      %v1390 = vpop.f32.mrb[0].mxu0
      %v1391 = vadd.f32 0.0, %v1390
      %v1392 = vpop.f32.mrb[0].mxu0
      %1393 = vmatprep.mubr.f32.mxu0 0.0
      %1394 = vmatmul.mubr.f32.gmra.mrb[0].mxu0 %v1317
      %v1395 = vpop.f32.mrb[0].mxu0
      %v1396 = vadd.f32 0.0, %v1395
      %v1397 = vpop.f32.mrb[0].mxu0
      %1398 = vdwg.mxu0
      %v1399 = vadd.f32 %v1058, %v1386
      %v1400 = vadd.f32 %v1063, %v1391
      %v1401 = vadd.f32 %v1068, %v1396
      %1402 = vrot.lane.b32.xlu0 %v397, 104
      %v1403 = vpop.permute.xlu0 %1402
      %1404 = vrot.lane.b32.xlu0 %v402, 104
      %v1405 = vpop.permute.xlu0 %1404
      %1406 = vrot.lane.b32.xlu0 %v407, 104
      %v1407 = vpop.permute.xlu0 %1406
      %1408 = vrot.lane.b32.xlu0 %v397, 72
      %v1409 = vpop.permute.xlu0 %1408
      %1410 = vrot.lane.b32.xlu0 %v402, 72
      %v1411 = vpop.permute.xlu0 %1410
      %1412 = vrot.lane.b32.xlu0 %v407, 72
      %v1413 = vpop.permute.xlu0 %1412
      %v1414 = vsel %vm423, %v1403, 0
      %v1416 = vsel %vm423, %v1405, 0
      %v1418 = vsel %vm423, %v1407, 0
      %v1420 = vsel %vm423, %v1409, 0
      %v1422 = vsel %vm423, %v1411, 0
      %v1424 = vsel %vm423, %v1413, 0
      %1426 = vmatprep.subr.mxu0 0.0
      %1427 = vmatpush1.xpose.msra.mxu0 %v1420
      %1428 = vmatprep.subr.mxu0 0.0
      %1429 = vmatpush1.xpose.msra.mxu0 %v1422
      %1430 = vmatprep.subr.mxu0 0.0
      %1431 = vmatpush1.xpose.msra.mxu0 %v1424
      %1432 = vmatprep.subr.mxu0 0.0
      %1433 = vmatpush1.xpose.msra.mxu0 0.0
      %1434 = vmatprep.subr.mxu0 0.0
      %1435 = vmatpush1.xpose.msra.mxu0 0.0
      %1436 = vmatprep.subr.mxu0 0.0
      %1437 = vmatpush1.xpose.msra.mxu0 0.0
      %1438 = vmatprep.subr.mxu0 0.0
      %1439 = vmatpush1.xpose.msra.mxu0 0.0
      %1440 = vmatprep.subr.mxu0 0.0
      %1441 = vmatpush1.xpose.msra.mxu0 0.0
      %1442 = vmatprep.subr.mxu0 0.0
      %1443 = vmatpush1.xpose.msra.mxu0 0.0
      %1444 = vmatprep.subr.mxu0 0.0
      %1445 = vmatpush1.xpose.msra.mxu0 0.0
      %1446 = vmatprep.subr.mxu0 0.0
      %1447 = vmatpush1.xpose.msra.mxu0 0.0
      %1448 = vmatprep.subr.mxu0 0.0
      %1449 = vmatpush1.xpose.msra.mxu0 0.0
      %1450 = vmatprep.subr.mxu0 0.0
      %1451 = vmatpush1.xpose.msra.mxu0 0.0
      %1452 = vmatprep.subr.mxu0 0.0
      %1453 = vmatpush1.xpose.msra.mxu0 0.0
      %1454 = vmatprep.subr.mxu0 0.0
      %1455 = vmatpush1.xpose.msra.mxu0 0.0
      %1456 = vmatprep.subr.mxu0 0.0
      %1457 = vmatpush1.xpose.msra.mxu0 0.0
      %1458 = vmatprep.subr.mxu0 0.0
      %1459 = vmatpush1.xpose.msra.mxu0 0.0
      %1460 = vmatprep.subr.mxu0 0.0
      %1461 = vmatpush1.xpose.msra.mxu0 0.0
      %1462 = vmatprep.subr.mxu0 0.0
      %1463 = vmatpush1.xpose.msra.mxu0 0.0
      %1464 = vmatprep.subr.mxu0 0.0
      %1465 = vmatpush1.xpose.msra.mxu0 0.0
      %1466 = vmatprep.subr.mxu0 0.0
      %1467 = vmatpush1.xpose.msra.mxu0 0.0
      %1468 = vmatprep.subr.mxu0 0.0
      %1469 = vmatpush1.xpose.msra.mxu0 0.0
      %1470 = vmatprep.subr.mxu0 0.0
      %1471 = vmatpush1.xpose.msra.mxu0 0.0
      %1472 = vmatprep.subr.mxu0 0.0
      %1473 = vmatpush1.xpose.msra.mxu0 0.0
      %1474 = vmatprep.subr.mxu0 0.0
      %1475 = vmatpush1.xpose.msra.mxu0 0.0
      %1476 = vmatprep.subr.mxu0 0.0
      %1477 = vmatpush1.xpose.msra.mxu0 0.0
      %1478 = vmatprep.subr.mxu0 0.0
      %1479 = vmatpush1.xpose.msra.mxu0 0.0
      %1480 = vmatprep.subr.mxu0 0.0
      %1481 = vmatpush1.xpose.msra.mxu0 0.0
      %1482 = vmatprep.subr.mxu0 0.0
      %1483 = vmatpush1.xpose.msra.mxu0 0.0
      %1484 = vmatprep.subr.mxu0 0.0
      %1485 = vmatpush1.xpose.msra.mxu0 0.0
      %1486 = vmatprep.subr.mxu0 0.0
      %1487 = vmatpush1.xpose.msra.mxu0 0.0
      %1488 = vmatprep.subr.mxu0 0.0
      %1489 = vmatpush1.xpose.msra.mxu0 0.0
      %1490 = vmatprep.mubr.f32.mxu0 0.0
      %1491 = vmatmul.mubr.f32.gmra.mrb[0].mxu0 %v1414
      %v1492 = vpop.f32.mrb[0].mxu0
      %v1493 = vadd.f32 0.0, %v1492
      %v1494 = vpop.f32.mrb[0].mxu0
      %1495 = vmatprep.mubr.f32.mxu0 0.0
      %1496 = vmatmul.mubr.f32.gmra.mrb[0].mxu0 %v1416
      %v1497 = vpop.f32.mrb[0].mxu0
      %v1498 = vadd.f32 0.0, %v1497
      %v1499 = vpop.f32.mrb[0].mxu0
      %1500 = vmatprep.mubr.f32.mxu0 0.0
      %1501 = vmatmul.mubr.f32.gmra.mrb[0].mxu0 %v1418
      %v1502 = vpop.f32.mrb[0].mxu0
      %v1503 = vadd.f32 0.0, %v1502
      %v1504 = vpop.f32.mrb[0].mxu0
      %1505 = vdwg.mxu0
      %v1506 = vmul.f32 %v1493, 0.17677669
      %v1507 = vmul.f32 %v1498, 0.17677669
      %v1508 = vmul.f32 %v1503, 0.17677669
      %v1509 = vsel %vm519, %v1506, -inf
      %1510 = vmax.xlane.f32.xlu0 %v1509
      %v1511 = vpop.xlane.xlu0 %1510
      %v1512 = vsel %vm519, %v1507, -inf
      %1513 = vmax.xlane.f32.xlu0 %v1512
      %v1514 = vpop.xlane.xlu0 %1513
      %v1515 = vsel %vm526, %v1508, -inf
      %1516 = vmax.xlane.f32.xlu0 %v1515
      %v1517 = vpop.xlane.xlu0 %1516
      %v1518 = vsub.f32 %v1506, %v1511
      %v1519 = vsub.f32 %v1507, %v1514
      %v1520 = vsub.f32 %v1508, %v1517
      %v1521 = vmul.f32 %v1518, 1.442695
      %v1522 = vpow.pop %v1521
      %v1523 = vmul.f32 %v1519, 1.442695
      %v1524 = vpow.pop %v1523
      %v1525 = vmul.f32 %v1520, 1.442695
      %v1526 = vpow.pop %v1525
      %v1527 = vsel %vm519, %v1522, 0.0
      %1528 = vadd.xlane.f32.xlu0 %v1527
      %v1529 = vpop.xlane.xlu0 %1528
      %v1530 = vsel %vm519, %v1524, 0.0
      %1531 = vadd.xlane.f32.xlu0 %v1530
      %v1532 = vpop.xlane.xlu0 %1531
      %v1533 = vsel %vm526, %v1526, 0.0
      %1534 = vadd.xlane.f32.xlu0 %v1533
      %v1535 = vpop.xlane.xlu0 %1534
      %v1536 = vrcp.pop %v1529
      %v1537 = vrcp.pop %v1532
      %v1538 = vrcp.pop %v1535
      %v1539 = vmul.f32 %v1522, %v1536
      %v1540 = vmul.f32 %v1524, %v1537
      %v1541 = vmul.f32 %v1526, %v1538
      %1542 = vrot.lane.b32.xlu0 %v397, 40
      %v1543 = vpop.permute.xlu0 %1542
      %1544 = vrot.lane.b32.xlu0 %v402, 40
      %v1545 = vpop.permute.xlu0 %1544
      %1546 = vrot.lane.b32.xlu0 %v407, 40
      %v1547 = vpop.permute.xlu0 %1546
      %v1551 = vsel %vm519, %v1539, 0
      %v1554 = vsel %vm519, %v1540, 0
      %v1557 = vsel %vm519, %v1541, 0
      %v1559 = vsel %vm571, %v1547, 0
      %1561 = vmatprep.subr.mxu0 0.0
      %1562 = vmatpush1.msra.mxu0 %v1543
      %1563 = vmatprep.subr.mxu0 0.0
      %1564 = vmatpush1.msra.mxu0 %v1545
      %1565 = vmatprep.subr.mxu0 0.0
      %1566 = vmatpush1.msra.mxu0 %v1559
      %1567 = vmatprep.subr.mxu0 0.0
      %1568 = vmatpush1.msra.mxu0 0.0
      %1569 = vmatprep.subr.mxu0 0.0
      %1570 = vmatpush1.msra.mxu0 0.0
      %1571 = vmatprep.subr.mxu0 0.0
      %1572 = vmatpush1.msra.mxu0 0.0
      %1573 = vmatprep.subr.mxu0 0.0
      %1574 = vmatpush1.msra.mxu0 0.0
      %1575 = vmatprep.subr.mxu0 0.0
      %1576 = vmatpush1.msra.mxu0 0.0
      %1577 = vmatprep.subr.mxu0 0.0
      %1578 = vmatpush1.msra.mxu0 0.0
      %1579 = vmatprep.subr.mxu0 0.0
      %1580 = vmatpush1.msra.mxu0 0.0
      %1581 = vmatprep.subr.mxu0 0.0
      %1582 = vmatpush1.msra.mxu0 0.0
      %1583 = vmatprep.subr.mxu0 0.0
      %1584 = vmatpush1.msra.mxu0 0.0
      %1585 = vmatprep.subr.mxu0 0.0
      %1586 = vmatpush1.msra.mxu0 0.0
      %1587 = vmatprep.subr.mxu0 0.0
      %1588 = vmatpush1.msra.mxu0 0.0
      %1589 = vmatprep.subr.mxu0 0.0
      %1590 = vmatpush1.msra.mxu0 0.0
      %1591 = vmatprep.subr.mxu0 0.0
      %1592 = vmatpush1.msra.mxu0 0.0
      %1593 = vmatprep.subr.mxu0 0.0
      %1594 = vmatpush1.msra.mxu0 0.0
      %1595 = vmatprep.subr.mxu0 0.0
      %1596 = vmatpush1.msra.mxu0 0.0
      %1597 = vmatprep.subr.mxu0 0.0
      %1598 = vmatpush1.msra.mxu0 0.0
      %1599 = vmatprep.subr.mxu0 0.0
      %1600 = vmatpush1.msra.mxu0 0.0
      %1601 = vmatprep.subr.mxu0 0.0
      %1602 = vmatpush1.msra.mxu0 0.0
      %1603 = vmatprep.subr.mxu0 0.0
      %1604 = vmatpush1.msra.mxu0 0.0
      %1605 = vmatprep.subr.mxu0 0.0
      %1606 = vmatpush1.msra.mxu0 0.0
      %1607 = vmatprep.subr.mxu0 0.0
      %1608 = vmatpush1.msra.mxu0 0.0
      %1609 = vmatprep.subr.mxu0 0.0
      %1610 = vmatpush1.msra.mxu0 0.0
      %1611 = vmatprep.subr.mxu0 0.0
      %1612 = vmatpush1.msra.mxu0 0.0
      %1613 = vmatprep.subr.mxu0 0.0
      %1614 = vmatpush1.msra.mxu0 0.0
      %1615 = vmatprep.subr.mxu0 0.0
      %1616 = vmatpush1.msra.mxu0 0.0
      %1617 = vmatprep.subr.mxu0 0.0
      %1618 = vmatpush1.msra.mxu0 0.0
      %1619 = vmatprep.subr.mxu0 0.0
      %1620 = vmatpush1.msra.mxu0 0.0
      %1621 = vmatprep.subr.mxu0 0.0
      %1622 = vmatpush1.msra.mxu0 0.0
      %1623 = vmatprep.subr.mxu0 0.0
      %1624 = vmatpush1.msra.mxu0 0.0
      %1625 = vmatprep.mubr.f32.mxu0 0.0
      %1626 = vmatmul.mubr.f32.gmra.mrb[0].mxu0 %v1551
      %v1627 = vpop.f32.mrb[0].mxu0
      %v1628 = vadd.f32 0.0, %v1627
      %v1629 = vpop.f32.mrb[0].mxu0
      %1630 = vmatprep.mubr.f32.mxu0 0.0
      %1631 = vmatmul.mubr.f32.gmra.mrb[0].mxu0 %v1554
      %v1632 = vpop.f32.mrb[0].mxu0
      %v1633 = vadd.f32 0.0, %v1632
      %v1634 = vpop.f32.mrb[0].mxu0
      %1635 = vmatprep.mubr.f32.mxu0 0.0
      %1636 = vmatmul.mubr.f32.gmra.mrb[0].mxu0 %v1557
      %v1637 = vpop.f32.mrb[0].mxu0
      %v1638 = vadd.f32 0.0, %v1637
      %v1639 = vpop.f32.mrb[0].mxu0
      %1640 = vdwg.mxu0
      %v1642 = vsel %vm423, %v1628, 0
      %v1645 = vsel %vm423, %v1633, 0
      %v1648 = vsel %vm423, %v1638, 0
      %1650 = vmatprep.subr.mxu0 0.0
      %1651 = vmatpush1.msra.mxu0 %v413
      %1652 = vmatprep.subr.mxu0 0.0
      %1653 = vmatpush1.msra.mxu0 0.0
      %1654 = vmatprep.subr.mxu0 0.0
      %1655 = vmatpush1.msra.mxu0 0.0
      %1656 = vmatprep.subr.mxu0 0.0
      %1657 = vmatpush1.msra.mxu0 0.0
      %1658 = vmatprep.subr.mxu0 0.0
      %1659 = vmatpush1.msra.mxu0 0.0
      %1660 = vmatprep.subr.mxu0 0.0
      %1661 = vmatpush1.msra.mxu0 0.0
      %1662 = vmatprep.subr.mxu0 0.0
      %1663 = vmatpush1.msra.mxu0 0.0
      %1664 = vmatprep.subr.mxu0 0.0
      %1665 = vmatpush1.msra.mxu0 0.0
      %1666 = vmatprep.subr.mxu0 0.0
      %1667 = vmatpush1.msra.mxu0 0.0
      %1668 = vmatprep.subr.mxu0 0.0
      %1669 = vmatpush1.msra.mxu0 0.0
      %1670 = vmatprep.subr.mxu0 0.0
      %1671 = vmatpush1.msra.mxu0 0.0
      %1672 = vmatprep.subr.mxu0 0.0
      %1673 = vmatpush1.msra.mxu0 0.0
      %1674 = vmatprep.subr.mxu0 0.0
      %1675 = vmatpush1.msra.mxu0 0.0
      %1676 = vmatprep.subr.mxu0 0.0
      %1677 = vmatpush1.msra.mxu0 0.0
      %1678 = vmatprep.subr.mxu0 0.0
      %1679 = vmatpush1.msra.mxu0 0.0
      %1680 = vmatprep.subr.mxu0 0.0
      %1681 = vmatpush1.msra.mxu0 0.0
      %1682 = vmatprep.subr.mxu0 0.0
      %1683 = vmatpush1.msra.mxu0 0.0
      %1684 = vmatprep.subr.mxu0 0.0
      %1685 = vmatpush1.msra.mxu0 0.0
      %1686 = vmatprep.subr.mxu0 0.0
      %1687 = vmatpush1.msra.mxu0 0.0
      %1688 = vmatprep.subr.mxu0 0.0
      %1689 = vmatpush1.msra.mxu0 0.0
      %1690 = vmatprep.subr.mxu0 0.0
      %1691 = vmatpush1.msra.mxu0 0.0
      %1692 = vmatprep.subr.mxu0 0.0
      %1693 = vmatpush1.msra.mxu0 0.0
      %1694 = vmatprep.subr.mxu0 0.0
      %1695 = vmatpush1.msra.mxu0 0.0
      %1696 = vmatprep.subr.mxu0 0.0
      %1697 = vmatpush1.msra.mxu0 0.0
      %1698 = vmatprep.subr.mxu0 0.0
      %1699 = vmatpush1.msra.mxu0 0.0
      %1700 = vmatprep.subr.mxu0 0.0
      %1701 = vmatpush1.msra.mxu0 0.0
      %1702 = vmatprep.subr.mxu0 0.0
      %1703 = vmatpush1.msra.mxu0 0.0
      %1704 = vmatprep.subr.mxu0 0.0
      %1705 = vmatpush1.msra.mxu0 0.0
      %1706 = vmatprep.subr.mxu0 0.0
      %1707 = vmatpush1.msra.mxu0 0.0
      %1708 = vmatprep.subr.mxu0 0.0
      %1709 = vmatpush1.msra.mxu0 0.0
      %1710 = vmatprep.subr.mxu0 0.0
      %1711 = vmatpush1.msra.mxu0 0.0
      %1712 = vmatprep.subr.mxu0 0.0
      %1713 = vmatpush1.msra.mxu0 0.0
      %1714 = vmatprep.mubr.f32.mxu0 0.0
      %1715 = vmatmul.mubr.f32.gmra.mrb[0].mxu0 %v1642
      %v1716 = vpop.f32.mrb[0].mxu0
      %v1717 = vadd.f32 0.0, %v1716
      %v1718 = vpop.f32.mrb[0].mxu0
      %1719 = vmatprep.mubr.f32.mxu0 0.0
      %1720 = vmatmul.mubr.f32.gmra.mrb[0].mxu0 %v1645
      %v1721 = vpop.f32.mrb[0].mxu0
      %v1722 = vadd.f32 0.0, %v1721
      %v1723 = vpop.f32.mrb[0].mxu0
      %1724 = vmatprep.mubr.f32.mxu0 0.0
      %1725 = vmatmul.mubr.f32.gmra.mrb[0].mxu0 %v1648
      %v1726 = vpop.f32.mrb[0].mxu0
      %v1727 = vadd.f32 0.0, %v1726
      %v1728 = vpop.f32.mrb[0].mxu0
      %1729 = vdwg.mxu0
      %v1730 = vadd.f32 %v1399, %v1717
      %v1731 = vadd.f32 %v1400, %v1722
      %v1732 = vadd.f32 %v1401, %v1727
      %v1733 = vld [vmem:[%s5] sm:$0x1]
      %v1735 = vlaneseq
      %v1736 = vshrl.u32 %v1735, 7
      %v1737 = vsub.s32 0, %v1736
      %v1738 = vrot.slane %v1733, %v1737
      %v1740 = vadd.f32 %v1730, %v1738
      %v1741 = vadd.f32 %v1731, %v1738
      %v1742 = vadd.f32 %v1732, %v1738
      %v1743 = vadd.f32 %v1740, %v252
      %v1744 = vadd.f32 %v1741, %v253
      %v1745 = vadd.f32 %v1742, %v254
      %1746 = vst.msk [vmem:[%s251] sm:$0xff] %vm257, %v1743
      %1747 = vst.msk [vmem:[%s251 + $0x8] sm:$0xff] %vm257, %v1744
      %1748 = vst.msk [vmem:[%s251 + $0x10] sm:$0x1] %vm264, %v1745
      %p1749 = scmp.lt.s32.totalorder %s17, 1
      %s1750 = scalar_select %p1749, %s17, 1
      %s1751 = smul.addr %s1750, 3
      %s1752 = smul.addr %s1751, 8
      %s1753 = scalar_lea.vmem %s6, %s1752
      // Predicated region
      $region45: #{vit_forward.8} parent=43 // pred_check
        %p1754 = pneg %p166
      $region46: #{vit_forward.8} parent=43 // pred_check_branch
        %1756 = sbr.rel (%p1754) target = $region48
      $region47: #{vit_forward.8} parent=43 // pred_region
        _
      $region48: #{vit_forward.8} parent=43 // pred_fallthru
        _
    $region44: #{vit_forward.8} parent=5 // pred_fallthru
      _
    %p1757 = scmp.le.s32.totalorder 2, %s12
    // Predicated region
    $region49: #{vit_forward.8} parent=5 // pred_check
      %p1758 = pneg %p1757
    $region50: #{vit_forward.8} parent=5 // pred_check_branch
      %1760 = sbr.rel (%p1758) target = $region52
    $region51: #{vit_forward.8} parent=5 // pred_region
      %s1761 = ssub.s32 %s12, 2
      // Predicated region
      $region53: #{vit_forward.8} parent=51 // pred_check
        %p1762 = pneg %p172
      $region54: #{vit_forward.8} parent=51 // pred_check_branch
        %1764 = sbr.rel (%p1762) target = $region56
      $region55: #{vit_forward.8} parent=51 // pred_region
        %p1765 = scmp.lt.s32.totalorder %s18, 1
        %s1766 = scalar_select %p1765, %s18, 1
        %s1767 = smul.addr %s1766, 3
        %s1768 = smul.addr %s1767, 8
        %s1769 = scalar_lea.vmem %s6, %s1768
      $region56: #{vit_forward.8} parent=51 // pred_fallthru
        _
    $region52: #{vit_forward.8} parent=5 // pred_fallthru
      _
  $region6: #{vit_forward.8} parent=0 // loop_footer
    %s16 = sadd.s32 1, %s12
  $region7: #{vit_forward.8} parent=0 // loop_footer_branch
    %11 = sbr.rel target = $region3
  $region8: #{vit_forward.8} parent=0 // loop_exit
    _

</llo_original>
